<compile_context>
chip_gen: v5e
topology: v5e:2x2
jax: 0.10.0
libtpu: 0.0.40
codegen_flags: <defaults>
</compile_context>

<pallas_src>
import jax
import jax.numpy as jnp
from jax.experimental import pallas as pl
from jax.experimental.pallas import tpu as pltpu


# ----------------------------------------------------------------------------
# GRU cell step with fused gate matmuls.
# Gate weights are pre-stacked along the output dim in PyTorch order (r, z, n):
#   wih: (in, 3H), whh: (H, 3H), biases: (1, 3H).
# ----------------------------------------------------------------------------
def _gru_step(x_emb, h, wih, bih, whh, bhh, hid_dim):
    gi = jnp.dot(x_emb, wih, preferred_element_type=jnp.float32) + bih   # (B, 3H)
    gh = jnp.dot(h, whh, preferred_element_type=jnp.float32) + bhh       # (B, 3H)
    gi_r, gi_z, gi_n = gi[:, :hid_dim], gi[:, hid_dim:2 * hid_dim], gi[:, 2 * hid_dim:]
    gh_r, gh_z, gh_n = gh[:, :hid_dim], gh[:, hid_dim:2 * hid_dim], gh[:, 2 * hid_dim:]
    r = jax.nn.sigmoid(gi_r + gh_r)
    z = jax.nn.sigmoid(gi_z + gh_z)
    n = jnp.tanh(gi_n + r * gh_n)
    return (1.0 - z) * n + z * h


# ----------------------------------------------------------------------------
# Fused Seq2Seq kernel: encoder GRU over T steps, then autoregressive decoder
# over T steps (teacher_forcing_ratio = 0). Everything stays in VMEM; the two
# output buffers are flushed to HBM once when the kernel finishes.
# ----------------------------------------------------------------------------
def _seq2seq_kernel(src_ref,
                    e_we, e_be, e_wih, e_bih, e_whh, e_bhh,
                    d_we, d_be, d_wih, d_bih, d_whh, d_bhh, d_wfc, d_bfc,
                    out_ref, enc_out_ref):
    T, B, _ = src_ref.shape
    H = e_whh.shape[0]
    D = d_wfc.shape[1]

    # Hoist all weight loads out of the time loops (loop-invariant VMEM reads).
    enc_we = e_we[...]; enc_be = e_be[...]
    enc_wih = e_wih[...]; enc_bih = e_bih[...]
    enc_whh = e_whh[...]; enc_bhh = e_bhh[...]
    dec_we = d_we[...]; dec_be = d_be[...]
    dec_wih = d_wih[...]; dec_bih = d_bih[...]
    dec_whh = d_whh[...]; dec_bhh = d_bhh[...]
    dec_wfc = d_wfc[...]; dec_bfc = d_bfc[...]

    # ---------------- encoder: emb = relu(x @ We + be); 1-layer GRU ----------------
    def enc_body(t, h):
        x = src_ref[t]                                                    # (B, Din)
        emb = jnp.maximum(
            jnp.dot(x, enc_we, preferred_element_type=jnp.float32) + enc_be, 0.0)
        h_new = _gru_step(emb, h, enc_wih, enc_bih, enc_whh, enc_bhh, H)
        enc_out_ref[t] = h_new                                            # encoder_output[t]
        return h_new

    h_enc = jax.lax.fori_loop(0, T, enc_body,
                              jnp.zeros((B, H), jnp.float32), unroll=True)

    # --------- decoder (TF ratio = 0): feed own prediction back each step ---------
    def dec_body(t, carry):
        y, h = carry
        emb = jnp.maximum(
            jnp.dot(y, dec_we, preferred_element_type=jnp.float32) + dec_be, 0.0)
        h_new = _gru_step(emb, h, dec_wih, dec_bih, dec_whh, dec_bhh, H)
        pred = jnp.dot(h_new, dec_wfc, preferred_element_type=jnp.float32) + dec_bfc
        out_ref[t] = pred                                                 # outputs[t]
        return pred, h_new

    y0 = jnp.zeros((B, D), jnp.float32)          # eval mode: zeros_like(src[0])
    jax.lax.fori_loop(0, T, dec_body, (y0, h_enc), unroll=True)


def seq2seq_forward(params, src, trg=None, teacher_forcing_ratio=0.0):
    """Eval-path Seq2Seq.forward: returns (outputs, encoder_output)."""
    # TODO(synk): trg / teacher forcing only matter when ratio > 0 (random.random()),
    # which has no deterministic Pallas equivalent; eval path (ratio = 0) only.
    del trg, teacher_forcing_ratio
    T, B, _ = src.shape
    H = params['enc']['whh'].shape[0]
    D = params['dec']['wfc'].shape[1]

    # Pad batch to a multiple of 8 (f32 sublane). Padded rows are independent
    # (row-wise matmuls + elementwise gates) and are sliced off afterwards.
    B_pad = max(8, ((B + 7) // 8) * 8)
    if B_pad != B:
        src = jnp.pad(src, ((0, 0), (0, B_pad - B), (0, 0)))

    enc, dec = params['enc'], params['dec']
    outputs, enc_out = pl.pallas_call(
        _seq2seq_kernel,
        out_shape=(jax.ShapeDtypeStruct((T, B_pad, D), jnp.float32),
                   jax.ShapeDtypeStruct((T, B_pad, H), jnp.float32)),
    )(src,
      enc['we'], enc['be'], enc['wih'], enc['bih'], enc['whh'], enc['bhh'],
      dec['we'], dec['be'], dec['wih'], dec['bih'], dec['whh'], dec['bhh'],
      dec['wfc'], dec['bfc'])

    return outputs[:, :B], enc_out[:, :B]


# ----------------------------------------------------------------------------
# Parameter construction (deterministic, synthetic; PyTorch-style uniform init).
# ----------------------------------------------------------------------------
def _init_linear(key, fan_in, fan_out):
    k1, k2 = jax.random.split(key)
    s = 1.0 / float(fan_in) ** 0.5
    w = jax.random.uniform(k1, (fan_in, fan_out), jnp.float32, -s, s)
    b = jax.random.uniform(k2, (1, fan_out), jnp.float32, -s, s)
    return w, b


def init_encoder_params(key, input_dim, emb_dim, hid_dim):
    keys = jax.random.split(key, 4)
    we, be = _init_linear(keys[0], input_dim, emb_dim)
    s = 1.0 / float(hid_dim) ** 0.5
    # Gate weights stacked along the output dim (r, z, n) -> fused (·, 3H) matmuls.
    wih = jax.random.uniform(keys[1], (emb_dim, 3 * hid_dim), jnp.float32, -s, s)
    whh = jax.random.uniform(keys[2], (hid_dim, 3 * hid_dim), jnp.float32, -s, s)
    bb = jax.random.uniform(keys[3], (2, 1, 3 * hid_dim), jnp.float32, -s, s)
    return dict(we=we, be=be, wih=wih, bih=bb[0], whh=whh, bhh=bb[1])


def init_decoder_params(key, output_dim, emb_dim, hid_dim):
    k_enc, k_fc = jax.random.split(key)
    p = init_encoder_params(k_enc, output_dim, emb_dim, hid_dim)
    wfc, bfc = _init_linear(k_fc, hid_dim, output_dim)
    p.update(wfc=wfc, bfc=bfc)
    return p


if __name__ == "__main__":
    T, B, D = 8, 2, 16          # seq_len, batch, feature dim (decoder output_size == D)
    E, H = 32, 32               # embedding / GRU hidden dims

    root = jax.random.PRNGKey(0)
    k_src, k_enc, k_dec = jax.random.split(root, 3)

    src = jax.random.normal(k_src, (T, B, D), jnp.float32)
    params = dict(
        enc=init_encoder_params(k_enc, D, E, H),
        dec=init_decoder_params(k_dec, D, E, H),
    )

    outputs, encoder_output = seq2seq_forward(params, src)
    jax.block_until_ready(outputs)
    jax.block_until_ready(encoder_output)
    assert outputs.shape == (T, B, D)
    assert encoder_output.shape == (T, B, H)
    print("KERNEL_OK")
</pallas_src>

<mosaic_0001>
module attributes {stable_mosaic.version = 11 : i64} {
  func.func @_seq2seq_kernel(%arg0: memref<8x8x16xf32, #tpu.memory_space<vmem>>, %arg1: memref<16x32xf32, #tpu.memory_space<vmem>>, %arg2: memref<1x32xf32, #tpu.memory_space<vmem>>, %arg3: memref<32x96xf32, #tpu.memory_space<vmem>>, %arg4: memref<1x96xf32, #tpu.memory_space<vmem>>, %arg5: memref<32x96xf32, #tpu.memory_space<vmem>>, %arg6: memref<1x96xf32, #tpu.memory_space<vmem>>, %arg7: memref<16x32xf32, #tpu.memory_space<vmem>>, %arg8: memref<1x32xf32, #tpu.memory_space<vmem>>, %arg9: memref<32x96xf32, #tpu.memory_space<vmem>>, %arg10: memref<1x96xf32, #tpu.memory_space<vmem>>, %arg11: memref<32x96xf32, #tpu.memory_space<vmem>>, %arg12: memref<1x96xf32, #tpu.memory_space<vmem>>, %arg13: memref<32x16xf32, #tpu.memory_space<vmem>>, %arg14: memref<1x16xf32, #tpu.memory_space<vmem>>, %arg15: memref<8x8x16xf32, #tpu.memory_space<vmem>>, %arg16: memref<8x8x32xf32, #tpu.memory_space<vmem>>) attributes {dimension_semantics = [], scalar_prefetch = 0 : i64, scratch_operands = 0 : i64, tpu.core_type = #tpu.core_type<tc>} {
    %c0 = arith.constant 0 : index
    %c0_0 = arith.constant 0 : index
    %0 = vector.load %arg1[%c0, %c0_0] : memref<16x32xf32, #tpu.memory_space<vmem>>, vector<16x32xf32>
    %c0_1 = arith.constant 0 : index
    %c0_2 = arith.constant 0 : index
    %1 = vector.load %arg2[%c0_1, %c0_2] : memref<1x32xf32, #tpu.memory_space<vmem>>, vector<1x32xf32>
    %c0_3 = arith.constant 0 : index
    %c0_4 = arith.constant 0 : index
    %2 = vector.load %arg3[%c0_3, %c0_4] : memref<32x96xf32, #tpu.memory_space<vmem>>, vector<32x96xf32>
    %c0_5 = arith.constant 0 : index
    %c0_6 = arith.constant 0 : index
    %3 = vector.load %arg4[%c0_5, %c0_6] : memref<1x96xf32, #tpu.memory_space<vmem>>, vector<1x96xf32>
    %c0_7 = arith.constant 0 : index
    %c0_8 = arith.constant 0 : index
    %4 = vector.load %arg5[%c0_7, %c0_8] : memref<32x96xf32, #tpu.memory_space<vmem>>, vector<32x96xf32>
    %c0_9 = arith.constant 0 : index
    %c0_10 = arith.constant 0 : index
    %5 = vector.load %arg6[%c0_9, %c0_10] : memref<1x96xf32, #tpu.memory_space<vmem>>, vector<1x96xf32>
    %c0_11 = arith.constant 0 : index
    %c0_12 = arith.constant 0 : index
    %6 = vector.load %arg7[%c0_11, %c0_12] : memref<16x32xf32, #tpu.memory_space<vmem>>, vector<16x32xf32>
    %c0_13 = arith.constant 0 : index
    %c0_14 = arith.constant 0 : index
    %7 = vector.load %arg8[%c0_13, %c0_14] : memref<1x32xf32, #tpu.memory_space<vmem>>, vector<1x32xf32>
    %c0_15 = arith.constant 0 : index
    %c0_16 = arith.constant 0 : index
    %8 = vector.load %arg9[%c0_15, %c0_16] : memref<32x96xf32, #tpu.memory_space<vmem>>, vector<32x96xf32>
    %c0_17 = arith.constant 0 : index
    %c0_18 = arith.constant 0 : index
    %9 = vector.load %arg10[%c0_17, %c0_18] : memref<1x96xf32, #tpu.memory_space<vmem>>, vector<1x96xf32>
    %c0_19 = arith.constant 0 : index
    %c0_20 = arith.constant 0 : index
    %10 = vector.load %arg11[%c0_19, %c0_20] : memref<32x96xf32, #tpu.memory_space<vmem>>, vector<32x96xf32>
    %c0_21 = arith.constant 0 : index
    %c0_22 = arith.constant 0 : index
    %11 = vector.load %arg12[%c0_21, %c0_22] : memref<1x96xf32, #tpu.memory_space<vmem>>, vector<1x96xf32>
    %c0_23 = arith.constant 0 : index
    %c0_24 = arith.constant 0 : index
    %12 = vector.load %arg13[%c0_23, %c0_24] : memref<32x16xf32, #tpu.memory_space<vmem>>, vector<32x16xf32>
    %c0_25 = arith.constant 0 : index
    %c0_26 = arith.constant 0 : index
    %13 = vector.load %arg14[%c0_25, %c0_26] : memref<1x16xf32, #tpu.memory_space<vmem>>, vector<1x16xf32>
    %cst = arith.constant 0.000000e+00 : f32
    %14 = vector.broadcast %cst : f32 to vector<8x32xf32>
    %c0_i32 = arith.constant 0 : i32
    %15 = arith.index_cast %c0_i32 : i32 to index
    %c0_27 = arith.constant 0 : index
    %c0_28 = arith.constant 0 : index
    %16 = vector.load %arg0[%15, %c0_27, %c0_28] : memref<8x8x16xf32, #tpu.memory_space<vmem>>, vector<1x8x16xf32>
    %17 = vector.shape_cast %16 : vector<1x8x16xf32> to vector<8x16xf32>
    %cst_29 = arith.constant dense<0.000000e+00> : vector<8x32xf32>
    %18 = tpu.matmul %17, %0, %cst_29 {dimension_numbers = #tpu.dot_dimension_numbers<[1], [0], [0], [1], [0, 0, 1, 1], [], []>} : vector<8x16xf32>, vector<16x32xf32>, vector<8x32xf32> -> vector<8x32xf32>
    %19 = vector.broadcast %1 : vector<1x32xf32> to vector<8x32xf32>
    %20 = arith.addf %18, %19 : vector<8x32xf32>
    %cst_30 = arith.constant 0.000000e+00 : f32
    %21 = vector.broadcast %cst_30 : f32 to vector<8x32xf32>
    %22 = arith.maximumf %20, %21 : vector<8x32xf32>
    %cst_31 = arith.constant dense<0.000000e+00> : vector<8x96xf32>
    %23 = tpu.matmul %22, %2, %cst_31 {dimension_numbers = #tpu.dot_dimension_numbers<[1], [0], [0], [1], [0, 0, 1, 1], [], []>} : vector<8x32xf32>, vector<32x96xf32>, vector<8x96xf32> -> vector<8x96xf32>
    %24 = vector.broadcast %3 : vector<1x96xf32> to vector<8x96xf32>
    %25 = arith.addf %23, %24 : vector<8x96xf32>
    %cst_32 = arith.constant dense<0.000000e+00> : vector<8x96xf32>
    %26 = tpu.matmul %14, %4, %cst_32 {dimension_numbers = #tpu.dot_dimension_numbers<[1], [0], [0], [1], [0, 0, 1, 1], [], []>} : vector<8x32xf32>, vector<32x96xf32>, vector<8x96xf32> -> vector<8x96xf32>
    %27 = vector.broadcast %5 : vector<1x96xf32> to vector<8x96xf32>
    %28 = arith.addf %26, %27 : vector<8x96xf32>
    %29 = vector.extract_strided_slice %25 {offsets = [0, 0], sizes = [8, 32], strides = [1, 1]} : vector<8x96xf32> to vector<8x32xf32>
    %30 = vector.extract_strided_slice %25 {offsets = [0, 32], sizes = [8, 32], strides = [1, 1]} : vector<8x96xf32> to vector<8x32xf32>
    %31 = vector.extract_strided_slice %25 {offsets = [0, 64], sizes = [8, 32], strides = [1, 1]} : vector<8x96xf32> to vector<8x32xf32>
    %32 = vector.extract_strided_slice %28 {offsets = [0, 0], sizes = [8, 32], strides = [1, 1]} : vector<8x96xf32> to vector<8x32xf32>
    %33 = vector.extract_strided_slice %28 {offsets = [0, 32], sizes = [8, 32], strides = [1, 1]} : vector<8x96xf32> to vector<8x32xf32>
    %34 = vector.extract_strided_slice %28 {offsets = [0, 64], sizes = [8, 32], strides = [1, 1]} : vector<8x96xf32> to vector<8x32xf32>
    %35 = arith.addf %29, %32 : vector<8x32xf32>
    %36 = arith.negf %35 : vector<8x32xf32>
    %37 = math.exp %36 : vector<8x32xf32>
    %cst_33 = arith.constant 1.000000e+00 : f32
    %38 = vector.broadcast %cst_33 : f32 to vector<8x32xf32>
    %39 = arith.addf %38, %37 : vector<8x32xf32>
    %40 = arith.divf %38, %39 : vector<8x32xf32>
    %41 = arith.addf %30, %33 : vector<8x32xf32>
    %42 = arith.negf %41 : vector<8x32xf32>
    %43 = math.exp %42 : vector<8x32xf32>
    %cst_34 = arith.constant 1.000000e+00 : f32
    %44 = vector.broadcast %cst_34 : f32 to vector<8x32xf32>
    %45 = arith.addf %44, %43 : vector<8x32xf32>
    %46 = arith.divf %44, %45 : vector<8x32xf32>
    %47 = arith.mulf %40, %34 : vector<8x32xf32>
    %48 = arith.addf %31, %47 : vector<8x32xf32>
    %49 = math.tanh %48 : vector<8x32xf32>
    %cst_35 = arith.constant 1.000000e+00 : f32
    %50 = vector.broadcast %cst_35 : f32 to vector<8x32xf32>
    %51 = arith.subf %50, %46 : vector<8x32xf32>
    %52 = arith.mulf %51, %49 : vector<8x32xf32>
    %53 = arith.mulf %46, %14 : vector<8x32xf32>
    %54 = arith.addf %52, %53 : vector<8x32xf32>
    %55 = arith.index_cast %c0_i32 : i32 to index
    %c0_36 = arith.constant 0 : index
    %c0_37 = arith.constant 0 : index
    %56 = vector.load %arg16[%55, %c0_36, %c0_37] : memref<8x8x32xf32, #tpu.memory_space<vmem>>, vector<1x8x32xf32>
    %57 = vector.shape_cast %56 : vector<1x8x32xf32> to vector<8x32xf32>
    %58 = vector.shape_cast %54 : vector<8x32xf32> to vector<1x8x32xf32>
    tpu.vector_store %arg16[%55, %c0_36, %c0_37], %58 {strides = array<i32>} : memref<8x8x32xf32, #tpu.memory_space<vmem>>, vector<1x8x32xf32>,
    %c1_i32 = arith.constant 1 : i32
    %59 = arith.index_cast %c1_i32 : i32 to index
    %c0_38 = arith.constant 0 : index
    %c0_39 = arith.constant 0 : index
    %60 = vector.load %arg0[%59, %c0_38, %c0_39] : memref<8x8x16xf32, #tpu.memory_space<vmem>>, vector<1x8x16xf32>
    %61 = vector.shape_cast %60 : vector<1x8x16xf32> to vector<8x16xf32>
    %cst_40 = arith.constant dense<0.000000e+00> : vector<8x32xf32>
    %62 = tpu.matmul %61, %0, %cst_40 {dimension_numbers = #tpu.dot_dimension_numbers<[1], [0], [0], [1], [0, 0, 1, 1], [], []>} : vector<8x16xf32>, vector<16x32xf32>, vector<8x32xf32> -> vector<8x32xf32>
    %63 = vector.broadcast %1 : vector<1x32xf32> to vector<8x32xf32>
    %64 = arith.addf %62, %63 : vector<8x32xf32>
    %cst_41 = arith.constant 0.000000e+00 : f32
    %65 = vector.broadcast %cst_41 : f32 to vector<8x32xf32>
    %66 = arith.maximumf %64, %65 : vector<8x32xf32>
    %cst_42 = arith.constant dense<0.000000e+00> : vector<8x96xf32>
    %67 = tpu.matmul %66, %2, %cst_42 {dimension_numbers = #tpu.dot_dimension_numbers<[1], [0], [0], [1], [0, 0, 1, 1], [], []>} : vector<8x32xf32>, vector<32x96xf32>, vector<8x96xf32> -> vector<8x96xf32>
    %68 = vector.broadcast %3 : vector<1x96xf32> to vector<8x96xf32>
    %69 = arith.addf %67, %68 : vector<8x96xf32>
    %cst_43 = arith.constant dense<0.000000e+00> : vector<8x96xf32>
    %70 = tpu.matmul %54, %4, %cst_43 {dimension_numbers = #tpu.dot_dimension_numbers<[1], [0], [0], [1], [0, 0, 1, 1], [], []>} : vector<8x32xf32>, vector<32x96xf32>, vector<8x96xf32> -> vector<8x96xf32>
    %71 = vector.broadcast %5 : vector<1x96xf32> to vector<8x96xf32>
    %72 = arith.addf %70, %71 : vector<8x96xf32>
    %73 = vector.extract_strided_slice %69 {offsets = [0, 0], sizes = [8, 32], strides = [1, 1]} : vector<8x96xf32> to vector<8x32xf32>
    %74 = vector.extract_strided_slice %69 {offsets = [0, 32], sizes = [8, 32], strides = [1, 1]} : vector<8x96xf32> to vector<8x32xf32>
    %75 = vector.extract_strided_slice %69 {offsets = [0, 64], sizes = [8, 32], strides = [1, 1]} : vector<8x96xf32> to vector<8x32xf32>
    %76 = vector.extract_strided_slice %72 {offsets = [0, 0], sizes = [8, 32], strides = [1, 1]} : vector<8x96xf32> to vector<8x32xf32>
    %77 = vector.extract_strided_slice %72 {offsets = [0, 32], sizes = [8, 32], strides = [1, 1]} : vector<8x96xf32> to vector<8x32xf32>
    %78 = vector.extract_strided_slice %72 {offsets = [0, 64], sizes = [8, 32], strides = [1, 1]} : vector<8x96xf32> to vector<8x32xf32>
    %79 = arith.addf %73, %76 : vector<8x32xf32>
    %80 = arith.negf %79 : vector<8x32xf32>
    %81 = math.exp %80 : vector<8x32xf32>
    %cst_44 = arith.constant 1.000000e+00 : f32
    %82 = vector.broadcast %cst_44 : f32 to vector<8x32xf32>
    %83 = arith.addf %82, %81 : vector<8x32xf32>
    %84 = arith.divf %82, %83 : vector<8x32xf32>
    %85 = arith.addf %74, %77 : vector<8x32xf32>
    %86 = arith.negf %85 : vector<8x32xf32>
    %87 = math.exp %86 : vector<8x32xf32>
    %cst_45 = arith.constant 1.000000e+00 : f32
    %88 = vector.broadcast %cst_45 : f32 to vector<8x32xf32>
    %89 = arith.addf %88, %87 : vector<8x32xf32>
    %90 = arith.divf %88, %89 : vector<8x32xf32>
    %91 = arith.mulf %84, %78 : vector<8x32xf32>
    %92 = arith.addf %75, %91 : vector<8x32xf32>
    %93 = math.tanh %92 : vector<8x32xf32>
    %cst_46 = arith.constant 1.000000e+00 : f32
    %94 = vector.broadcast %cst_46 : f32 to vector<8x32xf32>
    %95 = arith.subf %94, %90 : vector<8x32xf32>
    %96 = arith.mulf %95, %93 : vector<8x32xf32>
    %97 = arith.mulf %90, %54 : vector<8x32xf32>
    %98 = arith.addf %96, %97 : vector<8x32xf32>
    %99 = arith.index_cast %c1_i32 : i32 to index
    %c0_47 = arith.constant 0 : index
    %c0_48 = arith.constant 0 : index
    %100 = vector.load %arg16[%99, %c0_47, %c0_48] : memref<8x8x32xf32, #tpu.memory_space<vmem>>, vector<1x8x32xf32>
    %101 = vector.shape_cast %100 : vector<1x8x32xf32> to vector<8x32xf32>
    %102 = vector.shape_cast %98 : vector<8x32xf32> to vector<1x8x32xf32>
    tpu.vector_store %arg16[%99, %c0_47, %c0_48], %102 {strides = array<i32>} : memref<8x8x32xf32, #tpu.memory_space<vmem>>, vector<1x8x32xf32>,
    %c2_i32 = arith.constant 2 : i32
    %103 = arith.index_cast %c2_i32 : i32 to index
    %c0_49 = arith.constant 0 : index
    %c0_50 = arith.constant 0 : index
    %104 = vector.load %arg0[%103, %c0_49, %c0_50] : memref<8x8x16xf32, #tpu.memory_space<vmem>>, vector<1x8x16xf32>
    %105 = vector.shape_cast %104 : vector<1x8x16xf32> to vector<8x16xf32>
    %cst_51 = arith.constant dense<0.000000e+00> : vector<8x32xf32>
    %106 = tpu.matmul %105, %0, %cst_51 {dimension_numbers = #tpu.dot_dimension_numbers<[1], [0], [0], [1], [0, 0, 1, 1], [], []>} : vector<8x16xf32>, vector<16x32xf32>, vector<8x32xf32> -> vector<8x32xf32>
    %107 = vector.broadcast %1 : vector<1x32xf32> to vector<8x32xf32>
    %108 = arith.addf %106, %107 : vector<8x32xf32>
    %cst_52 = arith.constant 0.000000e+00 : f32
    %109 = vector.broadcast %cst_52 : f32 to vector<8x32xf32>
    %110 = arith.maximumf %108, %109 : vector<8x32xf32>
    %cst_53 = arith.constant dense<0.000000e+00> : vector<8x96xf32>
    %111 = tpu.matmul %110, %2, %cst_53 {dimension_numbers = #tpu.dot_dimension_numbers<[1], [0], [0], [1], [0, 0, 1, 1], [], []>} : vector<8x32xf32>, vector<32x96xf32>, vector<8x96xf32> -> vector<8x96xf32>
    %112 = vector.broadcast %3 : vector<1x96xf32> to vector<8x96xf32>
    %113 = arith.addf %111, %112 : vector<8x96xf32>
    %cst_54 = arith.constant dense<0.000000e+00> : vector<8x96xf32>
    %114 = tpu.matmul %98, %4, %cst_54 {dimension_numbers = #tpu.dot_dimension_numbers<[1], [0], [0], [1], [0, 0, 1, 1], [], []>} : vector<8x32xf32>, vector<32x96xf32>, vector<8x96xf32> -> vector<8x96xf32>
    %115 = vector.broadcast %5 : vector<1x96xf32> to vector<8x96xf32>
    %116 = arith.addf %114, %115 : vector<8x96xf32>
    %117 = vector.extract_strided_slice %113 {offsets = [0, 0], sizes = [8, 32], strides = [1, 1]} : vector<8x96xf32> to vector<8x32xf32>
    %118 = vector.extract_strided_slice %113 {offsets = [0, 32], sizes = [8, 32], strides = [1, 1]} : vector<8x96xf32> to vector<8x32xf32>
    %119 = vector.extract_strided_slice %113 {offsets = [0, 64], sizes = [8, 32], strides = [1, 1]} : vector<8x96xf32> to vector<8x32xf32>
    %120 = vector.extract_strided_slice %116 {offsets = [0, 0], sizes = [8, 32], strides = [1, 1]} : vector<8x96xf32> to vector<8x32xf32>
    %121 = vector.extract_strided_slice %116 {offsets = [0, 32], sizes = [8, 32], strides = [1, 1]} : vector<8x96xf32> to vector<8x32xf32>
    %122 = vector.extract_strided_slice %116 {offsets = [0, 64], sizes = [8, 32], strides = [1, 1]} : vector<8x96xf32> to vector<8x32xf32>
    %123 = arith.addf %117, %120 : vector<8x32xf32>
    %124 = arith.negf %123 : vector<8x32xf32>
    %125 = math.exp %124 : vector<8x32xf32>
    %cst_55 = arith.constant 1.000000e+00 : f32
    %126 = vector.broadcast %cst_55 : f32 to vector<8x32xf32>
    %127 = arith.addf %126, %125 : vector<8x32xf32>
    %128 = arith.divf %126, %127 : vector<8x32xf32>
    %129 = arith.addf %118, %121 : vector<8x32xf32>
    %130 = arith.negf %129 : vector<8x32xf32>
    %131 = math.exp %130 : vector<8x32xf32>
    %cst_56 = arith.constant 1.000000e+00 : f32
    %132 = vector.broadcast %cst_56 : f32 to vector<8x32xf32>
    %133 = arith.addf %132, %131 : vector<8x32xf32>
    %134 = arith.divf %132, %133 : vector<8x32xf32>
    %135 = arith.mulf %128, %122 : vector<8x32xf32>
    %136 = arith.addf %119, %135 : vector<8x32xf32>
    %137 = math.tanh %136 : vector<8x32xf32>
    %cst_57 = arith.constant 1.000000e+00 : f32
    %138 = vector.broadcast %cst_57 : f32 to vector<8x32xf32>
    %139 = arith.subf %138, %134 : vector<8x32xf32>
    %140 = arith.mulf %139, %137 : vector<8x32xf32>
    %141 = arith.mulf %134, %98 : vector<8x32xf32>
    %142 = arith.addf %140, %141 : vector<8x32xf32>
    %143 = arith.index_cast %c2_i32 : i32 to index
    %c0_58 = arith.constant 0 : index
    %c0_59 = arith.constant 0 : index
    %144 = vector.load %arg16[%143, %c0_58, %c0_59] : memref<8x8x32xf32, #tpu.memory_space<vmem>>, vector<1x8x32xf32>
    %145 = vector.shape_cast %144 : vector<1x8x32xf32> to vector<8x32xf32>
    %146 = vector.shape_cast %142 : vector<8x32xf32> to vector<1x8x32xf32>
    tpu.vector_store %arg16[%143, %c0_58, %c0_59], %146 {strides = array<i32>} : memref<8x8x32xf32, #tpu.memory_space<vmem>>, vector<1x8x32xf32>,
    %c3_i32 = arith.constant 3 : i32
    %147 = arith.index_cast %c3_i32 : i32 to index
    %c0_60 = arith.constant 0 : index
    %c0_61 = arith.constant 0 : index
    %148 = vector.load %arg0[%147, %c0_60, %c0_61] : memref<8x8x16xf32, #tpu.memory_space<vmem>>, vector<1x8x16xf32>
    %149 = vector.shape_cast %148 : vector<1x8x16xf32> to vector<8x16xf32>
    %cst_62 = arith.constant dense<0.000000e+00> : vector<8x32xf32>
    %150 = tpu.matmul %149, %0, %cst_62 {dimension_numbers = #tpu.dot_dimension_numbers<[1], [0], [0], [1], [0, 0, 1, 1], [], []>} : vector<8x16xf32>, vector<16x32xf32>, vector<8x32xf32> -> vector<8x32xf32>
    %151 = vector.broadcast %1 : vector<1x32xf32> to vector<8x32xf32>
    %152 = arith.addf %150, %151 : vector<8x32xf32>
    %cst_63 = arith.constant 0.000000e+00 : f32
    %153 = vector.broadcast %cst_63 : f32 to vector<8x32xf32>
    %154 = arith.maximumf %152, %153 : vector<8x32xf32>
    %cst_64 = arith.constant dense<0.000000e+00> : vector<8x96xf32>
    %155 = tpu.matmul %154, %2, %cst_64 {dimension_numbers = #tpu.dot_dimension_numbers<[1], [0], [0], [1], [0, 0, 1, 1], [], []>} : vector<8x32xf32>, vector<32x96xf32>, vector<8x96xf32> -> vector<8x96xf32>
    %156 = vector.broadcast %3 : vector<1x96xf32> to vector<8x96xf32>
    %157 = arith.addf %155, %156 : vector<8x96xf32>
    %cst_65 = arith.constant dense<0.000000e+00> : vector<8x96xf32>
    %158 = tpu.matmul %142, %4, %cst_65 {dimension_numbers = #tpu.dot_dimension_numbers<[1], [0], [0], [1], [0, 0, 1, 1], [], []>} : vector<8x32xf32>, vector<32x96xf32>, vector<8x96xf32> -> vector<8x96xf32>
    %159 = vector.broadcast %5 : vector<1x96xf32> to vector<8x96xf32>
    %160 = arith.addf %158, %159 : vector<8x96xf32>
    %161 = vector.extract_strided_slice %157 {offsets = [0, 0], sizes = [8, 32], strides = [1, 1]} : vector<8x96xf32> to vector<8x32xf32>
    %162 = vector.extract_strided_slice %157 {offsets = [0, 32], sizes = [8, 32], strides = [1, 1]} : vector<8x96xf32> to vector<8x32xf32>
    %163 = vector.extract_strided_slice %157 {offsets = [0, 64], sizes = [8, 32], strides = [1, 1]} : vector<8x96xf32> to vector<8x32xf32>
    %164 = vector.extract_strided_slice %160 {offsets = [0, 0], sizes = [8, 32], strides = [1, 1]} : vector<8x96xf32> to vector<8x32xf32>
    %165 = vector.extract_strided_slice %160 {offsets = [0, 32], sizes = [8, 32], strides = [1, 1]} : vector<8x96xf32> to vector<8x32xf32>
    %166 = vector.extract_strided_slice %160 {offsets = [0, 64], sizes = [8, 32], strides = [1, 1]} : vector<8x96xf32> to vector<8x32xf32>
    %167 = arith.addf %161, %164 : vector<8x32xf32>
    %168 = arith.negf %167 : vector<8x32xf32>
    %169 = math.exp %168 : vector<8x32xf32>
    %cst_66 = arith.constant 1.000000e+00 : f32
    %170 = vector.broadcast %cst_66 : f32 to vector<8x32xf32>
    %171 = arith.addf %170, %169 : vector<8x32xf32>
    %172 = arith.divf %170, %171 : vector<8x32xf32>
    %173 = arith.addf %162, %165 : vector<8x32xf32>
    %174 = arith.negf %173 : vector<8x32xf32>
    %175 = math.exp %174 : vector<8x32xf32>
    %cst_67 = arith.constant 1.000000e+00 : f32
    %176 = vector.broadcast %cst_67 : f32 to vector<8x32xf32>
    %177 = arith.addf %176, %175 : vector<8x32xf32>
    %178 = arith.divf %176, %177 : vector<8x32xf32>
    %179 = arith.mulf %172, %166 : vector<8x32xf32>
    %180 = arith.addf %163, %179 : vector<8x32xf32>
    %181 = math.tanh %180 : vector<8x32xf32>
    %cst_68 = arith.constant 1.000000e+00 : f32
    %182 = vector.broadcast %cst_68 : f32 to vector<8x32xf32>
    %183 = arith.subf %182, %178 : vector<8x32xf32>
    %184 = arith.mulf %183, %181 : vector<8x32xf32>
    %185 = arith.mulf %178, %142 : vector<8x32xf32>
    %186 = arith.addf %184, %185 : vector<8x32xf32>
    %187 = arith.index_cast %c3_i32 : i32 to index
    %c0_69 = arith.constant 0 : index
    %c0_70 = arith.constant 0 : index
    %188 = vector.load %arg16[%187, %c0_69, %c0_70] : memref<8x8x32xf32, #tpu.memory_space<vmem>>, vector<1x8x32xf32>
    %189 = vector.shape_cast %188 : vector<1x8x32xf32> to vector<8x32xf32>
    %190 = vector.shape_cast %186 : vector<8x32xf32> to vector<1x8x32xf32>
    tpu.vector_store %arg16[%187, %c0_69, %c0_70], %190 {strides = array<i32>} : memref<8x8x32xf32, #tpu.memory_space<vmem>>, vector<1x8x32xf32>,
    %c4_i32 = arith.constant 4 : i32
    %191 = arith.index_cast %c4_i32 : i32 to index
    %c0_71 = arith.constant 0 : index
    %c0_72 = arith.constant 0 : index
    %192 = vector.load %arg0[%191, %c0_71, %c0_72] : memref<8x8x16xf32, #tpu.memory_space<vmem>>, vector<1x8x16xf32>
    %193 = vector.shape_cast %192 : vector<1x8x16xf32> to vector<8x16xf32>
    %cst_73 = arith.constant dense<0.000000e+00> : vector<8x32xf32>
    %194 = tpu.matmul %193, %0, %cst_73 {dimension_numbers = #tpu.dot_dimension_numbers<[1], [0], [0], [1], [0, 0, 1, 1], [], []>} : vector<8x16xf32>, vector<16x32xf32>, vector<8x32xf32> -> vector<8x32xf32>
    %195 = vector.broadcast %1 : vector<1x32xf32> to vector<8x32xf32>
    %196 = arith.addf %194, %195 : vector<8x32xf32>
    %cst_74 = arith.constant 0.000000e+00 : f32
    %197 = vector.broadcast %cst_74 : f32 to vector<8x32xf32>
    %198 = arith.maximumf %196, %197 : vector<8x32xf32>
    %cst_75 = arith.constant dense<0.000000e+00> : vector<8x96xf32>
    %199 = tpu.matmul %198, %2, %cst_75 {dimension_numbers = #tpu.dot_dimension_numbers<[1], [0], [0], [1], [0, 0, 1, 1], [], []>} : vector<8x32xf32>, vector<32x96xf32>, vector<8x96xf32> -> vector<8x96xf32>
    %200 = vector.broadcast %3 : vector<1x96xf32> to vector<8x96xf32>
    %201 = arith.addf %199, %200 : vector<8x96xf32>
    %cst_76 = arith.constant dense<0.000000e+00> : vector<8x96xf32>
    %202 = tpu.matmul %186, %4, %cst_76 {dimension_numbers = #tpu.dot_dimension_numbers<[1], [0], [0], [1], [0, 0, 1, 1], [], []>} : vector<8x32xf32>, vector<32x96xf32>, vector<8x96xf32> -> vector<8x96xf32>
    %203 = vector.broadcast %5 : vector<1x96xf32> to vector<8x96xf32>
    %204 = arith.addf %202, %203 : vector<8x96xf32>
    %205 = vector.extract_strided_slice %201 {offsets = [0, 0], sizes = [8, 32], strides = [1, 1]} : vector<8x96xf32> to vector<8x32xf32>
    %206 = vector.extract_strided_slice %201 {offsets = [0, 32], sizes = [8, 32], strides = [1, 1]} : vector<8x96xf32> to vector<8x32xf32>
    %207 = vector.extract_strided_slice %201 {offsets = [0, 64], sizes = [8, 32], strides = [1, 1]} : vector<8x96xf32> to vector<8x32xf32>
    %208 = vector.extract_strided_slice %204 {offsets = [0, 0], sizes = [8, 32], strides = [1, 1]} : vector<8x96xf32> to vector<8x32xf32>
    %209 = vector.extract_strided_slice %204 {offsets = [0, 32], sizes = [8, 32], strides = [1, 1]} : vector<8x96xf32> to vector<8x32xf32>
    %210 = vector.extract_strided_slice %204 {offsets = [0, 64], sizes = [8, 32], strides = [1, 1]} : vector<8x96xf32> to vector<8x32xf32>
    %211 = arith.addf %205, %208 : vector<8x32xf32>
    %212 = arith.negf %211 : vector<8x32xf32>
    %213 = math.exp %212 : vector<8x32xf32>
    %cst_77 = arith.constant 1.000000e+00 : f32
    %214 = vector.broadcast %cst_77 : f32 to vector<8x32xf32>
    %215 = arith.addf %214, %213 : vector<8x32xf32>
    %216 = arith.divf %214, %215 : vector<8x32xf32>
    %217 = arith.addf %206, %209 : vector<8x32xf32>
    %218 = arith.negf %217 : vector<8x32xf32>
    %219 = math.exp %218 : vector<8x32xf32>
    %cst_78 = arith.constant 1.000000e+00 : f32
    %220 = vector.broadcast %cst_78 : f32 to vector<8x32xf32>
    %221 = arith.addf %220, %219 : vector<8x32xf32>
    %222 = arith.divf %220, %221 : vector<8x32xf32>
    %223 = arith.mulf %216, %210 : vector<8x32xf32>
    %224 = arith.addf %207, %223 : vector<8x32xf32>
    %225 = math.tanh %224 : vector<8x32xf32>
    %cst_79 = arith.constant 1.000000e+00 : f32
    %226 = vector.broadcast %cst_79 : f32 to vector<8x32xf32>
    %227 = arith.subf %226, %222 : vector<8x32xf32>
    %228 = arith.mulf %227, %225 : vector<8x32xf32>
    %229 = arith.mulf %222, %186 : vector<8x32xf32>
    %230 = arith.addf %228, %229 : vector<8x32xf32>
    %231 = arith.index_cast %c4_i32 : i32 to index
    %c0_80 = arith.constant 0 : index
    %c0_81 = arith.constant 0 : index
    %232 = vector.load %arg16[%231, %c0_80, %c0_81] : memref<8x8x32xf32, #tpu.memory_space<vmem>>, vector<1x8x32xf32>
    %233 = vector.shape_cast %232 : vector<1x8x32xf32> to vector<8x32xf32>
    %234 = vector.shape_cast %230 : vector<8x32xf32> to vector<1x8x32xf32>
    tpu.vector_store %arg16[%231, %c0_80, %c0_81], %234 {strides = array<i32>} : memref<8x8x32xf32, #tpu.memory_space<vmem>>, vector<1x8x32xf32>,
    %c5_i32 = arith.constant 5 : i32
    %235 = arith.index_cast %c5_i32 : i32 to index
    %c0_82 = arith.constant 0 : index
    %c0_83 = arith.constant 0 : index
    %236 = vector.load %arg0[%235, %c0_82, %c0_83] : memref<8x8x16xf32, #tpu.memory_space<vmem>>, vector<1x8x16xf32>
    %237 = vector.shape_cast %236 : vector<1x8x16xf32> to vector<8x16xf32>
    %cst_84 = arith.constant dense<0.000000e+00> : vector<8x32xf32>
    %238 = tpu.matmul %237, %0, %cst_84 {dimension_numbers = #tpu.dot_dimension_numbers<[1], [0], [0], [1], [0, 0, 1, 1], [], []>} : vector<8x16xf32>, vector<16x32xf32>, vector<8x32xf32> -> vector<8x32xf32>
    %239 = vector.broadcast %1 : vector<1x32xf32> to vector<8x32xf32>
    %240 = arith.addf %238, %239 : vector<8x32xf32>
    %cst_85 = arith.constant 0.000000e+00 : f32
    %241 = vector.broadcast %cst_85 : f32 to vector<8x32xf32>
    %242 = arith.maximumf %240, %241 : vector<8x32xf32>
    %cst_86 = arith.constant dense<0.000000e+00> : vector<8x96xf32>
    %243 = tpu.matmul %242, %2, %cst_86 {dimension_numbers = #tpu.dot_dimension_numbers<[1], [0], [0], [1], [0, 0, 1, 1], [], []>} : vector<8x32xf32>, vector<32x96xf32>, vector<8x96xf32> -> vector<8x96xf32>
    %244 = vector.broadcast %3 : vector<1x96xf32> to vector<8x96xf32>
    %245 = arith.addf %243, %244 : vector<8x96xf32>
    %cst_87 = arith.constant dense<0.000000e+00> : vector<8x96xf32>
    %246 = tpu.matmul %230, %4, %cst_87 {dimension_numbers = #tpu.dot_dimension_numbers<[1], [0], [0], [1], [0, 0, 1, 1], [], []>} : vector<8x32xf32>, vector<32x96xf32>, vector<8x96xf32> -> vector<8x96xf32>
    %247 = vector.broadcast %5 : vector<1x96xf32> to vector<8x96xf32>
    %248 = arith.addf %246, %247 : vector<8x96xf32>
    %249 = vector.extract_strided_slice %245 {offsets = [0, 0], sizes = [8, 32], strides = [1, 1]} : vector<8x96xf32> to vector<8x32xf32>
    %250 = vector.extract_strided_slice %245 {offsets = [0, 32], sizes = [8, 32], strides = [1, 1]} : vector<8x96xf32> to vector<8x32xf32>
    %251 = vector.extract_strided_slice %245 {offsets = [0, 64], sizes = [8, 32], strides = [1, 1]} : vector<8x96xf32> to vector<8x32xf32>
    %252 = vector.extract_strided_slice %248 {offsets = [0, 0], sizes = [8, 32], strides = [1, 1]} : vector<8x96xf32> to vector<8x32xf32>
    %253 = vector.extract_strided_slice %248 {offsets = [0, 32], sizes = [8, 32], strides = [1, 1]} : vector<8x96xf32> to vector<8x32xf32>
    %254 = vector.extract_strided_slice %248 {offsets = [0, 64], sizes = [8, 32], strides = [1, 1]} : vector<8x96xf32> to vector<8x32xf32>
    %255 = arith.addf %249, %252 : vector<8x32xf32>
    %256 = arith.negf %255 : vector<8x32xf32>
    %257 = math.exp %256 : vector<8x32xf32>
    %cst_88 = arith.constant 1.000000e+00 : f32
    %258 = vector.broadcast %cst_88 : f32 to vector<8x32xf32>
    %259 = arith.addf %258, %257 : vector<8x32xf32>
    %260 = arith.divf %258, %259 : vector<8x32xf32>
    %261 = arith.addf %250, %253 : vector<8x32xf32>
    %262 = arith.negf %261 : vector<8x32xf32>
    %263 = math.exp %262 : vector<8x32xf32>
    %cst_89 = arith.constant 1.000000e+00 : f32
    %264 = vector.broadcast %cst_89 : f32 to vector<8x32xf32>
    %265 = arith.addf %264, %263 : vector<8x32xf32>
    %266 = arith.divf %264, %265 : vector<8x32xf32>
    %267 = arith.mulf %260, %254 : vector<8x32xf32>
    %268 = arith.addf %251, %267 : vector<8x32xf32>
    %269 = math.tanh %268 : vector<8x32xf32>
    %cst_90 = arith.constant 1.000000e+00 : f32
    %270 = vector.broadcast %cst_90 : f32 to vector<8x32xf32>
    %271 = arith.subf %270, %266 : vector<8x32xf32>
    %272 = arith.mulf %271, %269 : vector<8x32xf32>
    %273 = arith.mulf %266, %230 : vector<8x32xf32>
    %274 = arith.addf %272, %273 : vector<8x32xf32>
    %275 = arith.index_cast %c5_i32 : i32 to index
    %c0_91 = arith.constant 0 : index
    %c0_92 = arith.constant 0 : index
    %276 = vector.load %arg16[%275, %c0_91, %c0_92] : memref<8x8x32xf32, #tpu.memory_space<vmem>>, vector<1x8x32xf32>
    %277 = vector.shape_cast %276 : vector<1x8x32xf32> to vector<8x32xf32>
    %278 = vector.shape_cast %274 : vector<8x32xf32> to vector<1x8x32xf32>
    tpu.vector_store %arg16[%275, %c0_91, %c0_92], %278 {strides = array<i32>} : memref<8x8x32xf32, #tpu.memory_space<vmem>>, vector<1x8x32xf32>,
    %c6_i32 = arith.constant 6 : i32
    %279 = arith.index_cast %c6_i32 : i32 to index
    %c0_93 = arith.constant 0 : index
    %c0_94 = arith.constant 0 : index
    %280 = vector.load %arg0[%279, %c0_93, %c0_94] : memref<8x8x16xf32, #tpu.memory_space<vmem>>, vector<1x8x16xf32>
    %281 = vector.shape_cast %280 : vector<1x8x16xf32> to vector<8x16xf32>
    %cst_95 = arith.constant dense<0.000000e+00> : vector<8x32xf32>
    %282 = tpu.matmul %281, %0, %cst_95 {dimension_numbers = #tpu.dot_dimension_numbers<[1], [0], [0], [1], [0, 0, 1, 1], [], []>} : vector<8x16xf32>, vector<16x32xf32>, vector<8x32xf32> -> vector<8x32xf32>
    %283 = vector.broadcast %1 : vector<1x32xf32> to vector<8x32xf32>
    %284 = arith.addf %282, %283 : vector<8x32xf32>
    %cst_96 = arith.constant 0.000000e+00 : f32
    %285 = vector.broadcast %cst_96 : f32 to vector<8x32xf32>
    %286 = arith.maximumf %284, %285 : vector<8x32xf32>
    %cst_97 = arith.constant dense<0.000000e+00> : vector<8x96xf32>
    %287 = tpu.matmul %286, %2, %cst_97 {dimension_numbers = #tpu.dot_dimension_numbers<[1], [0], [0], [1], [0, 0, 1, 1], [], []>} : vector<8x32xf32>, vector<32x96xf32>, vector<8x96xf32> -> vector<8x96xf32>
    %288 = vector.broadcast %3 : vector<1x96xf32> to vector<8x96xf32>
    %289 = arith.addf %287, %288 : vector<8x96xf32>
    %cst_98 = arith.constant dense<0.000000e+00> : vector<8x96xf32>
    %290 = tpu.matmul %274, %4, %cst_98 {dimension_numbers = #tpu.dot_dimension_numbers<[1], [0], [0], [1], [0, 0, 1, 1], [], []>} : vector<8x32xf32>, vector<32x96xf32>, vector<8x96xf32> -> vector<8x96xf32>
    %291 = vector.broadcast %5 : vector<1x96xf32> to vector<8x96xf32>
    %292 = arith.addf %290, %291 : vector<8x96xf32>
    %293 = vector.extract_strided_slice %289 {offsets = [0, 0], sizes = [8, 32], strides = [1, 1]} : vector<8x96xf32> to vector<8x32xf32>
    %294 = vector.extract_strided_slice %289 {offsets = [0, 32], sizes = [8, 32], strides = [1, 1]} : vector<8x96xf32> to vector<8x32xf32>
    %295 = vector.extract_strided_slice %289 {offsets = [0, 64], sizes = [8, 32], strides = [1, 1]} : vector<8x96xf32> to vector<8x32xf32>
    %296 = vector.extract_strided_slice %292 {offsets = [0, 0], sizes = [8, 32], strides = [1, 1]} : vector<8x96xf32> to vector<8x32xf32>
    %297 = vector.extract_strided_slice %292 {offsets = [0, 32], sizes = [8, 32], strides = [1, 1]} : vector<8x96xf32> to vector<8x32xf32>
    %298 = vector.extract_strided_slice %292 {offsets = [0, 64], sizes = [8, 32], strides = [1, 1]} : vector<8x96xf32> to vector<8x32xf32>
    %299 = arith.addf %293, %296 : vector<8x32xf32>
    %300 = arith.negf %299 : vector<8x32xf32>
    %301 = math.exp %300 : vector<8x32xf32>
    %cst_99 = arith.constant 1.000000e+00 : f32
    %302 = vector.broadcast %cst_99 : f32 to vector<8x32xf32>
    %303 = arith.addf %302, %301 : vector<8x32xf32>
    %304 = arith.divf %302, %303 : vector<8x32xf32>
    %305 = arith.addf %294, %297 : vector<8x32xf32>
    %306 = arith.negf %305 : vector<8x32xf32>
    %307 = math.exp %306 : vector<8x32xf32>
    %cst_100 = arith.constant 1.000000e+00 : f32
    %308 = vector.broadcast %cst_100 : f32 to vector<8x32xf32>
    %309 = arith.addf %308, %307 : vector<8x32xf32>
    %310 = arith.divf %308, %309 : vector<8x32xf32>
    %311 = arith.mulf %304, %298 : vector<8x32xf32>
    %312 = arith.addf %295, %311 : vector<8x32xf32>
    %313 = math.tanh %312 : vector<8x32xf32>
    %cst_101 = arith.constant 1.000000e+00 : f32
    %314 = vector.broadcast %cst_101 : f32 to vector<8x32xf32>
    %315 = arith.subf %314, %310 : vector<8x32xf32>
    %316 = arith.mulf %315, %313 : vector<8x32xf32>
    %317 = arith.mulf %310, %274 : vector<8x32xf32>
    %318 = arith.addf %316, %317 : vector<8x32xf32>
    %319 = arith.index_cast %c6_i32 : i32 to index
    %c0_102 = arith.constant 0 : index
    %c0_103 = arith.constant 0 : index
    %320 = vector.load %arg16[%319, %c0_102, %c0_103] : memref<8x8x32xf32, #tpu.memory_space<vmem>>, vector<1x8x32xf32>
    %321 = vector.shape_cast %320 : vector<1x8x32xf32> to vector<8x32xf32>
    %322 = vector.shape_cast %318 : vector<8x32xf32> to vector<1x8x32xf32>
    tpu.vector_store %arg16[%319, %c0_102, %c0_103], %322 {strides = array<i32>} : memref<8x8x32xf32, #tpu.memory_space<vmem>>, vector<1x8x32xf32>,
    %c7_i32 = arith.constant 7 : i32
    %323 = arith.index_cast %c7_i32 : i32 to index
    %c0_104 = arith.constant 0 : index
    %c0_105 = arith.constant 0 : index
    %324 = vector.load %arg0[%323, %c0_104, %c0_105] : memref<8x8x16xf32, #tpu.memory_space<vmem>>, vector<1x8x16xf32>
    %325 = vector.shape_cast %324 : vector<1x8x16xf32> to vector<8x16xf32>
    %cst_106 = arith.constant dense<0.000000e+00> : vector<8x32xf32>
    %326 = tpu.matmul %325, %0, %cst_106 {dimension_numbers = #tpu.dot_dimension_numbers<[1], [0], [0], [1], [0, 0, 1, 1], [], []>} : vector<8x16xf32>, vector<16x32xf32>, vector<8x32xf32> -> vector<8x32xf32>
    %327 = vector.broadcast %1 : vector<1x32xf32> to vector<8x32xf32>
    %328 = arith.addf %326, %327 : vector<8x32xf32>
    %cst_107 = arith.constant 0.000000e+00 : f32
    %329 = vector.broadcast %cst_107 : f32 to vector<8x32xf32>
    %330 = arith.maximumf %328, %329 : vector<8x32xf32>
    %cst_108 = arith.constant dense<0.000000e+00> : vector<8x96xf32>
    %331 = tpu.matmul %330, %2, %cst_108 {dimension_numbers = #tpu.dot_dimension_numbers<[1], [0], [0], [1], [0, 0, 1, 1], [], []>} : vector<8x32xf32>, vector<32x96xf32>, vector<8x96xf32> -> vector<8x96xf32>
    %332 = vector.broadcast %3 : vector<1x96xf32> to vector<8x96xf32>
    %333 = arith.addf %331, %332 : vector<8x96xf32>
    %cst_109 = arith.constant dense<0.000000e+00> : vector<8x96xf32>
    %334 = tpu.matmul %318, %4, %cst_109 {dimension_numbers = #tpu.dot_dimension_numbers<[1], [0], [0], [1], [0, 0, 1, 1], [], []>} : vector<8x32xf32>, vector<32x96xf32>, vector<8x96xf32> -> vector<8x96xf32>
    %335 = vector.broadcast %5 : vector<1x96xf32> to vector<8x96xf32>
    %336 = arith.addf %334, %335 : vector<8x96xf32>
    %337 = vector.extract_strided_slice %333 {offsets = [0, 0], sizes = [8, 32], strides = [1, 1]} : vector<8x96xf32> to vector<8x32xf32>
    %338 = vector.extract_strided_slice %333 {offsets = [0, 32], sizes = [8, 32], strides = [1, 1]} : vector<8x96xf32> to vector<8x32xf32>
    %339 = vector.extract_strided_slice %333 {offsets = [0, 64], sizes = [8, 32], strides = [1, 1]} : vector<8x96xf32> to vector<8x32xf32>
    %340 = vector.extract_strided_slice %336 {offsets = [0, 0], sizes = [8, 32], strides = [1, 1]} : vector<8x96xf32> to vector<8x32xf32>
    %341 = vector.extract_strided_slice %336 {offsets = [0, 32], sizes = [8, 32], strides = [1, 1]} : vector<8x96xf32> to vector<8x32xf32>
    %342 = vector.extract_strided_slice %336 {offsets = [0, 64], sizes = [8, 32], strides = [1, 1]} : vector<8x96xf32> to vector<8x32xf32>
    %343 = arith.addf %337, %340 : vector<8x32xf32>
    %344 = arith.negf %343 : vector<8x32xf32>
    %345 = math.exp %344 : vector<8x32xf32>
    %cst_110 = arith.constant 1.000000e+00 : f32
    %346 = vector.broadcast %cst_110 : f32 to vector<8x32xf32>
    %347 = arith.addf %346, %345 : vector<8x32xf32>
    %348 = arith.divf %346, %347 : vector<8x32xf32>
    %349 = arith.addf %338, %341 : vector<8x32xf32>
    %350 = arith.negf %349 : vector<8x32xf32>
    %351 = math.exp %350 : vector<8x32xf32>
    %cst_111 = arith.constant 1.000000e+00 : f32
    %352 = vector.broadcast %cst_111 : f32 to vector<8x32xf32>
    %353 = arith.addf %352, %351 : vector<8x32xf32>
    %354 = arith.divf %352, %353 : vector<8x32xf32>
    %355 = arith.mulf %348, %342 : vector<8x32xf32>
    %356 = arith.addf %339, %355 : vector<8x32xf32>
    %357 = math.tanh %356 : vector<8x32xf32>
    %cst_112 = arith.constant 1.000000e+00 : f32
    %358 = vector.broadcast %cst_112 : f32 to vector<8x32xf32>
    %359 = arith.subf %358, %354 : vector<8x32xf32>
    %360 = arith.mulf %359, %357 : vector<8x32xf32>
    %361 = arith.mulf %354, %318 : vector<8x32xf32>
    %362 = arith.addf %360, %361 : vector<8x32xf32>
    %363 = arith.index_cast %c7_i32 : i32 to index
    %c0_113 = arith.constant 0 : index
    %c0_114 = arith.constant 0 : index
    %364 = vector.load %arg16[%363, %c0_113, %c0_114] : memref<8x8x32xf32, #tpu.memory_space<vmem>>, vector<1x8x32xf32>
    %365 = vector.shape_cast %364 : vector<1x8x32xf32> to vector<8x32xf32>
    %366 = vector.shape_cast %362 : vector<8x32xf32> to vector<1x8x32xf32>
    tpu.vector_store %arg16[%363, %c0_113, %c0_114], %366 {strides = array<i32>} : memref<8x8x32xf32, #tpu.memory_space<vmem>>, vector<1x8x32xf32>,
    %c8_i32 = arith.constant 8 : i32
    %cst_115 = arith.constant 0.000000e+00 : f32
    %367 = vector.broadcast %cst_115 : f32 to vector<8x16xf32>
    %c0_i32_116 = arith.constant 0 : i32
    %cst_117 = arith.constant dense<0.000000e+00> : vector<8x32xf32>
    %368 = tpu.matmul %367, %6, %cst_117 {dimension_numbers = #tpu.dot_dimension_numbers<[1], [0], [0], [1], [0, 0, 1, 1], [], []>} : vector<8x16xf32>, vector<16x32xf32>, vector<8x32xf32> -> vector<8x32xf32>
    %369 = vector.broadcast %7 : vector<1x32xf32> to vector<8x32xf32>
    %370 = arith.addf %368, %369 : vector<8x32xf32>
    %cst_118 = arith.constant 0.000000e+00 : f32
    %371 = vector.broadcast %cst_118 : f32 to vector<8x32xf32>
    %372 = arith.maximumf %370, %371 : vector<8x32xf32>
    %cst_119 = arith.constant dense<0.000000e+00> : vector<8x96xf32>
    %373 = tpu.matmul %372, %8, %cst_119 {dimension_numbers = #tpu.dot_dimension_numbers<[1], [0], [0], [1], [0, 0, 1, 1], [], []>} : vector<8x32xf32>, vector<32x96xf32>, vector<8x96xf32> -> vector<8x96xf32>
    %374 = vector.broadcast %9 : vector<1x96xf32> to vector<8x96xf32>
    %375 = arith.addf %373, %374 : vector<8x96xf32>
    %cst_120 = arith.constant dense<0.000000e+00> : vector<8x96xf32>
    %376 = tpu.matmul %362, %10, %cst_120 {dimension_numbers = #tpu.dot_dimension_numbers<[1], [0], [0], [1], [0, 0, 1, 1], [], []>} : vector<8x32xf32>, vector<32x96xf32>, vector<8x96xf32> -> vector<8x96xf32>
    %377 = vector.broadcast %11 : vector<1x96xf32> to vector<8x96xf32>
    %378 = arith.addf %376, %377 : vector<8x96xf32>
    %379 = vector.extract_strided_slice %375 {offsets = [0, 0], sizes = [8, 32], strides = [1, 1]} : vector<8x96xf32> to vector<8x32xf32>
    %380 = vector.extract_strided_slice %375 {offsets = [0, 32], sizes = [8, 32], strides = [1, 1]} : vector<8x96xf32> to vector<8x32xf32>
    %381 = vector.extract_strided_slice %375 {offsets = [0, 64], sizes = [8, 32], strides = [1, 1]} : vector<8x96xf32> to vector<8x32xf32>
    %382 = vector.extract_strided_slice %378 {offsets = [0, 0], sizes = [8, 32], strides = [1, 1]} : vector<8x96xf32> to vector<8x32xf32>
    %383 = vector.extract_strided_slice %378 {offsets = [0, 32], sizes = [8, 32], strides = [1, 1]} : vector<8x96xf32> to vector<8x32xf32>
    %384 = vector.extract_strided_slice %378 {offsets = [0, 64], sizes = [8, 32], strides = [1, 1]} : vector<8x96xf32> to vector<8x32xf32>
    %385 = arith.addf %379, %382 : vector<8x32xf32>
    %386 = arith.negf %385 : vector<8x32xf32>
    %387 = math.exp %386 : vector<8x32xf32>
    %cst_121 = arith.constant 1.000000e+00 : f32
    %388 = vector.broadcast %cst_121 : f32 to vector<8x32xf32>
    %389 = arith.addf %388, %387 : vector<8x32xf32>
    %390 = arith.divf %388, %389 : vector<8x32xf32>
    %391 = arith.addf %380, %383 : vector<8x32xf32>
    %392 = arith.negf %391 : vector<8x32xf32>
    %393 = math.exp %392 : vector<8x32xf32>
    %cst_122 = arith.constant 1.000000e+00 : f32
    %394 = vector.broadcast %cst_122 : f32 to vector<8x32xf32>
    %395 = arith.addf %394, %393 : vector<8x32xf32>
    %396 = arith.divf %394, %395 : vector<8x32xf32>
    %397 = arith.mulf %390, %384 : vector<8x32xf32>
    %398 = arith.addf %381, %397 : vector<8x32xf32>
    %399 = math.tanh %398 : vector<8x32xf32>
    %cst_123 = arith.constant 1.000000e+00 : f32
    %400 = vector.broadcast %cst_123 : f32 to vector<8x32xf32>
    %401 = arith.subf %400, %396 : vector<8x32xf32>
    %402 = arith.mulf %401, %399 : vector<8x32xf32>
    %403 = arith.mulf %396, %362 : vector<8x32xf32>
    %404 = arith.addf %402, %403 : vector<8x32xf32>
    %cst_124 = arith.constant dense<0.000000e+00> : vector<8x16xf32>
    %405 = tpu.matmul %404, %12, %cst_124 {dimension_numbers = #tpu.dot_dimension_numbers<[1], [0], [0], [1], [0, 0, 1, 1], [], []>} : vector<8x32xf32>, vector<32x16xf32>, vector<8x16xf32> -> vector<8x16xf32>
    %406 = vector.broadcast %13 : vector<1x16xf32> to vector<8x16xf32>
    %407 = arith.addf %405, %406 : vector<8x16xf32>
    %408 = arith.index_cast %c0_i32_116 : i32 to index
    %c0_125 = arith.constant 0 : index
    %c0_126 = arith.constant 0 : index
    %409 = vector.load %arg15[%408, %c0_125, %c0_126] : memref<8x8x16xf32, #tpu.memory_space<vmem>>, vector<1x8x16xf32>
    %410 = vector.shape_cast %409 : vector<1x8x16xf32> to vector<8x16xf32>
    %411 = vector.shape_cast %407 : vector<8x16xf32> to vector<1x8x16xf32>
    tpu.vector_store %arg15[%408, %c0_125, %c0_126], %411 {strides = array<i32>} : memref<8x8x16xf32, #tpu.memory_space<vmem>>, vector<1x8x16xf32>,
    %c1_i32_127 = arith.constant 1 : i32
    %cst_128 = arith.constant dense<0.000000e+00> : vector<8x32xf32>
    %412 = tpu.matmul %407, %6, %cst_128 {dimension_numbers = #tpu.dot_dimension_numbers<[1], [0], [0], [1], [0, 0, 1, 1], [], []>} : vector<8x16xf32>, vector<16x32xf32>, vector<8x32xf32> -> vector<8x32xf32>
    %413 = vector.broadcast %7 : vector<1x32xf32> to vector<8x32xf32>
    %414 = arith.addf %412, %413 : vector<8x32xf32>
    %cst_129 = arith.constant 0.000000e+00 : f32
    %415 = vector.broadcast %cst_129 : f32 to vector<8x32xf32>
    %416 = arith.maximumf %414, %415 : vector<8x32xf32>
    %cst_130 = arith.constant dense<0.000000e+00> : vector<8x96xf32>
    %417 = tpu.matmul %416, %8, %cst_130 {dimension_numbers = #tpu.dot_dimension_numbers<[1], [0], [0], [1], [0, 0, 1, 1], [], []>} : vector<8x32xf32>, vector<32x96xf32>, vector<8x96xf32> -> vector<8x96xf32>
    %418 = vector.broadcast %9 : vector<1x96xf32> to vector<8x96xf32>
    %419 = arith.addf %417, %418 : vector<8x96xf32>
    %cst_131 = arith.constant dense<0.000000e+00> : vector<8x96xf32>
    %420 = tpu.matmul %404, %10, %cst_131 {dimension_numbers = #tpu.dot_dimension_numbers<[1], [0], [0], [1], [0, 0, 1, 1], [], []>} : vector<8x32xf32>, vector<32x96xf32>, vector<8x96xf32> -> vector<8x96xf32>
    %421 = vector.broadcast %11 : vector<1x96xf32> to vector<8x96xf32>
    %422 = arith.addf %420, %421 : vector<8x96xf32>
    %423 = vector.extract_strided_slice %419 {offsets = [0, 0], sizes = [8, 32], strides = [1, 1]} : vector<8x96xf32> to vector<8x32xf32>
    %424 = vector.extract_strided_slice %419 {offsets = [0, 32], sizes = [8, 32], strides = [1, 1]} : vector<8x96xf32> to vector<8x32xf32>
    %425 = vector.extract_strided_slice %419 {offsets = [0, 64], sizes = [8, 32], strides = [1, 1]} : vector<8x96xf32> to vector<8x32xf32>
    %426 = vector.extract_strided_slice %422 {offsets = [0, 0], sizes = [8, 32], strides = [1, 1]} : vector<8x96xf32> to vector<8x32xf32>
    %427 = vector.extract_strided_slice %422 {offsets = [0, 32], sizes = [8, 32], strides = [1, 1]} : vector<8x96xf32> to vector<8x32xf32>
    %428 = vector.extract_strided_slice %422 {offsets = [0, 64], sizes = [8, 32], strides = [1, 1]} : vector<8x96xf32> to vector<8x32xf32>
    %429 = arith.addf %423, %426 : vector<8x32xf32>
    %430 = arith.negf %429 : vector<8x32xf32>
    %431 = math.exp %430 : vector<8x32xf32>
    %cst_132 = arith.constant 1.000000e+00 : f32
    %432 = vector.broadcast %cst_132 : f32 to vector<8x32xf32>
    %433 = arith.addf %432, %431 : vector<8x32xf32>
    %434 = arith.divf %432, %433 : vector<8x32xf32>
    %435 = arith.addf %424, %427 : vector<8x32xf32>
    %436 = arith.negf %435 : vector<8x32xf32>
    %437 = math.exp %436 : vector<8x32xf32>
    %cst_133 = arith.constant 1.000000e+00 : f32
    %438 = vector.broadcast %cst_133 : f32 to vector<8x32xf32>
    %439 = arith.addf %438, %437 : vector<8x32xf32>
    %440 = arith.divf %438, %439 : vector<8x32xf32>
    %441 = arith.mulf %434, %428 : vector<8x32xf32>
    %442 = arith.addf %425, %441 : vector<8x32xf32>
    %443 = math.tanh %442 : vector<8x32xf32>
    %cst_134 = arith.constant 1.000000e+00 : f32
    %444 = vector.broadcast %cst_134 : f32 to vector<8x32xf32>
    %445 = arith.subf %444, %440 : vector<8x32xf32>
    %446 = arith.mulf %445, %443 : vector<8x32xf32>
    %447 = arith.mulf %440, %404 : vector<8x32xf32>
    %448 = arith.addf %446, %447 : vector<8x32xf32>
    %cst_135 = arith.constant dense<0.000000e+00> : vector<8x16xf32>
    %449 = tpu.matmul %448, %12, %cst_135 {dimension_numbers = #tpu.dot_dimension_numbers<[1], [0], [0], [1], [0, 0, 1, 1], [], []>} : vector<8x32xf32>, vector<32x16xf32>, vector<8x16xf32> -> vector<8x16xf32>
    %450 = vector.broadcast %13 : vector<1x16xf32> to vector<8x16xf32>
    %451 = arith.addf %449, %450 : vector<8x16xf32>
    %452 = arith.index_cast %c1_i32_127 : i32 to index
    %c0_136 = arith.constant 0 : index
    %c0_137 = arith.constant 0 : index
    %453 = vector.load %arg15[%452, %c0_136, %c0_137] : memref<8x8x16xf32, #tpu.memory_space<vmem>>, vector<1x8x16xf32>
    %454 = vector.shape_cast %453 : vector<1x8x16xf32> to vector<8x16xf32>
    %455 = vector.shape_cast %451 : vector<8x16xf32> to vector<1x8x16xf32>
    tpu.vector_store %arg15[%452, %c0_136, %c0_137], %455 {strides = array<i32>} : memref<8x8x16xf32, #tpu.memory_space<vmem>>, vector<1x8x16xf32>,
    %c2_i32_138 = arith.constant 2 : i32
    %cst_139 = arith.constant dense<0.000000e+00> : vector<8x32xf32>
    %456 = tpu.matmul %451, %6, %cst_139 {dimension_numbers = #tpu.dot_dimension_numbers<[1], [0], [0], [1], [0, 0, 1, 1], [], []>} : vector<8x16xf32>, vector<16x32xf32>, vector<8x32xf32> -> vector<8x32xf32>
    %457 = vector.broadcast %7 : vector<1x32xf32> to vector<8x32xf32>
    %458 = arith.addf %456, %457 : vector<8x32xf32>
    %cst_140 = arith.constant 0.000000e+00 : f32
    %459 = vector.broadcast %cst_140 : f32 to vector<8x32xf32>
    %460 = arith.maximumf %458, %459 : vector<8x32xf32>
    %cst_141 = arith.constant dense<0.000000e+00> : vector<8x96xf32>
    %461 = tpu.matmul %460, %8, %cst_141 {dimension_numbers = #tpu.dot_dimension_numbers<[1], [0], [0], [1], [0, 0, 1, 1], [], []>} : vector<8x32xf32>, vector<32x96xf32>, vector<8x96xf32> -> vector<8x96xf32>
    %462 = vector.broadcast %9 : vector<1x96xf32> to vector<8x96xf32>
    %463 = arith.addf %461, %462 : vector<8x96xf32>
    %cst_142 = arith.constant dense<0.000000e+00> : vector<8x96xf32>
    %464 = tpu.matmul %448, %10, %cst_142 {dimension_numbers = #tpu.dot_dimension_numbers<[1], [0], [0], [1], [0, 0, 1, 1], [], []>} : vector<8x32xf32>, vector<32x96xf32>, vector<8x96xf32> -> vector<8x96xf32>
    %465 = vector.broadcast %11 : vector<1x96xf32> to vector<8x96xf32>
    %466 = arith.addf %464, %465 : vector<8x96xf32>
    %467 = vector.extract_strided_slice %463 {offsets = [0, 0], sizes = [8, 32], strides = [1, 1]} : vector<8x96xf32> to vector<8x32xf32>
    %468 = vector.extract_strided_slice %463 {offsets = [0, 32], sizes = [8, 32], strides = [1, 1]} : vector<8x96xf32> to vector<8x32xf32>
    %469 = vector.extract_strided_slice %463 {offsets = [0, 64], sizes = [8, 32], strides = [1, 1]} : vector<8x96xf32> to vector<8x32xf32>
    %470 = vector.extract_strided_slice %466 {offsets = [0, 0], sizes = [8, 32], strides = [1, 1]} : vector<8x96xf32> to vector<8x32xf32>
    %471 = vector.extract_strided_slice %466 {offsets = [0, 32], sizes = [8, 32], strides = [1, 1]} : vector<8x96xf32> to vector<8x32xf32>
    %472 = vector.extract_strided_slice %466 {offsets = [0, 64], sizes = [8, 32], strides = [1, 1]} : vector<8x96xf32> to vector<8x32xf32>
    %473 = arith.addf %467, %470 : vector<8x32xf32>
    %474 = arith.negf %473 : vector<8x32xf32>
    %475 = math.exp %474 : vector<8x32xf32>
    %cst_143 = arith.constant 1.000000e+00 : f32
    %476 = vector.broadcast %cst_143 : f32 to vector<8x32xf32>
    %477 = arith.addf %476, %475 : vector<8x32xf32>
    %478 = arith.divf %476, %477 : vector<8x32xf32>
    %479 = arith.addf %468, %471 : vector<8x32xf32>
    %480 = arith.negf %479 : vector<8x32xf32>
    %481 = math.exp %480 : vector<8x32xf32>
    %cst_144 = arith.constant 1.000000e+00 : f32
    %482 = vector.broadcast %cst_144 : f32 to vector<8x32xf32>
    %483 = arith.addf %482, %481 : vector<8x32xf32>
    %484 = arith.divf %482, %483 : vector<8x32xf32>
    %485 = arith.mulf %478, %472 : vector<8x32xf32>
    %486 = arith.addf %469, %485 : vector<8x32xf32>
    %487 = math.tanh %486 : vector<8x32xf32>
    %cst_145 = arith.constant 1.000000e+00 : f32
    %488 = vector.broadcast %cst_145 : f32 to vector<8x32xf32>
    %489 = arith.subf %488, %484 : vector<8x32xf32>
    %490 = arith.mulf %489, %487 : vector<8x32xf32>
    %491 = arith.mulf %484, %448 : vector<8x32xf32>
    %492 = arith.addf %490, %491 : vector<8x32xf32>
    %cst_146 = arith.constant dense<0.000000e+00> : vector<8x16xf32>
    %493 = tpu.matmul %492, %12, %cst_146 {dimension_numbers = #tpu.dot_dimension_numbers<[1], [0], [0], [1], [0, 0, 1, 1], [], []>} : vector<8x32xf32>, vector<32x16xf32>, vector<8x16xf32> -> vector<8x16xf32>
    %494 = vector.broadcast %13 : vector<1x16xf32> to vector<8x16xf32>
    %495 = arith.addf %493, %494 : vector<8x16xf32>
    %496 = arith.index_cast %c2_i32_138 : i32 to index
    %c0_147 = arith.constant 0 : index
    %c0_148 = arith.constant 0 : index
    %497 = vector.load %arg15[%496, %c0_147, %c0_148] : memref<8x8x16xf32, #tpu.memory_space<vmem>>, vector<1x8x16xf32>
    %498 = vector.shape_cast %497 : vector<1x8x16xf32> to vector<8x16xf32>
    %499 = vector.shape_cast %495 : vector<8x16xf32> to vector<1x8x16xf32>
    tpu.vector_store %arg15[%496, %c0_147, %c0_148], %499 {strides = array<i32>} : memref<8x8x16xf32, #tpu.memory_space<vmem>>, vector<1x8x16xf32>,
    %c3_i32_149 = arith.constant 3 : i32
    %cst_150 = arith.constant dense<0.000000e+00> : vector<8x32xf32>
    %500 = tpu.matmul %495, %6, %cst_150 {dimension_numbers = #tpu.dot_dimension_numbers<[1], [0], [0], [1], [0, 0, 1, 1], [], []>} : vector<8x16xf32>, vector<16x32xf32>, vector<8x32xf32> -> vector<8x32xf32>
    %501 = vector.broadcast %7 : vector<1x32xf32> to vector<8x32xf32>
    %502 = arith.addf %500, %501 : vector<8x32xf32>
    %cst_151 = arith.constant 0.000000e+00 : f32
    %503 = vector.broadcast %cst_151 : f32 to vector<8x32xf32>
    %504 = arith.maximumf %502, %503 : vector<8x32xf32>
    %cst_152 = arith.constant dense<0.000000e+00> : vector<8x96xf32>
    %505 = tpu.matmul %504, %8, %cst_152 {dimension_numbers = #tpu.dot_dimension_numbers<[1], [0], [0], [1], [0, 0, 1, 1], [], []>} : vector<8x32xf32>, vector<32x96xf32>, vector<8x96xf32> -> vector<8x96xf32>
    %506 = vector.broadcast %9 : vector<1x96xf32> to vector<8x96xf32>
    %507 = arith.addf %505, %506 : vector<8x96xf32>
    %cst_153 = arith.constant dense<0.000000e+00> : vector<8x96xf32>
    %508 = tpu.matmul %492, %10, %cst_153 {dimension_numbers = #tpu.dot_dimension_numbers<[1], [0], [0], [1], [0, 0, 1, 1], [], []>} : vector<8x32xf32>, vector<32x96xf32>, vector<8x96xf32> -> vector<8x96xf32>
    %509 = vector.broadcast %11 : vector<1x96xf32> to vector<8x96xf32>
    %510 = arith.addf %508, %509 : vector<8x96xf32>
    %511 = vector.extract_strided_slice %507 {offsets = [0, 0], sizes = [8, 32], strides = [1, 1]} : vector<8x96xf32> to vector<8x32xf32>
    %512 = vector.extract_strided_slice %507 {offsets = [0, 32], sizes = [8, 32], strides = [1, 1]} : vector<8x96xf32> to vector<8x32xf32>
    %513 = vector.extract_strided_slice %507 {offsets = [0, 64], sizes = [8, 32], strides = [1, 1]} : vector<8x96xf32> to vector<8x32xf32>
    %514 = vector.extract_strided_slice %510 {offsets = [0, 0], sizes = [8, 32], strides = [1, 1]} : vector<8x96xf32> to vector<8x32xf32>
    %515 = vector.extract_strided_slice %510 {offsets = [0, 32], sizes = [8, 32], strides = [1, 1]} : vector<8x96xf32> to vector<8x32xf32>
    %516 = vector.extract_strided_slice %510 {offsets = [0, 64], sizes = [8, 32], strides = [1, 1]} : vector<8x96xf32> to vector<8x32xf32>
    %517 = arith.addf %511, %514 : vector<8x32xf32>
    %518 = arith.negf %517 : vector<8x32xf32>
    %519 = math.exp %518 : vector<8x32xf32>
    %cst_154 = arith.constant 1.000000e+00 : f32
    %520 = vector.broadcast %cst_154 : f32 to vector<8x32xf32>
    %521 = arith.addf %520, %519 : vector<8x32xf32>
    %522 = arith.divf %520, %521 : vector<8x32xf32>
    %523 = arith.addf %512, %515 : vector<8x32xf32>
    %524 = arith.negf %523 : vector<8x32xf32>
    %525 = math.exp %524 : vector<8x32xf32>
    %cst_155 = arith.constant 1.000000e+00 : f32
    %526 = vector.broadcast %cst_155 : f32 to vector<8x32xf32>
    %527 = arith.addf %526, %525 : vector<8x32xf32>
    %528 = arith.divf %526, %527 : vector<8x32xf32>
    %529 = arith.mulf %522, %516 : vector<8x32xf32>
    %530 = arith.addf %513, %529 : vector<8x32xf32>
    %531 = math.tanh %530 : vector<8x32xf32>
    %cst_156 = arith.constant 1.000000e+00 : f32
    %532 = vector.broadcast %cst_156 : f32 to vector<8x32xf32>
    %533 = arith.subf %532, %528 : vector<8x32xf32>
    %534 = arith.mulf %533, %531 : vector<8x32xf32>
    %535 = arith.mulf %528, %492 : vector<8x32xf32>
    %536 = arith.addf %534, %535 : vector<8x32xf32>
    %cst_157 = arith.constant dense<0.000000e+00> : vector<8x16xf32>
    %537 = tpu.matmul %536, %12, %cst_157 {dimension_numbers = #tpu.dot_dimension_numbers<[1], [0], [0], [1], [0, 0, 1, 1], [], []>} : vector<8x32xf32>, vector<32x16xf32>, vector<8x16xf32> -> vector<8x16xf32>
    %538 = vector.broadcast %13 : vector<1x16xf32> to vector<8x16xf32>
    %539 = arith.addf %537, %538 : vector<8x16xf32>
    %540 = arith.index_cast %c3_i32_149 : i32 to index
    %c0_158 = arith.constant 0 : index
    %c0_159 = arith.constant 0 : index
    %541 = vector.load %arg15[%540, %c0_158, %c0_159] : memref<8x8x16xf32, #tpu.memory_space<vmem>>, vector<1x8x16xf32>
    %542 = vector.shape_cast %541 : vector<1x8x16xf32> to vector<8x16xf32>
    %543 = vector.shape_cast %539 : vector<8x16xf32> to vector<1x8x16xf32>
    tpu.vector_store %arg15[%540, %c0_158, %c0_159], %543 {strides = array<i32>} : memref<8x8x16xf32, #tpu.memory_space<vmem>>, vector<1x8x16xf32>,
    %c4_i32_160 = arith.constant 4 : i32
    %cst_161 = arith.constant dense<0.000000e+00> : vector<8x32xf32>
    %544 = tpu.matmul %539, %6, %cst_161 {dimension_numbers = #tpu.dot_dimension_numbers<[1], [0], [0], [1], [0, 0, 1, 1], [], []>} : vector<8x16xf32>, vector<16x32xf32>, vector<8x32xf32> -> vector<8x32xf32>
    %545 = vector.broadcast %7 : vector<1x32xf32> to vector<8x32xf32>
    %546 = arith.addf %544, %545 : vector<8x32xf32>
    %cst_162 = arith.constant 0.000000e+00 : f32
    %547 = vector.broadcast %cst_162 : f32 to vector<8x32xf32>
    %548 = arith.maximumf %546, %547 : vector<8x32xf32>
    %cst_163 = arith.constant dense<0.000000e+00> : vector<8x96xf32>
    %549 = tpu.matmul %548, %8, %cst_163 {dimension_numbers = #tpu.dot_dimension_numbers<[1], [0], [0], [1], [0, 0, 1, 1], [], []>} : vector<8x32xf32>, vector<32x96xf32>, vector<8x96xf32> -> vector<8x96xf32>
    %550 = vector.broadcast %9 : vector<1x96xf32> to vector<8x96xf32>
    %551 = arith.addf %549, %550 : vector<8x96xf32>
    %cst_164 = arith.constant dense<0.000000e+00> : vector<8x96xf32>
    %552 = tpu.matmul %536, %10, %cst_164 {dimension_numbers = #tpu.dot_dimension_numbers<[1], [0], [0], [1], [0, 0, 1, 1], [], []>} : vector<8x32xf32>, vector<32x96xf32>, vector<8x96xf32> -> vector<8x96xf32>
    %553 = vector.broadcast %11 : vector<1x96xf32> to vector<8x96xf32>
    %554 = arith.addf %552, %553 : vector<8x96xf32>
    %555 = vector.extract_strided_slice %551 {offsets = [0, 0], sizes = [8, 32], strides = [1, 1]} : vector<8x96xf32> to vector<8x32xf32>
    %556 = vector.extract_strided_slice %551 {offsets = [0, 32], sizes = [8, 32], strides = [1, 1]} : vector<8x96xf32> to vector<8x32xf32>
    %557 = vector.extract_strided_slice %551 {offsets = [0, 64], sizes = [8, 32], strides = [1, 1]} : vector<8x96xf32> to vector<8x32xf32>
    %558 = vector.extract_strided_slice %554 {offsets = [0, 0], sizes = [8, 32], strides = [1, 1]} : vector<8x96xf32> to vector<8x32xf32>
    %559 = vector.extract_strided_slice %554 {offsets = [0, 32], sizes = [8, 32], strides = [1, 1]} : vector<8x96xf32> to vector<8x32xf32>
    %560 = vector.extract_strided_slice %554 {offsets = [0, 64], sizes = [8, 32], strides = [1, 1]} : vector<8x96xf32> to vector<8x32xf32>
    %561 = arith.addf %555, %558 : vector<8x32xf32>
    %562 = arith.negf %561 : vector<8x32xf32>
    %563 = math.exp %562 : vector<8x32xf32>
    %cst_165 = arith.constant 1.000000e+00 : f32
    %564 = vector.broadcast %cst_165 : f32 to vector<8x32xf32>
    %565 = arith.addf %564, %563 : vector<8x32xf32>
    %566 = arith.divf %564, %565 : vector<8x32xf32>
    %567 = arith.addf %556, %559 : vector<8x32xf32>
    %568 = arith.negf %567 : vector<8x32xf32>
    %569 = math.exp %568 : vector<8x32xf32>
    %cst_166 = arith.constant 1.000000e+00 : f32
    %570 = vector.broadcast %cst_166 : f32 to vector<8x32xf32>
    %571 = arith.addf %570, %569 : vector<8x32xf32>
    %572 = arith.divf %570, %571 : vector<8x32xf32>
    %573 = arith.mulf %566, %560 : vector<8x32xf32>
    %574 = arith.addf %557, %573 : vector<8x32xf32>
    %575 = math.tanh %574 : vector<8x32xf32>
    %cst_167 = arith.constant 1.000000e+00 : f32
    %576 = vector.broadcast %cst_167 : f32 to vector<8x32xf32>
    %577 = arith.subf %576, %572 : vector<8x32xf32>
    %578 = arith.mulf %577, %575 : vector<8x32xf32>
    %579 = arith.mulf %572, %536 : vector<8x32xf32>
    %580 = arith.addf %578, %579 : vector<8x32xf32>
    %cst_168 = arith.constant dense<0.000000e+00> : vector<8x16xf32>
    %581 = tpu.matmul %580, %12, %cst_168 {dimension_numbers = #tpu.dot_dimension_numbers<[1], [0], [0], [1], [0, 0, 1, 1], [], []>} : vector<8x32xf32>, vector<32x16xf32>, vector<8x16xf32> -> vector<8x16xf32>
    %582 = vector.broadcast %13 : vector<1x16xf32> to vector<8x16xf32>
    %583 = arith.addf %581, %582 : vector<8x16xf32>
    %584 = arith.index_cast %c4_i32_160 : i32 to index
    %c0_169 = arith.constant 0 : index
    %c0_170 = arith.constant 0 : index
    %585 = vector.load %arg15[%584, %c0_169, %c0_170] : memref<8x8x16xf32, #tpu.memory_space<vmem>>, vector<1x8x16xf32>
    %586 = vector.shape_cast %585 : vector<1x8x16xf32> to vector<8x16xf32>
    %587 = vector.shape_cast %583 : vector<8x16xf32> to vector<1x8x16xf32>
    tpu.vector_store %arg15[%584, %c0_169, %c0_170], %587 {strides = array<i32>} : memref<8x8x16xf32, #tpu.memory_space<vmem>>, vector<1x8x16xf32>,
    %c5_i32_171 = arith.constant 5 : i32
    %cst_172 = arith.constant dense<0.000000e+00> : vector<8x32xf32>
    %588 = tpu.matmul %583, %6, %cst_172 {dimension_numbers = #tpu.dot_dimension_numbers<[1], [0], [0], [1], [0, 0, 1, 1], [], []>} : vector<8x16xf32>, vector<16x32xf32>, vector<8x32xf32> -> vector<8x32xf32>
    %589 = vector.broadcast %7 : vector<1x32xf32> to vector<8x32xf32>
    %590 = arith.addf %588, %589 : vector<8x32xf32>
    %cst_173 = arith.constant 0.000000e+00 : f32
    %591 = vector.broadcast %cst_173 : f32 to vector<8x32xf32>
    %592 = arith.maximumf %590, %591 : vector<8x32xf32>
    %cst_174 = arith.constant dense<0.000000e+00> : vector<8x96xf32>
    %593 = tpu.matmul %592, %8, %cst_174 {dimension_numbers = #tpu.dot_dimension_numbers<[1], [0], [0], [1], [0, 0, 1, 1], [], []>} : vector<8x32xf32>, vector<32x96xf32>, vector<8x96xf32> -> vector<8x96xf32>
    %594 = vector.broadcast %9 : vector<1x96xf32> to vector<8x96xf32>
    %595 = arith.addf %593, %594 : vector<8x96xf32>
    %cst_175 = arith.constant dense<0.000000e+00> : vector<8x96xf32>
    %596 = tpu.matmul %580, %10, %cst_175 {dimension_numbers = #tpu.dot_dimension_numbers<[1], [0], [0], [1], [0, 0, 1, 1], [], []>} : vector<8x32xf32>, vector<32x96xf32>, vector<8x96xf32> -> vector<8x96xf32>
    %597 = vector.broadcast %11 : vector<1x96xf32> to vector<8x96xf32>
    %598 = arith.addf %596, %597 : vector<8x96xf32>
    %599 = vector.extract_strided_slice %595 {offsets = [0, 0], sizes = [8, 32], strides = [1, 1]} : vector<8x96xf32> to vector<8x32xf32>
    %600 = vector.extract_strided_slice %595 {offsets = [0, 32], sizes = [8, 32], strides = [1, 1]} : vector<8x96xf32> to vector<8x32xf32>
    %601 = vector.extract_strided_slice %595 {offsets = [0, 64], sizes = [8, 32], strides = [1, 1]} : vector<8x96xf32> to vector<8x32xf32>
    %602 = vector.extract_strided_slice %598 {offsets = [0, 0], sizes = [8, 32], strides = [1, 1]} : vector<8x96xf32> to vector<8x32xf32>
    %603 = vector.extract_strided_slice %598 {offsets = [0, 32], sizes = [8, 32], strides = [1, 1]} : vector<8x96xf32> to vector<8x32xf32>
    %604 = vector.extract_strided_slice %598 {offsets = [0, 64], sizes = [8, 32], strides = [1, 1]} : vector<8x96xf32> to vector<8x32xf32>
    %605 = arith.addf %599, %602 : vector<8x32xf32>
    %606 = arith.negf %605 : vector<8x32xf32>
    %607 = math.exp %606 : vector<8x32xf32>
    %cst_176 = arith.constant 1.000000e+00 : f32
    %608 = vector.broadcast %cst_176 : f32 to vector<8x32xf32>
    %609 = arith.addf %608, %607 : vector<8x32xf32>
    %610 = arith.divf %608, %609 : vector<8x32xf32>
    %611 = arith.addf %600, %603 : vector<8x32xf32>
    %612 = arith.negf %611 : vector<8x32xf32>
    %613 = math.exp %612 : vector<8x32xf32>
    %cst_177 = arith.constant 1.000000e+00 : f32
    %614 = vector.broadcast %cst_177 : f32 to vector<8x32xf32>
    %615 = arith.addf %614, %613 : vector<8x32xf32>
    %616 = arith.divf %614, %615 : vector<8x32xf32>
    %617 = arith.mulf %610, %604 : vector<8x32xf32>
    %618 = arith.addf %601, %617 : vector<8x32xf32>
    %619 = math.tanh %618 : vector<8x32xf32>
    %cst_178 = arith.constant 1.000000e+00 : f32
    %620 = vector.broadcast %cst_178 : f32 to vector<8x32xf32>
    %621 = arith.subf %620, %616 : vector<8x32xf32>
    %622 = arith.mulf %621, %619 : vector<8x32xf32>
    %623 = arith.mulf %616, %580 : vector<8x32xf32>
    %624 = arith.addf %622, %623 : vector<8x32xf32>
    %cst_179 = arith.constant dense<0.000000e+00> : vector<8x16xf32>
    %625 = tpu.matmul %624, %12, %cst_179 {dimension_numbers = #tpu.dot_dimension_numbers<[1], [0], [0], [1], [0, 0, 1, 1], [], []>} : vector<8x32xf32>, vector<32x16xf32>, vector<8x16xf32> -> vector<8x16xf32>
    %626 = vector.broadcast %13 : vector<1x16xf32> to vector<8x16xf32>
    %627 = arith.addf %625, %626 : vector<8x16xf32>
    %628 = arith.index_cast %c5_i32_171 : i32 to index
    %c0_180 = arith.constant 0 : index
    %c0_181 = arith.constant 0 : index
    %629 = vector.load %arg15[%628, %c0_180, %c0_181] : memref<8x8x16xf32, #tpu.memory_space<vmem>>, vector<1x8x16xf32>
    %630 = vector.shape_cast %629 : vector<1x8x16xf32> to vector<8x16xf32>
    %631 = vector.shape_cast %627 : vector<8x16xf32> to vector<1x8x16xf32>
    tpu.vector_store %arg15[%628, %c0_180, %c0_181], %631 {strides = array<i32>} : memref<8x8x16xf32, #tpu.memory_space<vmem>>, vector<1x8x16xf32>,
    %c6_i32_182 = arith.constant 6 : i32
    %cst_183 = arith.constant dense<0.000000e+00> : vector<8x32xf32>
    %632 = tpu.matmul %627, %6, %cst_183 {dimension_numbers = #tpu.dot_dimension_numbers<[1], [0], [0], [1], [0, 0, 1, 1], [], []>} : vector<8x16xf32>, vector<16x32xf32>, vector<8x32xf32> -> vector<8x32xf32>
    %633 = vector.broadcast %7 : vector<1x32xf32> to vector<8x32xf32>
    %634 = arith.addf %632, %633 : vector<8x32xf32>
    %cst_184 = arith.constant 0.000000e+00 : f32
    %635 = vector.broadcast %cst_184 : f32 to vector<8x32xf32>
    %636 = arith.maximumf %634, %635 : vector<8x32xf32>
    %cst_185 = arith.constant dense<0.000000e+00> : vector<8x96xf32>
    %637 = tpu.matmul %636, %8, %cst_185 {dimension_numbers = #tpu.dot_dimension_numbers<[1], [0], [0], [1], [0, 0, 1, 1], [], []>} : vector<8x32xf32>, vector<32x96xf32>, vector<8x96xf32> -> vector<8x96xf32>
    %638 = vector.broadcast %9 : vector<1x96xf32> to vector<8x96xf32>
    %639 = arith.addf %637, %638 : vector<8x96xf32>
    %cst_186 = arith.constant dense<0.000000e+00> : vector<8x96xf32>
    %640 = tpu.matmul %624, %10, %cst_186 {dimension_numbers = #tpu.dot_dimension_numbers<[1], [0], [0], [1], [0, 0, 1, 1], [], []>} : vector<8x32xf32>, vector<32x96xf32>, vector<8x96xf32> -> vector<8x96xf32>
    %641 = vector.broadcast %11 : vector<1x96xf32> to vector<8x96xf32>
    %642 = arith.addf %640, %641 : vector<8x96xf32>
    %643 = vector.extract_strided_slice %639 {offsets = [0, 0], sizes = [8, 32], strides = [1, 1]} : vector<8x96xf32> to vector<8x32xf32>
    %644 = vector.extract_strided_slice %639 {offsets = [0, 32], sizes = [8, 32], strides = [1, 1]} : vector<8x96xf32> to vector<8x32xf32>
    %645 = vector.extract_strided_slice %639 {offsets = [0, 64], sizes = [8, 32], strides = [1, 1]} : vector<8x96xf32> to vector<8x32xf32>
    %646 = vector.extract_strided_slice %642 {offsets = [0, 0], sizes = [8, 32], strides = [1, 1]} : vector<8x96xf32> to vector<8x32xf32>
    %647 = vector.extract_strided_slice %642 {offsets = [0, 32], sizes = [8, 32], strides = [1, 1]} : vector<8x96xf32> to vector<8x32xf32>
    %648 = vector.extract_strided_slice %642 {offsets = [0, 64], sizes = [8, 32], strides = [1, 1]} : vector<8x96xf32> to vector<8x32xf32>
    %649 = arith.addf %643, %646 : vector<8x32xf32>
    %650 = arith.negf %649 : vector<8x32xf32>
    %651 = math.exp %650 : vector<8x32xf32>
    %cst_187 = arith.constant 1.000000e+00 : f32
    %652 = vector.broadcast %cst_187 : f32 to vector<8x32xf32>
    %653 = arith.addf %652, %651 : vector<8x32xf32>
    %654 = arith.divf %652, %653 : vector<8x32xf32>
    %655 = arith.addf %644, %647 : vector<8x32xf32>
    %656 = arith.negf %655 : vector<8x32xf32>
    %657 = math.exp %656 : vector<8x32xf32>
    %cst_188 = arith.constant 1.000000e+00 : f32
    %658 = vector.broadcast %cst_188 : f32 to vector<8x32xf32>
    %659 = arith.addf %658, %657 : vector<8x32xf32>
    %660 = arith.divf %658, %659 : vector<8x32xf32>
    %661 = arith.mulf %654, %648 : vector<8x32xf32>
    %662 = arith.addf %645, %661 : vector<8x32xf32>
    %663 = math.tanh %662 : vector<8x32xf32>
    %cst_189 = arith.constant 1.000000e+00 : f32
    %664 = vector.broadcast %cst_189 : f32 to vector<8x32xf32>
    %665 = arith.subf %664, %660 : vector<8x32xf32>
    %666 = arith.mulf %665, %663 : vector<8x32xf32>
    %667 = arith.mulf %660, %624 : vector<8x32xf32>
    %668 = arith.addf %666, %667 : vector<8x32xf32>
    %cst_190 = arith.constant dense<0.000000e+00> : vector<8x16xf32>
    %669 = tpu.matmul %668, %12, %cst_190 {dimension_numbers = #tpu.dot_dimension_numbers<[1], [0], [0], [1], [0, 0, 1, 1], [], []>} : vector<8x32xf32>, vector<32x16xf32>, vector<8x16xf32> -> vector<8x16xf32>
    %670 = vector.broadcast %13 : vector<1x16xf32> to vector<8x16xf32>
    %671 = arith.addf %669, %670 : vector<8x16xf32>
    %672 = arith.index_cast %c6_i32_182 : i32 to index
    %c0_191 = arith.constant 0 : index
    %c0_192 = arith.constant 0 : index
    %673 = vector.load %arg15[%672, %c0_191, %c0_192] : memref<8x8x16xf32, #tpu.memory_space<vmem>>, vector<1x8x16xf32>
    %674 = vector.shape_cast %673 : vector<1x8x16xf32> to vector<8x16xf32>
    %675 = vector.shape_cast %671 : vector<8x16xf32> to vector<1x8x16xf32>
    tpu.vector_store %arg15[%672, %c0_191, %c0_192], %675 {strides = array<i32>} : memref<8x8x16xf32, #tpu.memory_space<vmem>>, vector<1x8x16xf32>,
    %c7_i32_193 = arith.constant 7 : i32
    %cst_194 = arith.constant dense<0.000000e+00> : vector<8x32xf32>
    %676 = tpu.matmul %671, %6, %cst_194 {dimension_numbers = #tpu.dot_dimension_numbers<[1], [0], [0], [1], [0, 0, 1, 1], [], []>} : vector<8x16xf32>, vector<16x32xf32>, vector<8x32xf32> -> vector<8x32xf32>
    %677 = vector.broadcast %7 : vector<1x32xf32> to vector<8x32xf32>
    %678 = arith.addf %676, %677 : vector<8x32xf32>
    %cst_195 = arith.constant 0.000000e+00 : f32
    %679 = vector.broadcast %cst_195 : f32 to vector<8x32xf32>
    %680 = arith.maximumf %678, %679 : vector<8x32xf32>
    %cst_196 = arith.constant dense<0.000000e+00> : vector<8x96xf32>
    %681 = tpu.matmul %680, %8, %cst_196 {dimension_numbers = #tpu.dot_dimension_numbers<[1], [0], [0], [1], [0, 0, 1, 1], [], []>} : vector<8x32xf32>, vector<32x96xf32>, vector<8x96xf32> -> vector<8x96xf32>
    %682 = vector.broadcast %9 : vector<1x96xf32> to vector<8x96xf32>
    %683 = arith.addf %681, %682 : vector<8x96xf32>
    %cst_197 = arith.constant dense<0.000000e+00> : vector<8x96xf32>
    %684 = tpu.matmul %668, %10, %cst_197 {dimension_numbers = #tpu.dot_dimension_numbers<[1], [0], [0], [1], [0, 0, 1, 1], [], []>} : vector<8x32xf32>, vector<32x96xf32>, vector<8x96xf32> -> vector<8x96xf32>
    %685 = vector.broadcast %11 : vector<1x96xf32> to vector<8x96xf32>
    %686 = arith.addf %684, %685 : vector<8x96xf32>
    %687 = vector.extract_strided_slice %683 {offsets = [0, 0], sizes = [8, 32], strides = [1, 1]} : vector<8x96xf32> to vector<8x32xf32>
    %688 = vector.extract_strided_slice %683 {offsets = [0, 32], sizes = [8, 32], strides = [1, 1]} : vector<8x96xf32> to vector<8x32xf32>
    %689 = vector.extract_strided_slice %683 {offsets = [0, 64], sizes = [8, 32], strides = [1, 1]} : vector<8x96xf32> to vector<8x32xf32>
    %690 = vector.extract_strided_slice %686 {offsets = [0, 0], sizes = [8, 32], strides = [1, 1]} : vector<8x96xf32> to vector<8x32xf32>
    %691 = vector.extract_strided_slice %686 {offsets = [0, 32], sizes = [8, 32], strides = [1, 1]} : vector<8x96xf32> to vector<8x32xf32>
    %692 = vector.extract_strided_slice %686 {offsets = [0, 64], sizes = [8, 32], strides = [1, 1]} : vector<8x96xf32> to vector<8x32xf32>
    %693 = arith.addf %687, %690 : vector<8x32xf32>
    %694 = arith.negf %693 : vector<8x32xf32>
    %695 = math.exp %694 : vector<8x32xf32>
    %cst_198 = arith.constant 1.000000e+00 : f32
    %696 = vector.broadcast %cst_198 : f32 to vector<8x32xf32>
    %697 = arith.addf %696, %695 : vector<8x32xf32>
    %698 = arith.divf %696, %697 : vector<8x32xf32>
    %699 = arith.addf %688, %691 : vector<8x32xf32>
    %700 = arith.negf %699 : vector<8x32xf32>
    %701 = math.exp %700 : vector<8x32xf32>
    %cst_199 = arith.constant 1.000000e+00 : f32
    %702 = vector.broadcast %cst_199 : f32 to vector<8x32xf32>
    %703 = arith.addf %702, %701 : vector<8x32xf32>
    %704 = arith.divf %702, %703 : vector<8x32xf32>
    %705 = arith.mulf %698, %692 : vector<8x32xf32>
    %706 = arith.addf %689, %705 : vector<8x32xf32>
    %707 = math.tanh %706 : vector<8x32xf32>
    %cst_200 = arith.constant 1.000000e+00 : f32
    %708 = vector.broadcast %cst_200 : f32 to vector<8x32xf32>
    %709 = arith.subf %708, %704 : vector<8x32xf32>
    %710 = arith.mulf %709, %707 : vector<8x32xf32>
    %711 = arith.mulf %704, %668 : vector<8x32xf32>
    %712 = arith.addf %710, %711 : vector<8x32xf32>
    %cst_201 = arith.constant dense<0.000000e+00> : vector<8x16xf32>
    %713 = tpu.matmul %712, %12, %cst_201 {dimension_numbers = #tpu.dot_dimension_numbers<[1], [0], [0], [1], [0, 0, 1, 1], [], []>} : vector<8x32xf32>, vector<32x16xf32>, vector<8x16xf32> -> vector<8x16xf32>
    %714 = vector.broadcast %13 : vector<1x16xf32> to vector<8x16xf32>
    %715 = arith.addf %713, %714 : vector<8x16xf32>
    %716 = arith.index_cast %c7_i32_193 : i32 to index
    %c0_202 = arith.constant 0 : index
    %c0_203 = arith.constant 0 : index
    %717 = vector.load %arg15[%716, %c0_202, %c0_203] : memref<8x8x16xf32, #tpu.memory_space<vmem>>, vector<1x8x16xf32>
    %718 = vector.shape_cast %717 : vector<1x8x16xf32> to vector<8x16xf32>
    %719 = vector.shape_cast %715 : vector<8x16xf32> to vector<1x8x16xf32>
    tpu.vector_store %arg15[%716, %c0_202, %c0_203], %719 {strides = array<i32>} : memref<8x8x16xf32, #tpu.memory_space<vmem>>, vector<1x8x16xf32>,
    %c8_i32_204 = arith.constant 8 : i32
    return
  }
}

</mosaic_0001>

<llo_original>
// kernel: tpu_custom_call.1
$region0: #{tpu_custom_call.1}
  #allocation0 [shape = 'u32[]', space=smem, size = 0x4, offset = 0x4, fixed_abs, tag = 'smem constant byte address 0x4 - core index']
  #allocation1 [shape = 'u32[72,128]{1,0:T(1,128)}', space=vmem, size = 0x9000, scoped, tag = 'internal scratch']
  %s0 = inlined_call_operand.hbm [shape: f32[8,8,16], index: 0, kind: input, shape index: {}]
  %s1 = inlined_call_operand.vmem [shape: f32[16,32], index: 1, kind: input, shape index: {}]
  %s2 = inlined_call_operand.vmem [shape: f32[1,32], index: 2, kind: input, shape index: {}]
  %s3 = inlined_call_operand.vmem [shape: f32[32,96], index: 3, kind: input, shape index: {}]
  %s4 = inlined_call_operand.vmem [shape: f32[1,96], index: 4, kind: input, shape index: {}]
  %s5 = inlined_call_operand.hbm [shape: f32[32,96], index: 5, kind: input, shape index: {}]
  %s6 = inlined_call_operand.vmem [shape: f32[1,96], index: 6, kind: input, shape index: {}]
  %s7 = inlined_call_operand.hbm [shape: f32[16,32], index: 7, kind: input, shape index: {}]
  %s8 = inlined_call_operand.vmem [shape: f32[1,32], index: 8, kind: input, shape index: {}]
  %s9 = inlined_call_operand.hbm [shape: f32[32,96], index: 9, kind: input, shape index: {}]
  %s10 = inlined_call_operand.vmem [shape: f32[1,96], index: 10, kind: input, shape index: {}]
  %s11 = inlined_call_operand.hbm [shape: f32[32,96], index: 11, kind: input, shape index: {}]
  %s12 = inlined_call_operand.vmem [shape: f32[1,96], index: 12, kind: input, shape index: {}]
  %s13 = inlined_call_operand.vmem [shape: f32[32,16], index: 13, kind: input, shape index: {}]
  %s14 = inlined_call_operand.vmem [shape: f32[1,16], index: 14, kind: input, shape index: {}]
  %s15 = inlined_call_operand.hbm [shape: f32[8,8,16], index: 15, kind: output, shape index: {0}]
  %s16 = inlined_call_operand.hbm [shape: f32[8,8,32], index: 16, kind: output, shape index: {1}]
  %17 = xla_tuple %s15, %s16
  %s18 = sld [smem:[#allocation0]]
  $region98: #{tpu_custom_call.1} parent=0
    _
  %s20 = ssub.s32 1, %s18
  %s21 = scalar_select 0, %s20, %s18
  $region1: #{tpu_custom_call.1} parent=0
    #allocation2 [shape = 'u8[32768]{0}', space=vmem, size = 0x8000, scoped, tag = 'input window, operand 0, single buffered']
    #allocation3 [shape = 's32[1]{0}', space=sflag, size = 0x4, scoped, tag = 'scoped memory for tpu_custom_call.1']
    #allocation4 [shape = 's32[1]{0}', space=sflag, size = 0x4, scoped, tag = 'scoped memory for tpu_custom_call.1']
    #allocation5 [shape = 'u8[16384]{0}', space=vmem, size = 0x4000, scoped, tag = 'input window, operand 5, single buffered']
    #allocation6 [shape = 's32[1]{0}', space=sflag, size = 0x4, scoped, tag = 'scoped memory for tpu_custom_call.1']
    #allocation7 [shape = 'u8[8192]{0}', space=vmem, size = 0x2000, scoped, tag = 'input window, operand 7, single buffered']
    #allocation8 [shape = 'u8[16384]{0}', space=vmem, size = 0x4000, scoped, tag = 'input window, operand 9, single buffered']
    #allocation9 [shape = 's32[1]{0}', space=sflag, size = 0x4, scoped, tag = 'scoped memory for tpu_custom_call.1']
    #allocation10 [shape = 'u8[16384]{0}', space=vmem, size = 0x4000, scoped, tag = 'input window, operand 11, single buffered']
    #allocation11 [shape = 'u8[32768]{0}', space=vmem, size = 0x8000, scoped, tag = 'output window, operand 0, single buffered']
    #allocation12 [shape = 'u8[32768]{0}', space=vmem, size = 0x8000, scoped, tag = 'output window, operand 1, single buffered']
    #allocation13 [shape = 's32[1]{0}', space=sflag, size = 0x4, scoped, tag = 'scoped memory for tpu_custom_call.1']
    %22 = vsyncpa [#allocation3], 0
    %23 = vsyncpa [#allocation6], 0
    %24 = vsyncpa [#allocation9], 0
    %25 = vsyncpa [#allocation4], 0
    %26 = vsyncpa [#allocation13], 0
    // Predicated region
    $region2: #{tpu_custom_call.1} parent=1 // pred_check
      _
    $region3: #{tpu_custom_call.1} parent=1 // pred_check_branch
      %28 = sbr.rel (0) target = $region5
    $region4: #{tpu_custom_call.1} parent=1 // pred_region
      %30 = vsyncadd [#allocation3], 0
      %s31 = sshll.u32 %s0, 4
      %s32 = int_to_ptr.hbm [resolvable:$true] %s31
      %s33 = sshll.u32 [#allocation2], 4
      %s34 = int_to_ptr.vmem [resolvable:$true] %s33
      %39 = dma.hbm_to_vmem [thread:$0]  %s32, 1024, %s34, [#allocation3], 128, 128, 8
    $region5: #{tpu_custom_call.1} parent=1 // pred_fallthru
      _
    // Predicated region
    $region6: #{tpu_custom_call.1} parent=1 // pred_check
      _
    $region7: #{tpu_custom_call.1} parent=1 // pred_check_branch
      %41 = sbr.rel (0) target = $region9
    $region8: #{tpu_custom_call.1} parent=1 // pred_region
      _
    $region9: #{tpu_custom_call.1} parent=1 // pred_fallthru
      _
    // Predicated region
    $region10: #{tpu_custom_call.1} parent=1 // pred_check
      _
    $region11: #{tpu_custom_call.1} parent=1 // pred_check_branch
      %43 = sbr.rel (0) target = $region13
    $region12: #{tpu_custom_call.1} parent=1 // pred_region
      _
    $region13: #{tpu_custom_call.1} parent=1 // pred_fallthru
      _
    // Predicated region
    $region14: #{tpu_custom_call.1} parent=1 // pred_check
      _
    $region15: #{tpu_custom_call.1} parent=1 // pred_check_branch
      %45 = sbr.rel (0) target = $region17
    $region16: #{tpu_custom_call.1} parent=1 // pred_region
      _
    $region17: #{tpu_custom_call.1} parent=1 // pred_fallthru
      _
    // Predicated region
    $region18: #{tpu_custom_call.1} parent=1 // pred_check
      _
    $region19: #{tpu_custom_call.1} parent=1 // pred_check_branch
      %47 = sbr.rel (0) target = $region21
    $region20: #{tpu_custom_call.1} parent=1 // pred_region
      _
    $region21: #{tpu_custom_call.1} parent=1 // pred_fallthru
      _
    // Predicated region
    $region22: #{tpu_custom_call.1} parent=1 // pred_check
      _
    $region23: #{tpu_custom_call.1} parent=1 // pred_check_branch
      %49 = sbr.rel (0) target = $region25
    $region24: #{tpu_custom_call.1} parent=1 // pred_region
      %51 = vsyncadd [#allocation6], 0
      %s52 = sshll.u32 %s5, 4
      %s53 = int_to_ptr.hbm [resolvable:$true] %s52
      %s54 = sshll.u32 [#allocation5], 4
      %s55 = int_to_ptr.vmem [resolvable:$true] %s54
      %60 = dma.hbm_to_vmem [thread:$0]  %s53, 512, %s55, [#allocation6], 128, 128, 8
    $region25: #{tpu_custom_call.1} parent=1 // pred_fallthru
      _
    // Predicated region
    $region26: #{tpu_custom_call.1} parent=1 // pred_check
      _
    $region27: #{tpu_custom_call.1} parent=1 // pred_check_branch
      %62 = sbr.rel (0) target = $region29
    $region28: #{tpu_custom_call.1} parent=1 // pred_region
      _
    $region29: #{tpu_custom_call.1} parent=1 // pred_fallthru
      _
    // Predicated region
    $region30: #{tpu_custom_call.1} parent=1 // pred_check
      _
    $region31: #{tpu_custom_call.1} parent=1 // pred_check_branch
      %64 = sbr.rel (0) target = $region33
    $region32: #{tpu_custom_call.1} parent=1 // pred_region
      %66 = vsyncadd [#allocation6], 0
      %s67 = sshll.u32 %s7, 4
      %s68 = int_to_ptr.hbm [resolvable:$true] %s67
      %s69 = sshll.u32 [#allocation7], 4
      %s70 = int_to_ptr.vmem [resolvable:$true] %s69
      %75 = dma.hbm_to_vmem [thread:$0]  %s68, 256, %s70, [#allocation6], 128, 128, 8
    $region33: #{tpu_custom_call.1} parent=1 // pred_fallthru
      _
    // Predicated region
    $region34: #{tpu_custom_call.1} parent=1 // pred_check
      _
    $region35: #{tpu_custom_call.1} parent=1 // pred_check_branch
      %77 = sbr.rel (0) target = $region37
    $region36: #{tpu_custom_call.1} parent=1 // pred_region
      _
    $region37: #{tpu_custom_call.1} parent=1 // pred_fallthru
      _
    // Predicated region
    $region38: #{tpu_custom_call.1} parent=1 // pred_check
      _
    $region39: #{tpu_custom_call.1} parent=1 // pred_check_branch
      %79 = sbr.rel (0) target = $region41
    $region40: #{tpu_custom_call.1} parent=1 // pred_region
      %81 = vsyncadd [#allocation9], 0
      %s82 = sshll.u32 %s9, 4
      %s83 = int_to_ptr.hbm [resolvable:$true] %s82
      %s84 = sshll.u32 [#allocation8], 4
      %s85 = int_to_ptr.vmem [resolvable:$true] %s84
      %90 = dma.hbm_to_vmem [thread:$0]  %s83, 512, %s85, [#allocation9], 128, 128, 8
    $region41: #{tpu_custom_call.1} parent=1 // pred_fallthru
      _
    // Predicated region
    $region42: #{tpu_custom_call.1} parent=1 // pred_check
      _
    $region43: #{tpu_custom_call.1} parent=1 // pred_check_branch
      %92 = sbr.rel (0) target = $region45
    $region44: #{tpu_custom_call.1} parent=1 // pred_region
      _
    $region45: #{tpu_custom_call.1} parent=1 // pred_fallthru
      _
    // Predicated region
    $region46: #{tpu_custom_call.1} parent=1 // pred_check
      _
    $region47: #{tpu_custom_call.1} parent=1 // pred_check_branch
      %94 = sbr.rel (0) target = $region49
    $region48: #{tpu_custom_call.1} parent=1 // pred_region
      %96 = vsyncadd [#allocation9], 0
      %s97 = sshll.u32 %s11, 4
      %s98 = int_to_ptr.hbm [resolvable:$true] %s97
      %s99 = sshll.u32 [#allocation10], 4
      %s100 = int_to_ptr.vmem [resolvable:$true] %s99
      %105 = dma.hbm_to_vmem [thread:$0]  %s98, 512, %s100, [#allocation9], 128, 128, 8
    $region49: #{tpu_custom_call.1} parent=1 // pred_fallthru
      _
    // Predicated region
    $region50: #{tpu_custom_call.1} parent=1 // pred_check
      _
    $region51: #{tpu_custom_call.1} parent=1 // pred_check_branch
      %107 = sbr.rel (0) target = $region53
    $region52: #{tpu_custom_call.1} parent=1 // pred_region
      _
    $region53: #{tpu_custom_call.1} parent=1 // pred_fallthru
      _
    // Predicated region
    $region54: #{tpu_custom_call.1} parent=1 // pred_check
      _
    $region55: #{tpu_custom_call.1} parent=1 // pred_check_branch
      %109 = sbr.rel (0) target = $region57
    $region56: #{tpu_custom_call.1} parent=1 // pred_region
      _
    $region57: #{tpu_custom_call.1} parent=1 // pred_fallthru
      _
    // Predicated region
    $region58: #{tpu_custom_call.1} parent=1 // pred_check
      _
    $region59: #{tpu_custom_call.1} parent=1 // pred_check_branch
      %111 = sbr.rel (0) target = $region61
    $region60: #{tpu_custom_call.1} parent=1 // pred_region
      _
    $region61: #{tpu_custom_call.1} parent=1 // pred_fallthru
      _
    // Predicated region
    $region62: #{tpu_custom_call.1} parent=1 // pred_check
      _
    $region63: #{tpu_custom_call.1} parent=1 // pred_check_branch
      %113 = sbr.rel (0) target = $region65
    $region64: #{tpu_custom_call.1} parent=1 // pred_region
      %115 = dma.done [#allocation3], 1024
    $region65: #{tpu_custom_call.1} parent=1 // pred_fallthru
      _
    // Predicated region
    $region66: #{tpu_custom_call.1} parent=1 // pred_check
      _
    $region67: #{tpu_custom_call.1} parent=1 // pred_check_branch
      %117 = sbr.rel (0) target = $region69
    $region68: #{tpu_custom_call.1} parent=1 // pred_region
      %119 = dma.done [#allocation6], 512
    $region69: #{tpu_custom_call.1} parent=1 // pred_fallthru
      _
    // Predicated region
    $region70: #{tpu_custom_call.1} parent=1 // pred_check
      _
    $region71: #{tpu_custom_call.1} parent=1 // pred_check_branch
      %121 = sbr.rel (0) target = $region73
    $region72: #{tpu_custom_call.1} parent=1 // pred_region
      %123 = dma.done [#allocation6], 256
    $region73: #{tpu_custom_call.1} parent=1 // pred_fallthru
      _
    // Predicated region
    $region74: #{tpu_custom_call.1} parent=1 // pred_check
      _
    $region75: #{tpu_custom_call.1} parent=1 // pred_check_branch
      %125 = sbr.rel (0) target = $region77
    $region76: #{tpu_custom_call.1} parent=1 // pred_region
      %127 = dma.done [#allocation9], 512
    $region77: #{tpu_custom_call.1} parent=1 // pred_fallthru
      _
    // Predicated region
    $region78: #{tpu_custom_call.1} parent=1 // pred_check
      _
    $region79: #{tpu_custom_call.1} parent=1 // pred_check_branch
      %129 = sbr.rel (0) target = $region81
    $region80: #{tpu_custom_call.1} parent=1 // pred_region
      %131 = dma.done [#allocation9], 512
    $region81: #{tpu_custom_call.1} parent=1 // pred_fallthru
      _
    %v132 = vld [vmem:[%s1] sm:$0xff]
    %v133 = vld [vmem:[%s1 + $0x8] sm:$0xff]
    %v134 = vld [vmem:[%s2] sm:$0x1]
    %v135 = vld [vmem:[%s3] sm:$0xff]
    %v136 = vld [vmem:[%s3 + $0x8] sm:$0xff]
    %v137 = vld [vmem:[%s3 + $0x10] sm:$0xff]
    %v138 = vld [vmem:[%s3 + $0x18] sm:$0xff]
    %v139 = vld [vmem:[%s4] sm:$0x1]
    %v140 = vld [vmem:[#allocation5] sm:$0xff]
    %v141 = vld [vmem:[#allocation5 + $0x8] sm:$0xff]
    %v142 = vld [vmem:[#allocation5 + $0x10] sm:$0xff]
    %v143 = vld [vmem:[#allocation5 + $0x18] sm:$0xff]
    %v144 = vld [vmem:[%s6] sm:$0x1]
    %v145 = vld [vmem:[#allocation7] sm:$0xff]
    %v146 = vld [vmem:[#allocation7 + $0x8] sm:$0xff]
    %v147 = vld [vmem:[%s8] sm:$0x1]
    %v148 = vld [vmem:[#allocation8] sm:$0xff]
    %v149 = vld [vmem:[#allocation8 + $0x8] sm:$0xff]
    %v150 = vld [vmem:[#allocation8 + $0x10] sm:$0xff]
    %v151 = vld [vmem:[#allocation8 + $0x18] sm:$0xff]
    %v152 = vld [vmem:[%s10] sm:$0x1]
    %v153 = vld [vmem:[#allocation10] sm:$0xff]
    %v154 = vld [vmem:[#allocation10 + $0x8] sm:$0xff]
    %v155 = vld [vmem:[#allocation10 + $0x10] sm:$0xff]
    %v156 = vld [vmem:[#allocation10 + $0x18] sm:$0xff]
    %v157 = vld [vmem:[%s12] sm:$0x1]
    %v158 = vld [vmem:[%s13] sm:$0xff]
    %v159 = vld [vmem:[%s13 + $0x8] sm:$0xff]
    %v160 = vld [vmem:[%s13 + $0x10] sm:$0xff]
    %v161 = vld [vmem:[%s13 + $0x18] sm:$0xff]
    %v162 = vld [vmem:[%s14] sm:$0x1]
    %v163 = vld [vmem:[#allocation2] sm:$0xff]
    %v165 = vperm.slane %v134, 0
    %vm167 = vcmask 130048
    %v169 = vsel %vm167, %v163, 0
    %171 = vmatpush.msra.mxu0 0.0
    %172 = vmatpush.msra.mxu0 0.0
    %173 = vmatpush.msra.mxu0 0.0
    %174 = vmatpush.msra.mxu0 0.0
    %175 = vmatpush.msra.mxu0 0.0
    %176 = vmatpush.msra.mxu0 0.0
    %177 = vmatpush.msra.mxu0 0.0
    %178 = vmatpush.msra.mxu0 0.0
    %179 = vmatpush.msra.mxu0 0.0
    %180 = vmatpush.msra.mxu0 0.0
    %181 = vmatpush.msra.mxu0 0.0
    %182 = vmatpush.msra.mxu0 0.0
    %183 = vmatpush.msra.mxu0 0.0
    %184 = vmatpush.msra.mxu0 0.0
    %185 = vmatpush.msra.mxu0 %v133
    %186 = vmatpush.msra.mxu0 %v132
    %187 = vmatmul.f32.gmra.mxu0 %v169
    %v188 = vpop.f32.mrf.mxu0
    %v189 = vadd.f32 %v165, %v188
    %190 = vdwg.mxu0
    %v191 = vmax.f32 %v189, 0.0
    %v193 = vperm.slane %v139, 0
    %vm195 = vcmask 261120
    %v197 = vsel %vm195, %v191, 0
    %199 = vmatpush.msra.mxu0 0.0
    %200 = vmatpush.msra.mxu0 0.0
    %201 = vmatpush.msra.mxu0 0.0
    %202 = vmatpush.msra.mxu0 0.0
    %203 = vmatpush.msra.mxu0 0.0
    %204 = vmatpush.msra.mxu0 0.0
    %205 = vmatpush.msra.mxu0 0.0
    %206 = vmatpush.msra.mxu0 0.0
    %207 = vmatpush.msra.mxu0 0.0
    %208 = vmatpush.msra.mxu0 0.0
    %209 = vmatpush.msra.mxu0 0.0
    %210 = vmatpush.msra.mxu0 0.0
    %211 = vmatpush.msra.mxu0 %v138
    %212 = vmatpush.msra.mxu0 %v137
    %213 = vmatpush.msra.mxu0 %v136
    %214 = vmatpush.msra.mxu0 %v135
    %215 = vmatmul.f32.gmra.mxu0 %v197
    %v216 = vpop.f32.mrf.mxu0
    %v217 = vadd.f32 %v193, %v216
    %218 = vdwg.mxu0
    %v220 = vperm.slane %v144, 0
    %v223 = vsel %vm195, 0.0, 0
    %225 = vmatpush.msra.mxu0 0.0
    %226 = vmatpush.msra.mxu0 0.0
    %227 = vmatpush.msra.mxu0 0.0
    %228 = vmatpush.msra.mxu0 0.0
    %229 = vmatpush.msra.mxu0 0.0
    %230 = vmatpush.msra.mxu0 0.0
    %231 = vmatpush.msra.mxu0 0.0
    %232 = vmatpush.msra.mxu0 0.0
    %233 = vmatpush.msra.mxu0 0.0
    %234 = vmatpush.msra.mxu0 0.0
    %235 = vmatpush.msra.mxu0 0.0
    %236 = vmatpush.msra.mxu0 0.0
    %237 = vmatpush.msra.mxu0 %v143
    %238 = vmatpush.msra.mxu0 %v142
    %239 = vmatpush.msra.mxu0 %v141
    %240 = vmatpush.msra.mxu0 %v140
    %241 = vmatmul.f32.gmra.mxu0 %v223
    %v242 = vpop.f32.mrf.mxu0
    %v243 = vadd.f32 %v220, %v242
    %244 = vdwg.mxu0
    %v245 = vadd.f32 %v217, %v243
    %v246 = vxor.u32 %v245, 2147483648
    %v247 = vmul.f32 %v246, 1.442695
    %v248 = vpow.pop %v247
    %v249 = vadd.f32 %v248, 1.0
    %v250 = vrcp.pop %v249
    %v251 = vmul.f32 %v249, %v250
    %v252 = vsub.f32 1.0, %v251
    %v253 = vmul.f32 %v250, %v252
    %v254 = vadd.f32 %v250, %v253
    %vm255 = vweird.f32 %v249
    %vm256 = vweird.f32 %v250
    %vm257 = vmor %vm255, %vm256
    %v258 = vsel %vm257, %v250, %v254
    %v259 = vand.u32 2147483647, %v249
    %vm260 = vcmp.eq.f32.partialorder %v259, 8.507059e+37
    %v261 = vand.u32 %v249, 2147483648
    %v262 = vor.u32 1.1754944e-38, %v261
    %v263 = vsel %vm260, %v262, %v258
    %v264 = vmul.f32 1.0, %v263
    %266 = vrot.lane.b32.xlu0 %v243, 64
    %v267 = vpop.permute.xlu0 %266
    %v269 = vmul.f32 %v264, %v267
    %271 = vrot.lane.b32.xlu0 %v269, 64
    %v272 = vpop.permute.xlu0 %271
    %v274 = vadd.f32 %v217, %v272
    %v275 = vtanh.pop %v274
    %v276 = vsub.f32 1.0, %v264
    %278 = vrot.lane.b32.xlu0 %v275, 96
    %v279 = vpop.permute.xlu0 %278
    %v281 = vmul.f32 %v276, %v279
    %v282 = vmul.f32 %v264, 0.0
    %v283 = vadd.f32 %v281, %v282
    %285 = vrot.lane.b32.xlu0 %v283, 96
    %v286 = vpop.permute.xlu0 %285
    %288 = vst.msk [vmem:[#allocation12] sm:$0xff] %vm195, %v286
    %s289 = scalar_lea.vmem [#allocation2], 8
    %v290 = vld [vmem:[%s289] sm:$0xff]
    %v292 = vsel %vm167, %v290, 0
    %294 = vmatpush.msra.mxu0 0.0
    %295 = vmatpush.msra.mxu0 0.0
    %296 = vmatpush.msra.mxu0 0.0
    %297 = vmatpush.msra.mxu0 0.0
    %298 = vmatpush.msra.mxu0 0.0
    %299 = vmatpush.msra.mxu0 0.0
    %300 = vmatpush.msra.mxu0 0.0
    %301 = vmatpush.msra.mxu0 0.0
    %302 = vmatpush.msra.mxu0 0.0
    %303 = vmatpush.msra.mxu0 0.0
    %304 = vmatpush.msra.mxu0 0.0
    %305 = vmatpush.msra.mxu0 0.0
    %306 = vmatpush.msra.mxu0 0.0
    %307 = vmatpush.msra.mxu0 0.0
    %308 = vmatpush.msra.mxu0 %v133
    %309 = vmatpush.msra.mxu0 %v132
    %310 = vmatmul.f32.gmra.mxu0 %v292
    %v311 = vpop.f32.mrf.mxu0
    %v312 = vadd.f32 %v165, %v311
    %313 = vdwg.mxu0
    %v314 = vmax.f32 %v312, 0.0
    %v316 = vsel %vm195, %v314, 0
    %318 = vmatpush.msra.mxu0 0.0
    %319 = vmatpush.msra.mxu0 0.0
    %320 = vmatpush.msra.mxu0 0.0
    %321 = vmatpush.msra.mxu0 0.0
    %322 = vmatpush.msra.mxu0 0.0
    %323 = vmatpush.msra.mxu0 0.0
    %324 = vmatpush.msra.mxu0 0.0
    %325 = vmatpush.msra.mxu0 0.0
    %326 = vmatpush.msra.mxu0 0.0
    %327 = vmatpush.msra.mxu0 0.0
    %328 = vmatpush.msra.mxu0 0.0
    %329 = vmatpush.msra.mxu0 0.0
    %330 = vmatpush.msra.mxu0 %v138
    %331 = vmatpush.msra.mxu0 %v137
    %332 = vmatpush.msra.mxu0 %v136
    %333 = vmatpush.msra.mxu0 %v135
    %334 = vmatmul.f32.gmra.mxu0 %v316
    %v335 = vpop.f32.mrf.mxu0
    %v336 = vadd.f32 %v193, %v335
    %337 = vdwg.mxu0
    %v338 = vsel %vm195, %v286, 0
    %340 = vmatpush.msra.mxu0 0.0
    %341 = vmatpush.msra.mxu0 0.0
    %342 = vmatpush.msra.mxu0 0.0
    %343 = vmatpush.msra.mxu0 0.0
    %344 = vmatpush.msra.mxu0 0.0
    %345 = vmatpush.msra.mxu0 0.0
    %346 = vmatpush.msra.mxu0 0.0
    %347 = vmatpush.msra.mxu0 0.0
    %348 = vmatpush.msra.mxu0 0.0
    %349 = vmatpush.msra.mxu0 0.0
    %350 = vmatpush.msra.mxu0 0.0
    %351 = vmatpush.msra.mxu0 0.0
    %352 = vmatpush.msra.mxu0 %v143
    %353 = vmatpush.msra.mxu0 %v142
    %354 = vmatpush.msra.mxu0 %v141
    %355 = vmatpush.msra.mxu0 %v140
    %356 = vmatmul.f32.gmra.mxu0 %v338
    %v357 = vpop.f32.mrf.mxu0
    %v358 = vadd.f32 %v220, %v357
    %359 = vdwg.mxu0
    %v360 = vadd.f32 %v336, %v358
    %v361 = vxor.u32 %v360, 2147483648
    %v362 = vmul.f32 %v361, 1.442695
    %v363 = vpow.pop %v362
    %v364 = vadd.f32 %v363, 1.0
    %v365 = vrcp.pop %v364
    %v366 = vmul.f32 %v364, %v365
    %v367 = vsub.f32 1.0, %v366
    %v368 = vmul.f32 %v365, %v367
    %v369 = vadd.f32 %v365, %v368
    %vm370 = vweird.f32 %v364
    %vm371 = vweird.f32 %v365
    %vm372 = vmor %vm370, %vm371
    %v373 = vsel %vm372, %v365, %v369
    %v374 = vand.u32 2147483647, %v364
    %vm375 = vcmp.eq.f32.partialorder %v374, 8.507059e+37
    %v376 = vand.u32 %v364, 2147483648
    %v377 = vor.u32 1.1754944e-38, %v376
    %v378 = vsel %vm375, %v377, %v373
    %v379 = vmul.f32 1.0, %v378
    %381 = vrot.lane.b32.xlu0 %v358, 64
    %v382 = vpop.permute.xlu0 %381
    %v384 = vmul.f32 %v379, %v382
    %386 = vrot.lane.b32.xlu0 %v384, 64
    %v387 = vpop.permute.xlu0 %386
    %v389 = vadd.f32 %v336, %v387
    %v390 = vtanh.pop %v389
    %v391 = vsub.f32 1.0, %v379
    %393 = vrot.lane.b32.xlu0 %v390, 96
    %v394 = vpop.permute.xlu0 %393
    %v396 = vmul.f32 %v391, %v394
    %v397 = vmul.f32 %v379, %v283
    %v398 = vadd.f32 %v396, %v397
    %400 = vrot.lane.b32.xlu0 %v398, 96
    %v401 = vpop.permute.xlu0 %400
    %s403 = scalar_lea.vmem [#allocation12], 8
    %404 = vst.msk [vmem:[%s403] sm:$0xff] %vm195, %v401
    %s405 = scalar_lea.vmem [#allocation2], 16
    %v406 = vld [vmem:[%s405] sm:$0xff]
    %v408 = vsel %vm167, %v406, 0
    %410 = vmatpush.msra.mxu0 0.0
    %411 = vmatpush.msra.mxu0 0.0
    %412 = vmatpush.msra.mxu0 0.0
    %413 = vmatpush.msra.mxu0 0.0
    %414 = vmatpush.msra.mxu0 0.0
    %415 = vmatpush.msra.mxu0 0.0
    %416 = vmatpush.msra.mxu0 0.0
    %417 = vmatpush.msra.mxu0 0.0
    %418 = vmatpush.msra.mxu0 0.0
    %419 = vmatpush.msra.mxu0 0.0
    %420 = vmatpush.msra.mxu0 0.0
    %421 = vmatpush.msra.mxu0 0.0
    %422 = vmatpush.msra.mxu0 0.0
    %423 = vmatpush.msra.mxu0 0.0
    %424 = vmatpush.msra.mxu0 %v133
    %425 = vmatpush.msra.mxu0 %v132
    %426 = vmatmul.f32.gmra.mxu0 %v408
    %v427 = vpop.f32.mrf.mxu0
    %v428 = vadd.f32 %v165, %v427
    %429 = vdwg.mxu0
    %v430 = vmax.f32 %v428, 0.0
    %v432 = vsel %vm195, %v430, 0
    %434 = vmatpush.msra.mxu0 0.0
    %435 = vmatpush.msra.mxu0 0.0
    %436 = vmatpush.msra.mxu0 0.0
    %437 = vmatpush.msra.mxu0 0.0
    %438 = vmatpush.msra.mxu0 0.0
    %439 = vmatpush.msra.mxu0 0.0
    %440 = vmatpush.msra.mxu0 0.0
    %441 = vmatpush.msra.mxu0 0.0
    %442 = vmatpush.msra.mxu0 0.0
    %443 = vmatpush.msra.mxu0 0.0
    %444 = vmatpush.msra.mxu0 0.0
    %445 = vmatpush.msra.mxu0 0.0
    %446 = vmatpush.msra.mxu0 %v138
    %447 = vmatpush.msra.mxu0 %v137
    %448 = vmatpush.msra.mxu0 %v136
    %449 = vmatpush.msra.mxu0 %v135
    %450 = vmatmul.f32.gmra.mxu0 %v432
    %v451 = vpop.f32.mrf.mxu0
    %v452 = vadd.f32 %v193, %v451
    %453 = vdwg.mxu0
    %v454 = vsel %vm195, %v401, 0
    %456 = vmatpush.msra.mxu0 0.0
    %457 = vmatpush.msra.mxu0 0.0
    %458 = vmatpush.msra.mxu0 0.0
    %459 = vmatpush.msra.mxu0 0.0
    %460 = vmatpush.msra.mxu0 0.0
    %461 = vmatpush.msra.mxu0 0.0
    %462 = vmatpush.msra.mxu0 0.0
    %463 = vmatpush.msra.mxu0 0.0
    %464 = vmatpush.msra.mxu0 0.0
    %465 = vmatpush.msra.mxu0 0.0
    %466 = vmatpush.msra.mxu0 0.0
    %467 = vmatpush.msra.mxu0 0.0
    %468 = vmatpush.msra.mxu0 %v143
    %469 = vmatpush.msra.mxu0 %v142
    %470 = vmatpush.msra.mxu0 %v141
    %471 = vmatpush.msra.mxu0 %v140
    %472 = vmatmul.f32.gmra.mxu0 %v454
    %v473 = vpop.f32.mrf.mxu0
    %v474 = vadd.f32 %v220, %v473
    %475 = vdwg.mxu0
    %v476 = vadd.f32 %v452, %v474
    %v477 = vxor.u32 %v476, 2147483648
    %v478 = vmul.f32 %v477, 1.442695
    %v479 = vpow.pop %v478
    %v480 = vadd.f32 %v479, 1.0
    %v481 = vrcp.pop %v480
    %v482 = vmul.f32 %v480, %v481
    %v483 = vsub.f32 1.0, %v482
    %v484 = vmul.f32 %v481, %v483
    %v485 = vadd.f32 %v481, %v484
    %vm486 = vweird.f32 %v480
    %vm487 = vweird.f32 %v481
    %vm488 = vmor %vm486, %vm487
    %v489 = vsel %vm488, %v481, %v485
    %v490 = vand.u32 2147483647, %v480
    %vm491 = vcmp.eq.f32.partialorder %v490, 8.507059e+37
    %v492 = vand.u32 %v480, 2147483648
    %v493 = vor.u32 1.1754944e-38, %v492
    %v494 = vsel %vm491, %v493, %v489
    %v495 = vmul.f32 1.0, %v494
    %497 = vrot.lane.b32.xlu0 %v474, 64
    %v498 = vpop.permute.xlu0 %497
    %v500 = vmul.f32 %v495, %v498
    %502 = vrot.lane.b32.xlu0 %v500, 64
    %v503 = vpop.permute.xlu0 %502
    %v505 = vadd.f32 %v452, %v503
    %v506 = vtanh.pop %v505
    %v507 = vsub.f32 1.0, %v495
    %509 = vrot.lane.b32.xlu0 %v506, 96
    %v510 = vpop.permute.xlu0 %509
    %v512 = vmul.f32 %v507, %v510
    %v513 = vmul.f32 %v495, %v398
    %v514 = vadd.f32 %v512, %v513
    %516 = vrot.lane.b32.xlu0 %v514, 96
    %v517 = vpop.permute.xlu0 %516
    %s519 = scalar_lea.vmem [#allocation12], 16
    %520 = vst.msk [vmem:[%s519] sm:$0xff] %vm195, %v517
    %s521 = scalar_lea.vmem [#allocation2], 24
    %v522 = vld [vmem:[%s521] sm:$0xff]
    %v524 = vsel %vm167, %v522, 0
    %526 = vmatpush.msra.mxu0 0.0
    %527 = vmatpush.msra.mxu0 0.0
    %528 = vmatpush.msra.mxu0 0.0
    %529 = vmatpush.msra.mxu0 0.0
    %530 = vmatpush.msra.mxu0 0.0
    %531 = vmatpush.msra.mxu0 0.0
    %532 = vmatpush.msra.mxu0 0.0
    %533 = vmatpush.msra.mxu0 0.0
    %534 = vmatpush.msra.mxu0 0.0
    %535 = vmatpush.msra.mxu0 0.0
    %536 = vmatpush.msra.mxu0 0.0
    %537 = vmatpush.msra.mxu0 0.0
    %538 = vmatpush.msra.mxu0 0.0
    %539 = vmatpush.msra.mxu0 0.0
    %540 = vmatpush.msra.mxu0 %v133
    %541 = vmatpush.msra.mxu0 %v132
    %542 = vmatmul.f32.gmra.mxu0 %v524
    %v543 = vpop.f32.mrf.mxu0
    %v544 = vadd.f32 %v165, %v543
    %545 = vdwg.mxu0
    %v546 = vmax.f32 %v544, 0.0
    %v548 = vsel %vm195, %v546, 0
    %550 = vmatpush.msra.mxu0 0.0
    %551 = vmatpush.msra.mxu0 0.0
    %552 = vmatpush.msra.mxu0 0.0
    %553 = vmatpush.msra.mxu0 0.0
    %554 = vmatpush.msra.mxu0 0.0
    %555 = vmatpush.msra.mxu0 0.0
    %556 = vmatpush.msra.mxu0 0.0
    %557 = vmatpush.msra.mxu0 0.0
    %558 = vmatpush.msra.mxu0 0.0
    %559 = vmatpush.msra.mxu0 0.0
    %560 = vmatpush.msra.mxu0 0.0
    %561 = vmatpush.msra.mxu0 0.0
    %562 = vmatpush.msra.mxu0 %v138
    %563 = vmatpush.msra.mxu0 %v137
    %564 = vmatpush.msra.mxu0 %v136
    %565 = vmatpush.msra.mxu0 %v135
    %566 = vmatmul.f32.gmra.mxu0 %v548
    %v567 = vpop.f32.mrf.mxu0
    %v568 = vadd.f32 %v193, %v567
    %569 = vdwg.mxu0
    %v570 = vsel %vm195, %v517, 0
    %572 = vmatpush.msra.mxu0 0.0
    %573 = vmatpush.msra.mxu0 0.0
    %574 = vmatpush.msra.mxu0 0.0
    %575 = vmatpush.msra.mxu0 0.0
    %576 = vmatpush.msra.mxu0 0.0
    %577 = vmatpush.msra.mxu0 0.0
    %578 = vmatpush.msra.mxu0 0.0
    %579 = vmatpush.msra.mxu0 0.0
    %580 = vmatpush.msra.mxu0 0.0
    %581 = vmatpush.msra.mxu0 0.0
    %582 = vmatpush.msra.mxu0 0.0
    %583 = vmatpush.msra.mxu0 0.0
    %584 = vmatpush.msra.mxu0 %v143
    %585 = vmatpush.msra.mxu0 %v142
    %586 = vmatpush.msra.mxu0 %v141
    %587 = vmatpush.msra.mxu0 %v140
    %588 = vmatmul.f32.gmra.mxu0 %v570
    %v589 = vpop.f32.mrf.mxu0
    %v590 = vadd.f32 %v220, %v589
    %591 = vdwg.mxu0
    %v592 = vadd.f32 %v568, %v590
    %v593 = vxor.u32 %v592, 2147483648
    %v594 = vmul.f32 %v593, 1.442695
    %v595 = vpow.pop %v594
    %v596 = vadd.f32 %v595, 1.0
    %v597 = vrcp.pop %v596
    %v598 = vmul.f32 %v596, %v597
    %v599 = vsub.f32 1.0, %v598
    %v600 = vmul.f32 %v597, %v599
    %v601 = vadd.f32 %v597, %v600
    %vm602 = vweird.f32 %v596
    %vm603 = vweird.f32 %v597
    %vm604 = vmor %vm602, %vm603
    %v605 = vsel %vm604, %v597, %v601
    %v606 = vand.u32 2147483647, %v596
    %vm607 = vcmp.eq.f32.partialorder %v606, 8.507059e+37
    %v608 = vand.u32 %v596, 2147483648
    %v609 = vor.u32 1.1754944e-38, %v608
    %v610 = vsel %vm607, %v609, %v605
    %v611 = vmul.f32 1.0, %v610
    %613 = vrot.lane.b32.xlu0 %v590, 64
    %v614 = vpop.permute.xlu0 %613
    %v616 = vmul.f32 %v611, %v614
    %618 = vrot.lane.b32.xlu0 %v616, 64
    %v619 = vpop.permute.xlu0 %618
    %v621 = vadd.f32 %v568, %v619
    %v622 = vtanh.pop %v621
    %v623 = vsub.f32 1.0, %v611
    %625 = vrot.lane.b32.xlu0 %v622, 96
    %v626 = vpop.permute.xlu0 %625
    %v628 = vmul.f32 %v623, %v626
    %v629 = vmul.f32 %v611, %v514
    %v630 = vadd.f32 %v628, %v629
    %632 = vrot.lane.b32.xlu0 %v630, 96
    %v633 = vpop.permute.xlu0 %632
    %s635 = scalar_lea.vmem [#allocation12], 24
    %636 = vst.msk [vmem:[%s635] sm:$0xff] %vm195, %v633
    %s637 = scalar_lea.vmem [#allocation2], 32
    %v638 = vld [vmem:[%s637] sm:$0xff]
    %v640 = vsel %vm167, %v638, 0
    %642 = vmatpush.msra.mxu0 0.0
    %643 = vmatpush.msra.mxu0 0.0
    %644 = vmatpush.msra.mxu0 0.0
    %645 = vmatpush.msra.mxu0 0.0
    %646 = vmatpush.msra.mxu0 0.0
    %647 = vmatpush.msra.mxu0 0.0
    %648 = vmatpush.msra.mxu0 0.0
    %649 = vmatpush.msra.mxu0 0.0
    %650 = vmatpush.msra.mxu0 0.0
    %651 = vmatpush.msra.mxu0 0.0
    %652 = vmatpush.msra.mxu0 0.0
    %653 = vmatpush.msra.mxu0 0.0
    %654 = vmatpush.msra.mxu0 0.0
    %655 = vmatpush.msra.mxu0 0.0
    %656 = vmatpush.msra.mxu0 %v133
    %657 = vmatpush.msra.mxu0 %v132
    %658 = vmatmul.f32.gmra.mxu0 %v640
    %v659 = vpop.f32.mrf.mxu0
    %v660 = vadd.f32 %v165, %v659
    %661 = vdwg.mxu0
    %v662 = vmax.f32 %v660, 0.0
    %v664 = vsel %vm195, %v662, 0
    %666 = vmatpush.msra.mxu0 0.0
    %667 = vmatpush.msra.mxu0 0.0
    %668 = vmatpush.msra.mxu0 0.0
    %669 = vmatpush.msra.mxu0 0.0
    %670 = vmatpush.msra.mxu0 0.0
    %671 = vmatpush.msra.mxu0 0.0
    %672 = vmatpush.msra.mxu0 0.0
    %673 = vmatpush.msra.mxu0 0.0
    %674 = vmatpush.msra.mxu0 0.0
    %675 = vmatpush.msra.mxu0 0.0
    %676 = vmatpush.msra.mxu0 0.0
    %677 = vmatpush.msra.mxu0 0.0
    %678 = vmatpush.msra.mxu0 %v138
    %679 = vmatpush.msra.mxu0 %v137
    %680 = vmatpush.msra.mxu0 %v136
    %681 = vmatpush.msra.mxu0 %v135
    %682 = vmatmul.f32.gmra.mxu0 %v664
    %v683 = vpop.f32.mrf.mxu0
    %v684 = vadd.f32 %v193, %v683
    %685 = vdwg.mxu0
    %v686 = vsel %vm195, %v633, 0
    %688 = vmatpush.msra.mxu0 0.0
    %689 = vmatpush.msra.mxu0 0.0
    %690 = vmatpush.msra.mxu0 0.0
    %691 = vmatpush.msra.mxu0 0.0
    %692 = vmatpush.msra.mxu0 0.0
    %693 = vmatpush.msra.mxu0 0.0
    %694 = vmatpush.msra.mxu0 0.0
    %695 = vmatpush.msra.mxu0 0.0
    %696 = vmatpush.msra.mxu0 0.0
    %697 = vmatpush.msra.mxu0 0.0
    %698 = vmatpush.msra.mxu0 0.0
    %699 = vmatpush.msra.mxu0 0.0
    %700 = vmatpush.msra.mxu0 %v143
    %701 = vmatpush.msra.mxu0 %v142
    %702 = vmatpush.msra.mxu0 %v141
    %703 = vmatpush.msra.mxu0 %v140
    %704 = vmatmul.f32.gmra.mxu0 %v686
    %v705 = vpop.f32.mrf.mxu0
    %v706 = vadd.f32 %v220, %v705
    %707 = vdwg.mxu0
    %v708 = vadd.f32 %v684, %v706
    %v709 = vxor.u32 %v708, 2147483648
    %v710 = vmul.f32 %v709, 1.442695
    %v711 = vpow.pop %v710
    %v712 = vadd.f32 %v711, 1.0
    %v713 = vrcp.pop %v712
    %v714 = vmul.f32 %v712, %v713
    %v715 = vsub.f32 1.0, %v714
    %v716 = vmul.f32 %v713, %v715
    %v717 = vadd.f32 %v713, %v716
    %vm718 = vweird.f32 %v712
    %vm719 = vweird.f32 %v713
    %vm720 = vmor %vm718, %vm719
    %v721 = vsel %vm720, %v713, %v717
    %v722 = vand.u32 2147483647, %v712
    %vm723 = vcmp.eq.f32.partialorder %v722, 8.507059e+37
    %v724 = vand.u32 %v712, 2147483648
    %v725 = vor.u32 1.1754944e-38, %v724
    %v726 = vsel %vm723, %v725, %v721
    %v727 = vmul.f32 1.0, %v726
    %729 = vrot.lane.b32.xlu0 %v706, 64
    %v730 = vpop.permute.xlu0 %729
    %v732 = vmul.f32 %v727, %v730
    %734 = vrot.lane.b32.xlu0 %v732, 64
    %v735 = vpop.permute.xlu0 %734
    %v737 = vadd.f32 %v684, %v735
    %v738 = vtanh.pop %v737
    %v739 = vsub.f32 1.0, %v727
    %741 = vrot.lane.b32.xlu0 %v738, 96
    %v742 = vpop.permute.xlu0 %741
    %v744 = vmul.f32 %v739, %v742
    %v745 = vmul.f32 %v727, %v630
    %v746 = vadd.f32 %v744, %v745
    %748 = vrot.lane.b32.xlu0 %v746, 96
    %v749 = vpop.permute.xlu0 %748
    %s751 = scalar_lea.vmem [#allocation12], 32
    %752 = vst.msk [vmem:[%s751] sm:$0xff] %vm195, %v749
    %s753 = scalar_lea.vmem [#allocation2], 40
    %v754 = vld [vmem:[%s753] sm:$0xff]
    %v756 = vsel %vm167, %v754, 0
    %758 = vmatpush.msra.mxu0 0.0
    %759 = vmatpush.msra.mxu0 0.0
    %760 = vmatpush.msra.mxu0 0.0
    %761 = vmatpush.msra.mxu0 0.0
    %762 = vmatpush.msra.mxu0 0.0
    %763 = vmatpush.msra.mxu0 0.0
    %764 = vmatpush.msra.mxu0 0.0
    %765 = vmatpush.msra.mxu0 0.0
    %766 = vmatpush.msra.mxu0 0.0
    %767 = vmatpush.msra.mxu0 0.0
    %768 = vmatpush.msra.mxu0 0.0
    %769 = vmatpush.msra.mxu0 0.0
    %770 = vmatpush.msra.mxu0 0.0
    %771 = vmatpush.msra.mxu0 0.0
    %772 = vmatpush.msra.mxu0 %v133
    %773 = vmatpush.msra.mxu0 %v132
    %774 = vmatmul.f32.gmra.mxu0 %v756
    %v775 = vpop.f32.mrf.mxu0
    %v776 = vadd.f32 %v165, %v775
    %777 = vdwg.mxu0
    %v778 = vmax.f32 %v776, 0.0
    %v780 = vsel %vm195, %v778, 0
    %782 = vmatpush.msra.mxu0 0.0
    %783 = vmatpush.msra.mxu0 0.0
    %784 = vmatpush.msra.mxu0 0.0
    %785 = vmatpush.msra.mxu0 0.0
    %786 = vmatpush.msra.mxu0 0.0
    %787 = vmatpush.msra.mxu0 0.0
    %788 = vmatpush.msra.mxu0 0.0
    %789 = vmatpush.msra.mxu0 0.0
    %790 = vmatpush.msra.mxu0 0.0
    %791 = vmatpush.msra.mxu0 0.0
    %792 = vmatpush.msra.mxu0 0.0
    %793 = vmatpush.msra.mxu0 0.0
    %794 = vmatpush.msra.mxu0 %v138
    %795 = vmatpush.msra.mxu0 %v137
    %796 = vmatpush.msra.mxu0 %v136
    %797 = vmatpush.msra.mxu0 %v135
    %798 = vmatmul.f32.gmra.mxu0 %v780
    %v799 = vpop.f32.mrf.mxu0
    %v800 = vadd.f32 %v193, %v799
    %801 = vdwg.mxu0
    %v802 = vsel %vm195, %v749, 0
    %804 = vmatpush.msra.mxu0 0.0
    %805 = vmatpush.msra.mxu0 0.0
    %806 = vmatpush.msra.mxu0 0.0
    %807 = vmatpush.msra.mxu0 0.0
    %808 = vmatpush.msra.mxu0 0.0
    %809 = vmatpush.msra.mxu0 0.0
    %810 = vmatpush.msra.mxu0 0.0
    %811 = vmatpush.msra.mxu0 0.0
    %812 = vmatpush.msra.mxu0 0.0
    %813 = vmatpush.msra.mxu0 0.0
    %814 = vmatpush.msra.mxu0 0.0
    %815 = vmatpush.msra.mxu0 0.0
    %816 = vmatpush.msra.mxu0 %v143
    %817 = vmatpush.msra.mxu0 %v142
    %818 = vmatpush.msra.mxu0 %v141
    %819 = vmatpush.msra.mxu0 %v140
    %820 = vmatmul.f32.gmra.mxu0 %v802
    %v821 = vpop.f32.mrf.mxu0
    %v822 = vadd.f32 %v220, %v821
    %823 = vdwg.mxu0
    %v824 = vadd.f32 %v800, %v822
    %v825 = vxor.u32 %v824, 2147483648
    %v826 = vmul.f32 %v825, 1.442695
    %v827 = vpow.pop %v826
    %v828 = vadd.f32 %v827, 1.0
    %v829 = vrcp.pop %v828
    %v830 = vmul.f32 %v828, %v829
    %v831 = vsub.f32 1.0, %v830
    %v832 = vmul.f32 %v829, %v831
    %v833 = vadd.f32 %v829, %v832
    %vm834 = vweird.f32 %v828
    %vm835 = vweird.f32 %v829
    %vm836 = vmor %vm834, %vm835
    %v837 = vsel %vm836, %v829, %v833
    %v838 = vand.u32 2147483647, %v828
    %vm839 = vcmp.eq.f32.partialorder %v838, 8.507059e+37
    %v840 = vand.u32 %v828, 2147483648
    %v841 = vor.u32 1.1754944e-38, %v840
    %v842 = vsel %vm839, %v841, %v837
    %v843 = vmul.f32 1.0, %v842
    %845 = vrot.lane.b32.xlu0 %v822, 64
    %v846 = vpop.permute.xlu0 %845
    %v848 = vmul.f32 %v843, %v846
    %850 = vrot.lane.b32.xlu0 %v848, 64
    %v851 = vpop.permute.xlu0 %850
    %v853 = vadd.f32 %v800, %v851
    %v854 = vtanh.pop %v853
    %v855 = vsub.f32 1.0, %v843
    %857 = vrot.lane.b32.xlu0 %v854, 96
    %v858 = vpop.permute.xlu0 %857
    %v860 = vmul.f32 %v855, %v858
    %v861 = vmul.f32 %v843, %v746
    %v862 = vadd.f32 %v860, %v861
    %864 = vrot.lane.b32.xlu0 %v862, 96
    %v865 = vpop.permute.xlu0 %864
    %s867 = scalar_lea.vmem [#allocation12], 40
    %868 = vst.msk [vmem:[%s867] sm:$0xff] %vm195, %v865
    %s869 = scalar_lea.vmem [#allocation2], 48
    %v870 = vld [vmem:[%s869] sm:$0xff]
    %v872 = vsel %vm167, %v870, 0
    %874 = vmatpush.msra.mxu0 0.0
    %875 = vmatpush.msra.mxu0 0.0
    %876 = vmatpush.msra.mxu0 0.0
    %877 = vmatpush.msra.mxu0 0.0
    %878 = vmatpush.msra.mxu0 0.0
    %879 = vmatpush.msra.mxu0 0.0
    %880 = vmatpush.msra.mxu0 0.0
    %881 = vmatpush.msra.mxu0 0.0
    %882 = vmatpush.msra.mxu0 0.0
    %883 = vmatpush.msra.mxu0 0.0
    %884 = vmatpush.msra.mxu0 0.0
    %885 = vmatpush.msra.mxu0 0.0
    %886 = vmatpush.msra.mxu0 0.0
    %887 = vmatpush.msra.mxu0 0.0
    %888 = vmatpush.msra.mxu0 %v133
    %889 = vmatpush.msra.mxu0 %v132
    %890 = vmatmul.f32.gmra.mxu0 %v872
    %v891 = vpop.f32.mrf.mxu0
    %v892 = vadd.f32 %v165, %v891
    %893 = vdwg.mxu0
    %v894 = vmax.f32 %v892, 0.0
    %v896 = vsel %vm195, %v894, 0
    %898 = vmatpush.msra.mxu0 0.0
    %899 = vmatpush.msra.mxu0 0.0
    %900 = vmatpush.msra.mxu0 0.0
    %901 = vmatpush.msra.mxu0 0.0
    %902 = vmatpush.msra.mxu0 0.0
    %903 = vmatpush.msra.mxu0 0.0
    %904 = vmatpush.msra.mxu0 0.0
    %905 = vmatpush.msra.mxu0 0.0
    %906 = vmatpush.msra.mxu0 0.0
    %907 = vmatpush.msra.mxu0 0.0
    %908 = vmatpush.msra.mxu0 0.0
    %909 = vmatpush.msra.mxu0 0.0
    %910 = vmatpush.msra.mxu0 %v138
    %911 = vmatpush.msra.mxu0 %v137
    %912 = vmatpush.msra.mxu0 %v136
    %913 = vmatpush.msra.mxu0 %v135
    %914 = vmatmul.f32.gmra.mxu0 %v896
    %v915 = vpop.f32.mrf.mxu0
    %v916 = vadd.f32 %v193, %v915
    %917 = vdwg.mxu0
    %v918 = vsel %vm195, %v865, 0
    %920 = vmatpush.msra.mxu0 0.0
    %921 = vmatpush.msra.mxu0 0.0
    %922 = vmatpush.msra.mxu0 0.0
    %923 = vmatpush.msra.mxu0 0.0
    %924 = vmatpush.msra.mxu0 0.0
    %925 = vmatpush.msra.mxu0 0.0
    %926 = vmatpush.msra.mxu0 0.0
    %927 = vmatpush.msra.mxu0 0.0
    %928 = vmatpush.msra.mxu0 0.0
    %929 = vmatpush.msra.mxu0 0.0
    %930 = vmatpush.msra.mxu0 0.0
    %931 = vmatpush.msra.mxu0 0.0
    %932 = vmatpush.msra.mxu0 %v143
    %933 = vmatpush.msra.mxu0 %v142
    %934 = vmatpush.msra.mxu0 %v141
    %935 = vmatpush.msra.mxu0 %v140
    %936 = vmatmul.f32.gmra.mxu0 %v918
    %v937 = vpop.f32.mrf.mxu0
    %v938 = vadd.f32 %v220, %v937
    %939 = vdwg.mxu0
    %v940 = vadd.f32 %v916, %v938
    %v941 = vxor.u32 %v940, 2147483648
    %v942 = vmul.f32 %v941, 1.442695
    %v943 = vpow.pop %v942
    %v944 = vadd.f32 %v943, 1.0
    %v945 = vrcp.pop %v944
    %v946 = vmul.f32 %v944, %v945
    %v947 = vsub.f32 1.0, %v946
    %v948 = vmul.f32 %v945, %v947
    %v949 = vadd.f32 %v945, %v948
    %vm950 = vweird.f32 %v944
    %vm951 = vweird.f32 %v945
    %vm952 = vmor %vm950, %vm951
    %v953 = vsel %vm952, %v945, %v949
    %v954 = vand.u32 2147483647, %v944
    %vm955 = vcmp.eq.f32.partialorder %v954, 8.507059e+37
    %v956 = vand.u32 %v944, 2147483648
    %v957 = vor.u32 1.1754944e-38, %v956
    %v958 = vsel %vm955, %v957, %v953
    %v959 = vmul.f32 1.0, %v958
    %961 = vrot.lane.b32.xlu0 %v938, 64
    %v962 = vpop.permute.xlu0 %961
    %v964 = vmul.f32 %v959, %v962
    %966 = vrot.lane.b32.xlu0 %v964, 64
    %v967 = vpop.permute.xlu0 %966
    %v969 = vadd.f32 %v916, %v967
    %v970 = vtanh.pop %v969
    %v971 = vsub.f32 1.0, %v959
    %973 = vrot.lane.b32.xlu0 %v970, 96
    %v974 = vpop.permute.xlu0 %973
    %v976 = vmul.f32 %v971, %v974
    %v977 = vmul.f32 %v959, %v862
    %v978 = vadd.f32 %v976, %v977
    %980 = vrot.lane.b32.xlu0 %v978, 96
    %v981 = vpop.permute.xlu0 %980
    %s983 = scalar_lea.vmem [#allocation12], 48
    %984 = vst.msk [vmem:[%s983] sm:$0xff] %vm195, %v981
    %s985 = scalar_lea.vmem [#allocation2], 56
    %v986 = vld [vmem:[%s985] sm:$0xff]
    %v988 = vsel %vm167, %v986, 0
    %990 = vmatpush.msra.mxu0 0.0
    %991 = vmatpush.msra.mxu0 0.0
    %992 = vmatpush.msra.mxu0 0.0
    %993 = vmatpush.msra.mxu0 0.0
    %994 = vmatpush.msra.mxu0 0.0
    %995 = vmatpush.msra.mxu0 0.0
    %996 = vmatpush.msra.mxu0 0.0
    %997 = vmatpush.msra.mxu0 0.0
    %998 = vmatpush.msra.mxu0 0.0
    %999 = vmatpush.msra.mxu0 0.0
    %1000 = vmatpush.msra.mxu0 0.0
    %1001 = vmatpush.msra.mxu0 0.0
    %1002 = vmatpush.msra.mxu0 0.0
    %1003 = vmatpush.msra.mxu0 0.0
    %1004 = vmatpush.msra.mxu0 %v133
    %1005 = vmatpush.msra.mxu0 %v132
    %1006 = vmatmul.f32.gmra.mxu0 %v988
    %v1007 = vpop.f32.mrf.mxu0
    %v1008 = vadd.f32 %v165, %v1007
    %1009 = vdwg.mxu0
    %v1010 = vmax.f32 %v1008, 0.0
    %v1012 = vsel %vm195, %v1010, 0
    %1014 = vmatpush.msra.mxu0 0.0
    %1015 = vmatpush.msra.mxu0 0.0
    %1016 = vmatpush.msra.mxu0 0.0
    %1017 = vmatpush.msra.mxu0 0.0
    %1018 = vmatpush.msra.mxu0 0.0
    %1019 = vmatpush.msra.mxu0 0.0
    %1020 = vmatpush.msra.mxu0 0.0
    %1021 = vmatpush.msra.mxu0 0.0
    %1022 = vmatpush.msra.mxu0 0.0
    %1023 = vmatpush.msra.mxu0 0.0
    %1024 = vmatpush.msra.mxu0 0.0
    %1025 = vmatpush.msra.mxu0 0.0
    %1026 = vmatpush.msra.mxu0 %v138
    %1027 = vmatpush.msra.mxu0 %v137
    %1028 = vmatpush.msra.mxu0 %v136
    %1029 = vmatpush.msra.mxu0 %v135
    %1030 = vmatmul.f32.gmra.mxu0 %v1012
    %v1031 = vpop.f32.mrf.mxu0
    %v1032 = vadd.f32 %v193, %v1031
    %1033 = vdwg.mxu0
    %v1034 = vsel %vm195, %v981, 0
    %1036 = vmatpush.msra.mxu0 0.0
    %1037 = vmatpush.msra.mxu0 0.0
    %1038 = vmatpush.msra.mxu0 0.0
    %1039 = vmatpush.msra.mxu0 0.0
    %1040 = vmatpush.msra.mxu0 0.0
    %1041 = vmatpush.msra.mxu0 0.0
    %1042 = vmatpush.msra.mxu0 0.0
    %1043 = vmatpush.msra.mxu0 0.0
    %1044 = vmatpush.msra.mxu0 0.0
    %1045 = vmatpush.msra.mxu0 0.0
    %1046 = vmatpush.msra.mxu0 0.0
    %1047 = vmatpush.msra.mxu0 0.0
    %1048 = vmatpush.msra.mxu0 %v143
    %1049 = vmatpush.msra.mxu0 %v142
    %1050 = vmatpush.msra.mxu0 %v141
    %1051 = vmatpush.msra.mxu0 %v140
    %1052 = vmatmul.f32.gmra.mxu0 %v1034
    %v1053 = vpop.f32.mrf.mxu0
    %v1054 = vadd.f32 %v220, %v1053
    %1055 = vdwg.mxu0
    %v1056 = vadd.f32 %v1032, %v1054
    %v1057 = vxor.u32 %v1056, 2147483648
    %v1058 = vmul.f32 %v1057, 1.442695
    %v1059 = vpow.pop %v1058
    %v1060 = vadd.f32 %v1059, 1.0
    %v1061 = vrcp.pop %v1060
    %v1062 = vmul.f32 %v1060, %v1061
    %v1063 = vsub.f32 1.0, %v1062
    %v1064 = vmul.f32 %v1061, %v1063
    %v1065 = vadd.f32 %v1061, %v1064
    %vm1066 = vweird.f32 %v1060
    %vm1067 = vweird.f32 %v1061
    %vm1068 = vmor %vm1066, %vm1067
    %v1069 = vsel %vm1068, %v1061, %v1065
    %v1070 = vand.u32 2147483647, %v1060
    %vm1071 = vcmp.eq.f32.partialorder %v1070, 8.507059e+37
    %v1072 = vand.u32 %v1060, 2147483648
    %v1073 = vor.u32 1.1754944e-38, %v1072
    %v1074 = vsel %vm1071, %v1073, %v1069
    %v1075 = vmul.f32 1.0, %v1074
    %1077 = vrot.lane.b32.xlu0 %v1054, 64
    %v1078 = vpop.permute.xlu0 %1077
    %v1080 = vmul.f32 %v1075, %v1078
    %1082 = vrot.lane.b32.xlu0 %v1080, 64
    %v1083 = vpop.permute.xlu0 %1082
    %v1085 = vadd.f32 %v1032, %v1083
    %v1086 = vtanh.pop %v1085
    %v1087 = vsub.f32 1.0, %v1075
    %1089 = vrot.lane.b32.xlu0 %v1086, 96
    %v1090 = vpop.permute.xlu0 %1089
    %v1092 = vmul.f32 %v1087, %v1090
    %v1093 = vmul.f32 %v1075, %v978
    %v1094 = vadd.f32 %v1092, %v1093
    %1096 = vrot.lane.b32.xlu0 %v1094, 96
    %v1097 = vpop.permute.xlu0 %1096
    %s1099 = scalar_lea.vmem [#allocation12], 56
    %1100 = vst.msk [vmem:[%s1099] sm:$0xff] %vm195, %v1097
    %v1102 = vperm.slane %v147, 0
    %v1104 = vsel %vm167, 0.0, 0
    %1106 = vmatpush.msra.mxu0 0.0
    %1107 = vmatpush.msra.mxu0 0.0
    %1108 = vmatpush.msra.mxu0 0.0
    %1109 = vmatpush.msra.mxu0 0.0
    %1110 = vmatpush.msra.mxu0 0.0
    %1111 = vmatpush.msra.mxu0 0.0
    %1112 = vmatpush.msra.mxu0 0.0
    %1113 = vmatpush.msra.mxu0 0.0
    %1114 = vmatpush.msra.mxu0 0.0
    %1115 = vmatpush.msra.mxu0 0.0
    %1116 = vmatpush.msra.mxu0 0.0
    %1117 = vmatpush.msra.mxu0 0.0
    %1118 = vmatpush.msra.mxu0 0.0
    %1119 = vmatpush.msra.mxu0 0.0
    %1120 = vmatpush.msra.mxu0 %v146
    %1121 = vmatpush.msra.mxu0 %v145
    %1122 = vmatmul.f32.gmra.mxu0 %v1104
    %v1123 = vpop.f32.mrf.mxu0
    %v1124 = vadd.f32 %v1102, %v1123
    %1125 = vdwg.mxu0
    %v1126 = vmax.f32 %v1124, 0.0
    %v1128 = vperm.slane %v152, 0
    %v1131 = vsel %vm195, %v1126, 0
    %1133 = vmatpush.msra.mxu0 0.0
    %1134 = vmatpush.msra.mxu0 0.0
    %1135 = vmatpush.msra.mxu0 0.0
    %1136 = vmatpush.msra.mxu0 0.0
    %1137 = vmatpush.msra.mxu0 0.0
    %1138 = vmatpush.msra.mxu0 0.0
    %1139 = vmatpush.msra.mxu0 0.0
    %1140 = vmatpush.msra.mxu0 0.0
    %1141 = vmatpush.msra.mxu0 0.0
    %1142 = vmatpush.msra.mxu0 0.0
    %1143 = vmatpush.msra.mxu0 0.0
    %1144 = vmatpush.msra.mxu0 0.0
    %1145 = vmatpush.msra.mxu0 %v151
    %1146 = vmatpush.msra.mxu0 %v150
    %1147 = vmatpush.msra.mxu0 %v149
    %1148 = vmatpush.msra.mxu0 %v148
    %1149 = vmatmul.f32.gmra.mxu0 %v1131
    %v1150 = vpop.f32.mrf.mxu0
    %v1151 = vadd.f32 %v1128, %v1150
    %1152 = vdwg.mxu0
    %v1154 = vperm.slane %v157, 0
    %v1156 = vsel %vm195, %v1097, 0
    %1158 = vmatpush.msra.mxu0 0.0
    %1159 = vmatpush.msra.mxu0 0.0
    %1160 = vmatpush.msra.mxu0 0.0
    %1161 = vmatpush.msra.mxu0 0.0
    %1162 = vmatpush.msra.mxu0 0.0
    %1163 = vmatpush.msra.mxu0 0.0
    %1164 = vmatpush.msra.mxu0 0.0
    %1165 = vmatpush.msra.mxu0 0.0
    %1166 = vmatpush.msra.mxu0 0.0
    %1167 = vmatpush.msra.mxu0 0.0
    %1168 = vmatpush.msra.mxu0 0.0
    %1169 = vmatpush.msra.mxu0 0.0
    %1170 = vmatpush.msra.mxu0 %v156
    %1171 = vmatpush.msra.mxu0 %v155
    %1172 = vmatpush.msra.mxu0 %v154
    %1173 = vmatpush.msra.mxu0 %v153
    %1174 = vmatmul.f32.gmra.mxu0 %v1156
    %v1175 = vpop.f32.mrf.mxu0
    %v1176 = vadd.f32 %v1154, %v1175
    %1177 = vdwg.mxu0
    %v1178 = vadd.f32 %v1151, %v1176
    %v1179 = vxor.u32 %v1178, 2147483648
    %v1180 = vmul.f32 %v1179, 1.442695
    %v1181 = vpow.pop %v1180
    %v1182 = vadd.f32 %v1181, 1.0
    %v1183 = vrcp.pop %v1182
    %v1184 = vmul.f32 %v1182, %v1183
    %v1185 = vsub.f32 1.0, %v1184
    %v1186 = vmul.f32 %v1183, %v1185
    %v1187 = vadd.f32 %v1183, %v1186
    %vm1188 = vweird.f32 %v1182
    %vm1189 = vweird.f32 %v1183
    %vm1190 = vmor %vm1188, %vm1189
    %v1191 = vsel %vm1190, %v1183, %v1187
    %v1192 = vand.u32 2147483647, %v1182
    %vm1193 = vcmp.eq.f32.partialorder %v1192, 8.507059e+37
    %v1194 = vand.u32 %v1182, 2147483648
    %v1195 = vor.u32 1.1754944e-38, %v1194
    %v1196 = vsel %vm1193, %v1195, %v1191
    %v1197 = vmul.f32 1.0, %v1196
    %1199 = vrot.lane.b32.xlu0 %v1176, 64
    %v1200 = vpop.permute.xlu0 %1199
    %v1202 = vmul.f32 %v1197, %v1200
    %1204 = vrot.lane.b32.xlu0 %v1202, 64
    %v1205 = vpop.permute.xlu0 %1204
    %v1207 = vadd.f32 %v1151, %v1205
    %v1208 = vtanh.pop %v1207
    %v1209 = vsub.f32 1.0, %v1197
    %1211 = vrot.lane.b32.xlu0 %v1208, 96
    %v1212 = vpop.permute.xlu0 %1211
    %v1214 = vmul.f32 %v1209, %v1212
    %v1215 = vmul.f32 %v1197, %v1094
    %v1216 = vadd.f32 %v1214, %v1215
    %v1218 = vperm.slane %v162, 0
    %1221 = vrot.lane.b32.xlu0 %v1216, 96
    %v1222 = vpop.permute.xlu0 %1221
    %v1223 = vsel %vm195, %v1222, 0
    %1225 = vmatpush.msra.mxu0 0.0
    %1226 = vmatpush.msra.mxu0 0.0
    %1227 = vmatpush.msra.mxu0 0.0
    %1228 = vmatpush.msra.mxu0 0.0
    %1229 = vmatpush.msra.mxu0 0.0
    %1230 = vmatpush.msra.mxu0 0.0
    %1231 = vmatpush.msra.mxu0 0.0
    %1232 = vmatpush.msra.mxu0 0.0
    %1233 = vmatpush.msra.mxu0 0.0
    %1234 = vmatpush.msra.mxu0 0.0
    %1235 = vmatpush.msra.mxu0 0.0
    %1236 = vmatpush.msra.mxu0 0.0
    %1237 = vmatpush.msra.mxu0 %v161
    %1238 = vmatpush.msra.mxu0 %v160
    %1239 = vmatpush.msra.mxu0 %v159
    %1240 = vmatpush.msra.mxu0 %v158
    %1241 = vmatmul.f32.gmra.mxu0 %v1223
    %v1242 = vpop.f32.mrf.mxu0
    %v1243 = vadd.f32 %v1218, %v1242
    %1244 = vdwg.mxu0
    %1245 = vst.msk [vmem:[#allocation11] sm:$0xff] %vm167, %v1243
    %v1247 = vsel %vm167, %v1243, 0
    %1249 = vmatpush.msra.mxu0 0.0
    %1250 = vmatpush.msra.mxu0 0.0
    %1251 = vmatpush.msra.mxu0 0.0
    %1252 = vmatpush.msra.mxu0 0.0
    %1253 = vmatpush.msra.mxu0 0.0
    %1254 = vmatpush.msra.mxu0 0.0
    %1255 = vmatpush.msra.mxu0 0.0
    %1256 = vmatpush.msra.mxu0 0.0
    %1257 = vmatpush.msra.mxu0 0.0
    %1258 = vmatpush.msra.mxu0 0.0
    %1259 = vmatpush.msra.mxu0 0.0
    %1260 = vmatpush.msra.mxu0 0.0
    %1261 = vmatpush.msra.mxu0 0.0
    %1262 = vmatpush.msra.mxu0 0.0
    %1263 = vmatpush.msra.mxu0 %v146
    %1264 = vmatpush.msra.mxu0 %v145
    %1265 = vmatmul.f32.gmra.mxu0 %v1247
    %v1266 = vpop.f32.mrf.mxu0
    %v1267 = vadd.f32 %v1102, %v1266
    %1268 = vdwg.mxu0
    %v1269 = vmax.f32 %v1267, 0.0
    %v1271 = vsel %vm195, %v1269, 0
    %1273 = vmatpush.msra.mxu0 0.0
    %1274 = vmatpush.msra.mxu0 0.0
    %1275 = vmatpush.msra.mxu0 0.0
    %1276 = vmatpush.msra.mxu0 0.0
    %1277 = vmatpush.msra.mxu0 0.0
    %1278 = vmatpush.msra.mxu0 0.0
    %1279 = vmatpush.msra.mxu0 0.0
    %1280 = vmatpush.msra.mxu0 0.0
    %1281 = vmatpush.msra.mxu0 0.0
    %1282 = vmatpush.msra.mxu0 0.0
    %1283 = vmatpush.msra.mxu0 0.0
    %1284 = vmatpush.msra.mxu0 0.0
    %1285 = vmatpush.msra.mxu0 %v151
    %1286 = vmatpush.msra.mxu0 %v150
    %1287 = vmatpush.msra.mxu0 %v149
    %1288 = vmatpush.msra.mxu0 %v148
    %1289 = vmatmul.f32.gmra.mxu0 %v1271
    %v1290 = vpop.f32.mrf.mxu0
    %v1291 = vadd.f32 %v1128, %v1290
    %1292 = vdwg.mxu0
    %1293 = vmatpush.msra.mxu0 0.0
    %1294 = vmatpush.msra.mxu0 0.0
    %1295 = vmatpush.msra.mxu0 0.0
    %1296 = vmatpush.msra.mxu0 0.0
    %1297 = vmatpush.msra.mxu0 0.0
    %1298 = vmatpush.msra.mxu0 0.0
    %1299 = vmatpush.msra.mxu0 0.0
    %1300 = vmatpush.msra.mxu0 0.0
    %1301 = vmatpush.msra.mxu0 0.0
    %1302 = vmatpush.msra.mxu0 0.0
    %1303 = vmatpush.msra.mxu0 0.0
    %1304 = vmatpush.msra.mxu0 0.0
    %1305 = vmatpush.msra.mxu0 %v156
    %1306 = vmatpush.msra.mxu0 %v155
    %1307 = vmatpush.msra.mxu0 %v154
    %1308 = vmatpush.msra.mxu0 %v153
    %1309 = vmatmul.f32.gmra.mxu0 %v1223
    %v1310 = vpop.f32.mrf.mxu0
    %v1311 = vadd.f32 %v1154, %v1310
    %1312 = vdwg.mxu0
    %v1313 = vadd.f32 %v1291, %v1311
    %v1314 = vxor.u32 %v1313, 2147483648
    %v1315 = vmul.f32 %v1314, 1.442695
    %v1316 = vpow.pop %v1315
    %v1317 = vadd.f32 %v1316, 1.0
    %v1318 = vrcp.pop %v1317
    %v1319 = vmul.f32 %v1317, %v1318
    %v1320 = vsub.f32 1.0, %v1319
    %v1321 = vmul.f32 %v1318, %v1320
    %v1322 = vadd.f32 %v1318, %v1321
    %vm1323 = vweird.f32 %v1317
    %vm1324 = vweird.f32 %v1318
    %vm1325 = vmor %vm1323, %vm1324
    %v1326 = vsel %vm1325, %v1318, %v1322
    %v1327 = vand.u32 2147483647, %v1317
    %vm1328 = vcmp.eq.f32.partialorder %v1327, 8.507059e+37
    %v1329 = vand.u32 %v1317, 2147483648
    %v1330 = vor.u32 1.1754944e-38, %v1329
    %v1331 = vsel %vm1328, %v1330, %v1326
    %v1332 = vmul.f32 1.0, %v1331
    %1334 = vrot.lane.b32.xlu0 %v1311, 64
    %v1335 = vpop.permute.xlu0 %1334
    %v1337 = vmul.f32 %v1332, %v1335
    %1339 = vrot.lane.b32.xlu0 %v1337, 64
    %v1340 = vpop.permute.xlu0 %1339
    %v1342 = vadd.f32 %v1291, %v1340
    %v1343 = vtanh.pop %v1342
    %v1344 = vsub.f32 1.0, %v1332
    %1346 = vrot.lane.b32.xlu0 %v1343, 96
    %v1347 = vpop.permute.xlu0 %1346
    %v1349 = vmul.f32 %v1344, %v1347
    %v1350 = vmul.f32 %v1332, %v1216
    %v1351 = vadd.f32 %v1349, %v1350
    %1353 = vrot.lane.b32.xlu0 %v1351, 96
    %v1354 = vpop.permute.xlu0 %1353
    %v1355 = vsel %vm195, %v1354, 0
    %1357 = vmatpush.msra.mxu0 0.0
    %1358 = vmatpush.msra.mxu0 0.0
    %1359 = vmatpush.msra.mxu0 0.0
    %1360 = vmatpush.msra.mxu0 0.0
    %1361 = vmatpush.msra.mxu0 0.0
    %1362 = vmatpush.msra.mxu0 0.0
    %1363 = vmatpush.msra.mxu0 0.0
    %1364 = vmatpush.msra.mxu0 0.0
    %1365 = vmatpush.msra.mxu0 0.0
    %1366 = vmatpush.msra.mxu0 0.0
    %1367 = vmatpush.msra.mxu0 0.0
    %1368 = vmatpush.msra.mxu0 0.0
    %1369 = vmatpush.msra.mxu0 %v161
    %1370 = vmatpush.msra.mxu0 %v160
    %1371 = vmatpush.msra.mxu0 %v159
    %1372 = vmatpush.msra.mxu0 %v158
    %1373 = vmatmul.f32.gmra.mxu0 %v1355
    %v1374 = vpop.f32.mrf.mxu0
    %v1375 = vadd.f32 %v1218, %v1374
    %1376 = vdwg.mxu0
    %s1377 = scalar_lea.vmem [#allocation11], 8
    %1378 = vst.msk [vmem:[%s1377] sm:$0xff] %vm167, %v1375
    %v1380 = vsel %vm167, %v1375, 0
    %1382 = vmatpush.msra.mxu0 0.0
    %1383 = vmatpush.msra.mxu0 0.0
    %1384 = vmatpush.msra.mxu0 0.0
    %1385 = vmatpush.msra.mxu0 0.0
    %1386 = vmatpush.msra.mxu0 0.0
    %1387 = vmatpush.msra.mxu0 0.0
    %1388 = vmatpush.msra.mxu0 0.0
    %1389 = vmatpush.msra.mxu0 0.0
    %1390 = vmatpush.msra.mxu0 0.0
    %1391 = vmatpush.msra.mxu0 0.0
    %1392 = vmatpush.msra.mxu0 0.0
    %1393 = vmatpush.msra.mxu0 0.0
    %1394 = vmatpush.msra.mxu0 0.0
    %1395 = vmatpush.msra.mxu0 0.0
    %1396 = vmatpush.msra.mxu0 %v146
    %1397 = vmatpush.msra.mxu0 %v145
    %1398 = vmatmul.f32.gmra.mxu0 %v1380
    %v1399 = vpop.f32.mrf.mxu0
    %v1400 = vadd.f32 %v1102, %v1399
    %1401 = vdwg.mxu0
    %v1402 = vmax.f32 %v1400, 0.0
    %v1404 = vsel %vm195, %v1402, 0
    %1406 = vmatpush.msra.mxu0 0.0
    %1407 = vmatpush.msra.mxu0 0.0
    %1408 = vmatpush.msra.mxu0 0.0
    %1409 = vmatpush.msra.mxu0 0.0
    %1410 = vmatpush.msra.mxu0 0.0
    %1411 = vmatpush.msra.mxu0 0.0
    %1412 = vmatpush.msra.mxu0 0.0
    %1413 = vmatpush.msra.mxu0 0.0
    %1414 = vmatpush.msra.mxu0 0.0
    %1415 = vmatpush.msra.mxu0 0.0
    %1416 = vmatpush.msra.mxu0 0.0
    %1417 = vmatpush.msra.mxu0 0.0
    %1418 = vmatpush.msra.mxu0 %v151
    %1419 = vmatpush.msra.mxu0 %v150
    %1420 = vmatpush.msra.mxu0 %v149
    %1421 = vmatpush.msra.mxu0 %v148
    %1422 = vmatmul.f32.gmra.mxu0 %v1404
    %v1423 = vpop.f32.mrf.mxu0
    %v1424 = vadd.f32 %v1128, %v1423
    %1425 = vdwg.mxu0
    %1426 = vmatpush.msra.mxu0 0.0
    %1427 = vmatpush.msra.mxu0 0.0
    %1428 = vmatpush.msra.mxu0 0.0
    %1429 = vmatpush.msra.mxu0 0.0
    %1430 = vmatpush.msra.mxu0 0.0
    %1431 = vmatpush.msra.mxu0 0.0
    %1432 = vmatpush.msra.mxu0 0.0
    %1433 = vmatpush.msra.mxu0 0.0
    %1434 = vmatpush.msra.mxu0 0.0
    %1435 = vmatpush.msra.mxu0 0.0
    %1436 = vmatpush.msra.mxu0 0.0
    %1437 = vmatpush.msra.mxu0 0.0
    %1438 = vmatpush.msra.mxu0 %v156
    %1439 = vmatpush.msra.mxu0 %v155
    %1440 = vmatpush.msra.mxu0 %v154
    %1441 = vmatpush.msra.mxu0 %v153
    %1442 = vmatmul.f32.gmra.mxu0 %v1355
    %v1443 = vpop.f32.mrf.mxu0
    %v1444 = vadd.f32 %v1154, %v1443
    %1445 = vdwg.mxu0
    %v1446 = vadd.f32 %v1424, %v1444
    %v1447 = vxor.u32 %v1446, 2147483648
    %v1448 = vmul.f32 %v1447, 1.442695
    %v1449 = vpow.pop %v1448
    %v1450 = vadd.f32 %v1449, 1.0
    %v1451 = vrcp.pop %v1450
    %v1452 = vmul.f32 %v1450, %v1451
    %v1453 = vsub.f32 1.0, %v1452
    %v1454 = vmul.f32 %v1451, %v1453
    %v1455 = vadd.f32 %v1451, %v1454
    %vm1456 = vweird.f32 %v1450
    %vm1457 = vweird.f32 %v1451
    %vm1458 = vmor %vm1456, %vm1457
    %v1459 = vsel %vm1458, %v1451, %v1455
    %v1460 = vand.u32 2147483647, %v1450
    %vm1461 = vcmp.eq.f32.partialorder %v1460, 8.507059e+37
    %v1462 = vand.u32 %v1450, 2147483648
    %v1463 = vor.u32 1.1754944e-38, %v1462
    %v1464 = vsel %vm1461, %v1463, %v1459
    %v1465 = vmul.f32 1.0, %v1464
    %1467 = vrot.lane.b32.xlu0 %v1444, 64
    %v1468 = vpop.permute.xlu0 %1467
    %v1470 = vmul.f32 %v1465, %v1468
    %1472 = vrot.lane.b32.xlu0 %v1470, 64
    %v1473 = vpop.permute.xlu0 %1472
    %v1475 = vadd.f32 %v1424, %v1473
    %v1476 = vtanh.pop %v1475
    %v1477 = vsub.f32 1.0, %v1465
    %1479 = vrot.lane.b32.xlu0 %v1476, 96
    %v1480 = vpop.permute.xlu0 %1479
    %v1482 = vmul.f32 %v1477, %v1480
    %v1483 = vmul.f32 %v1465, %v1351
    %v1484 = vadd.f32 %v1482, %v1483
    %1486 = vrot.lane.b32.xlu0 %v1484, 96
    %v1487 = vpop.permute.xlu0 %1486
    %v1488 = vsel %vm195, %v1487, 0
    %1490 = vmatpush.msra.mxu0 0.0
    %1491 = vmatpush.msra.mxu0 0.0
    %1492 = vmatpush.msra.mxu0 0.0
    %1493 = vmatpush.msra.mxu0 0.0
    %1494 = vmatpush.msra.mxu0 0.0
    %1495 = vmatpush.msra.mxu0 0.0
    %1496 = vmatpush.msra.mxu0 0.0
    %1497 = vmatpush.msra.mxu0 0.0
    %1498 = vmatpush.msra.mxu0 0.0
    %1499 = vmatpush.msra.mxu0 0.0
    %1500 = vmatpush.msra.mxu0 0.0
    %1501 = vmatpush.msra.mxu0 0.0
    %1502 = vmatpush.msra.mxu0 %v161
    %1503 = vmatpush.msra.mxu0 %v160
    %1504 = vmatpush.msra.mxu0 %v159
    %1505 = vmatpush.msra.mxu0 %v158
    %1506 = vmatmul.f32.gmra.mxu0 %v1488
    %v1507 = vpop.f32.mrf.mxu0
    %v1508 = vadd.f32 %v1218, %v1507
    %1509 = vdwg.mxu0
    %s1510 = scalar_lea.vmem [#allocation11], 16
    %1511 = vst.msk [vmem:[%s1510] sm:$0xff] %vm167, %v1508
    %v1513 = vsel %vm167, %v1508, 0
    %1515 = vmatpush.msra.mxu0 0.0
    %1516 = vmatpush.msra.mxu0 0.0
    %1517 = vmatpush.msra.mxu0 0.0
    %1518 = vmatpush.msra.mxu0 0.0
    %1519 = vmatpush.msra.mxu0 0.0
    %1520 = vmatpush.msra.mxu0 0.0
    %1521 = vmatpush.msra.mxu0 0.0
    %1522 = vmatpush.msra.mxu0 0.0
    %1523 = vmatpush.msra.mxu0 0.0
    %1524 = vmatpush.msra.mxu0 0.0
    %1525 = vmatpush.msra.mxu0 0.0
    %1526 = vmatpush.msra.mxu0 0.0
    %1527 = vmatpush.msra.mxu0 0.0
    %1528 = vmatpush.msra.mxu0 0.0
    %1529 = vmatpush.msra.mxu0 %v146
    %1530 = vmatpush.msra.mxu0 %v145
    %1531 = vmatmul.f32.gmra.mxu0 %v1513
    %v1532 = vpop.f32.mrf.mxu0
    %v1533 = vadd.f32 %v1102, %v1532
    %1534 = vdwg.mxu0
    %v1535 = vmax.f32 %v1533, 0.0
    %v1537 = vsel %vm195, %v1535, 0
    %1539 = vmatpush.msra.mxu0 0.0
    %1540 = vmatpush.msra.mxu0 0.0
    %1541 = vmatpush.msra.mxu0 0.0
    %1542 = vmatpush.msra.mxu0 0.0
    %1543 = vmatpush.msra.mxu0 0.0
    %1544 = vmatpush.msra.mxu0 0.0
    %1545 = vmatpush.msra.mxu0 0.0
    %1546 = vmatpush.msra.mxu0 0.0
    %1547 = vmatpush.msra.mxu0 0.0
    %1548 = vmatpush.msra.mxu0 0.0
    %1549 = vmatpush.msra.mxu0 0.0
    %1550 = vmatpush.msra.mxu0 0.0
    %1551 = vmatpush.msra.mxu0 %v151
    %1552 = vmatpush.msra.mxu0 %v150
    %1553 = vmatpush.msra.mxu0 %v149
    %1554 = vmatpush.msra.mxu0 %v148
    %1555 = vmatmul.f32.gmra.mxu0 %v1537
    %v1556 = vpop.f32.mrf.mxu0
    %v1557 = vadd.f32 %v1128, %v1556
    %1558 = vdwg.mxu0
    %1559 = vmatpush.msra.mxu0 0.0
    %1560 = vmatpush.msra.mxu0 0.0
    %1561 = vmatpush.msra.mxu0 0.0
    %1562 = vmatpush.msra.mxu0 0.0
    %1563 = vmatpush.msra.mxu0 0.0
    %1564 = vmatpush.msra.mxu0 0.0
    %1565 = vmatpush.msra.mxu0 0.0
    %1566 = vmatpush.msra.mxu0 0.0
    %1567 = vmatpush.msra.mxu0 0.0
    %1568 = vmatpush.msra.mxu0 0.0
    %1569 = vmatpush.msra.mxu0 0.0
    %1570 = vmatpush.msra.mxu0 0.0
    %1571 = vmatpush.msra.mxu0 %v156
    %1572 = vmatpush.msra.mxu0 %v155
    %1573 = vmatpush.msra.mxu0 %v154
    %1574 = vmatpush.msra.mxu0 %v153
    %1575 = vmatmul.f32.gmra.mxu0 %v1488
    %v1576 = vpop.f32.mrf.mxu0
    %v1577 = vadd.f32 %v1154, %v1576
    %1578 = vdwg.mxu0
    %v1579 = vadd.f32 %v1557, %v1577
    %v1580 = vxor.u32 %v1579, 2147483648
    %v1581 = vmul.f32 %v1580, 1.442695
    %v1582 = vpow.pop %v1581
    %v1583 = vadd.f32 %v1582, 1.0
    %v1584 = vrcp.pop %v1583
    %v1585 = vmul.f32 %v1583, %v1584
    %v1586 = vsub.f32 1.0, %v1585
    %v1587 = vmul.f32 %v1584, %v1586
    %v1588 = vadd.f32 %v1584, %v1587
    %vm1589 = vweird.f32 %v1583
    %vm1590 = vweird.f32 %v1584
    %vm1591 = vmor %vm1589, %vm1590
    %v1592 = vsel %vm1591, %v1584, %v1588
    %v1593 = vand.u32 2147483647, %v1583
    %vm1594 = vcmp.eq.f32.partialorder %v1593, 8.507059e+37
    %v1595 = vand.u32 %v1583, 2147483648
    %v1596 = vor.u32 1.1754944e-38, %v1595
    %v1597 = vsel %vm1594, %v1596, %v1592
    %v1598 = vmul.f32 1.0, %v1597
    %1600 = vrot.lane.b32.xlu0 %v1577, 64
    %v1601 = vpop.permute.xlu0 %1600
    %v1603 = vmul.f32 %v1598, %v1601
    %1605 = vrot.lane.b32.xlu0 %v1603, 64
    %v1606 = vpop.permute.xlu0 %1605
    %v1608 = vadd.f32 %v1557, %v1606
    %v1609 = vtanh.pop %v1608
    %v1610 = vsub.f32 1.0, %v1598
    %1612 = vrot.lane.b32.xlu0 %v1609, 96
    %v1613 = vpop.permute.xlu0 %1612
    %v1615 = vmul.f32 %v1610, %v1613
    %v1616 = vmul.f32 %v1598, %v1484
    %v1617 = vadd.f32 %v1615, %v1616
    %1619 = vrot.lane.b32.xlu0 %v1617, 96
    %v1620 = vpop.permute.xlu0 %1619
    %v1621 = vsel %vm195, %v1620, 0
    %1623 = vmatpush.msra.mxu0 0.0
    %1624 = vmatpush.msra.mxu0 0.0
    %1625 = vmatpush.msra.mxu0 0.0
    %1626 = vmatpush.msra.mxu0 0.0
    %1627 = vmatpush.msra.mxu0 0.0
    %1628 = vmatpush.msra.mxu0 0.0
    %1629 = vmatpush.msra.mxu0 0.0
    %1630 = vmatpush.msra.mxu0 0.0
    %1631 = vmatpush.msra.mxu0 0.0
    %1632 = vmatpush.msra.mxu0 0.0
    %1633 = vmatpush.msra.mxu0 0.0
    %1634 = vmatpush.msra.mxu0 0.0
    %1635 = vmatpush.msra.mxu0 %v161
    %1636 = vmatpush.msra.mxu0 %v160
    %1637 = vmatpush.msra.mxu0 %v159
    %1638 = vmatpush.msra.mxu0 %v158
    %1639 = vmatmul.f32.gmra.mxu0 %v1621
    %v1640 = vpop.f32.mrf.mxu0
    %v1641 = vadd.f32 %v1218, %v1640
    %1642 = vdwg.mxu0
    %s1643 = scalar_lea.vmem [#allocation11], 24
    %1644 = vst.msk [vmem:[%s1643] sm:$0xff] %vm167, %v1641
    %v1646 = vsel %vm167, %v1641, 0
    %1648 = vmatpush.msra.mxu0 0.0
    %1649 = vmatpush.msra.mxu0 0.0
    %1650 = vmatpush.msra.mxu0 0.0
    %1651 = vmatpush.msra.mxu0 0.0
    %1652 = vmatpush.msra.mxu0 0.0
    %1653 = vmatpush.msra.mxu0 0.0
    %1654 = vmatpush.msra.mxu0 0.0
    %1655 = vmatpush.msra.mxu0 0.0
    %1656 = vmatpush.msra.mxu0 0.0
    %1657 = vmatpush.msra.mxu0 0.0
    %1658 = vmatpush.msra.mxu0 0.0
    %1659 = vmatpush.msra.mxu0 0.0
    %1660 = vmatpush.msra.mxu0 0.0
    %1661 = vmatpush.msra.mxu0 0.0
    %1662 = vmatpush.msra.mxu0 %v146
    %1663 = vmatpush.msra.mxu0 %v145
    %1664 = vmatmul.f32.gmra.mxu0 %v1646
    %v1665 = vpop.f32.mrf.mxu0
    %v1666 = vadd.f32 %v1102, %v1665
    %1667 = vdwg.mxu0
    %v1668 = vmax.f32 %v1666, 0.0
    %v1670 = vsel %vm195, %v1668, 0
    %1672 = vmatpush.msra.mxu0 0.0
    %1673 = vmatpush.msra.mxu0 0.0
    %1674 = vmatpush.msra.mxu0 0.0
    %1675 = vmatpush.msra.mxu0 0.0
    %1676 = vmatpush.msra.mxu0 0.0
    %1677 = vmatpush.msra.mxu0 0.0
    %1678 = vmatpush.msra.mxu0 0.0
    %1679 = vmatpush.msra.mxu0 0.0
    %1680 = vmatpush.msra.mxu0 0.0
    %1681 = vmatpush.msra.mxu0 0.0
    %1682 = vmatpush.msra.mxu0 0.0
    %1683 = vmatpush.msra.mxu0 0.0
    %1684 = vmatpush.msra.mxu0 %v151
    %1685 = vmatpush.msra.mxu0 %v150
    %1686 = vmatpush.msra.mxu0 %v149
    %1687 = vmatpush.msra.mxu0 %v148
    %1688 = vmatmul.f32.gmra.mxu0 %v1670
    %v1689 = vpop.f32.mrf.mxu0
    %v1690 = vadd.f32 %v1128, %v1689
    %1691 = vdwg.mxu0
    %1692 = vmatpush.msra.mxu0 0.0
    %1693 = vmatpush.msra.mxu0 0.0
    %1694 = vmatpush.msra.mxu0 0.0
    %1695 = vmatpush.msra.mxu0 0.0
    %1696 = vmatpush.msra.mxu0 0.0
    %1697 = vmatpush.msra.mxu0 0.0
    %1698 = vmatpush.msra.mxu0 0.0
    %1699 = vmatpush.msra.mxu0 0.0
    %1700 = vmatpush.msra.mxu0 0.0
    %1701 = vmatpush.msra.mxu0 0.0
    %1702 = vmatpush.msra.mxu0 0.0
    %1703 = vmatpush.msra.mxu0 0.0
    %1704 = vmatpush.msra.mxu0 %v156
    %1705 = vmatpush.msra.mxu0 %v155
    %1706 = vmatpush.msra.mxu0 %v154
    %1707 = vmatpush.msra.mxu0 %v153
    %1708 = vmatmul.f32.gmra.mxu0 %v1621
    %v1709 = vpop.f32.mrf.mxu0
    %v1710 = vadd.f32 %v1154, %v1709
    %1711 = vdwg.mxu0
    %v1712 = vadd.f32 %v1690, %v1710
    %v1713 = vxor.u32 %v1712, 2147483648
    %v1714 = vmul.f32 %v1713, 1.442695
    %v1715 = vpow.pop %v1714
    %v1716 = vadd.f32 %v1715, 1.0
    %v1717 = vrcp.pop %v1716
    %v1718 = vmul.f32 %v1716, %v1717
    %v1719 = vsub.f32 1.0, %v1718
    %v1720 = vmul.f32 %v1717, %v1719
    %v1721 = vadd.f32 %v1717, %v1720
    %vm1722 = vweird.f32 %v1716
    %vm1723 = vweird.f32 %v1717
    %vm1724 = vmor %vm1722, %vm1723
    %v1725 = vsel %vm1724, %v1717, %v1721
    %v1726 = vand.u32 2147483647, %v1716
    %vm1727 = vcmp.eq.f32.partialorder %v1726, 8.507059e+37
    %v1728 = vand.u32 %v1716, 2147483648
    %v1729 = vor.u32 1.1754944e-38, %v1728
    %v1730 = vsel %vm1727, %v1729, %v1725
    %v1731 = vmul.f32 1.0, %v1730
    %1733 = vrot.lane.b32.xlu0 %v1710, 64
    %v1734 = vpop.permute.xlu0 %1733
    %v1736 = vmul.f32 %v1731, %v1734
    %1738 = vrot.lane.b32.xlu0 %v1736, 64
    %v1739 = vpop.permute.xlu0 %1738
    %v1741 = vadd.f32 %v1690, %v1739
    %v1742 = vtanh.pop %v1741
    %v1743 = vsub.f32 1.0, %v1731
    %1745 = vrot.lane.b32.xlu0 %v1742, 96
    %v1746 = vpop.permute.xlu0 %1745
    %v1748 = vmul.f32 %v1743, %v1746
    %v1749 = vmul.f32 %v1731, %v1617
    %v1750 = vadd.f32 %v1748, %v1749
    %1752 = vrot.lane.b32.xlu0 %v1750, 96
    %v1753 = vpop.permute.xlu0 %1752
    %v1754 = vsel %vm195, %v1753, 0
    %1756 = vmatpush.msra.mxu0 0.0
    %1757 = vmatpush.msra.mxu0 0.0
    %1758 = vmatpush.msra.mxu0 0.0
    %1759 = vmatpush.msra.mxu0 0.0
    %1760 = vmatpush.msra.mxu0 0.0
    %1761 = vmatpush.msra.mxu0 0.0
    %1762 = vmatpush.msra.mxu0 0.0
    %1763 = vmatpush.msra.mxu0 0.0
    %1764 = vmatpush.msra.mxu0 0.0
    %1765 = vmatpush.msra.mxu0 0.0
    %1766 = vmatpush.msra.mxu0 0.0
    %1767 = vmatpush.msra.mxu0 0.0
    %1768 = vmatpush.msra.mxu0 %v161
    %1769 = vmatpush.msra.mxu0 %v160
    %1770 = vmatpush.msra.mxu0 %v159
    %1771 = vmatpush.msra.mxu0 %v158
    %1772 = vmatmul.f32.gmra.mxu0 %v1754
    %v1773 = vpop.f32.mrf.mxu0
    %v1774 = vadd.f32 %v1218, %v1773
    %1775 = vdwg.mxu0
    %s1776 = scalar_lea.vmem [#allocation11], 32
    %1777 = vst.msk [vmem:[%s1776] sm:$0xff] %vm167, %v1774
    %v1779 = vsel %vm167, %v1774, 0
    %1781 = vmatpush.msra.mxu0 0.0
    %1782 = vmatpush.msra.mxu0 0.0
    %1783 = vmatpush.msra.mxu0 0.0
    %1784 = vmatpush.msra.mxu0 0.0
    %1785 = vmatpush.msra.mxu0 0.0
    %1786 = vmatpush.msra.mxu0 0.0
    %1787 = vmatpush.msra.mxu0 0.0
    %1788 = vmatpush.msra.mxu0 0.0
    %1789 = vmatpush.msra.mxu0 0.0
    %1790 = vmatpush.msra.mxu0 0.0
    %1791 = vmatpush.msra.mxu0 0.0
    %1792 = vmatpush.msra.mxu0 0.0
    %1793 = vmatpush.msra.mxu0 0.0
    %1794 = vmatpush.msra.mxu0 0.0
    %1795 = vmatpush.msra.mxu0 %v146
    %1796 = vmatpush.msra.mxu0 %v145
    %1797 = vmatmul.f32.gmra.mxu0 %v1779
    %v1798 = vpop.f32.mrf.mxu0
    %v1799 = vadd.f32 %v1102, %v1798
    %1800 = vdwg.mxu0
    %v1801 = vmax.f32 %v1799, 0.0
    %v1803 = vsel %vm195, %v1801, 0
    %1805 = vmatpush.msra.mxu0 0.0
    %1806 = vmatpush.msra.mxu0 0.0
    %1807 = vmatpush.msra.mxu0 0.0
    %1808 = vmatpush.msra.mxu0 0.0
    %1809 = vmatpush.msra.mxu0 0.0
    %1810 = vmatpush.msra.mxu0 0.0
    %1811 = vmatpush.msra.mxu0 0.0
    %1812 = vmatpush.msra.mxu0 0.0
    %1813 = vmatpush.msra.mxu0 0.0
    %1814 = vmatpush.msra.mxu0 0.0
    %1815 = vmatpush.msra.mxu0 0.0
    %1816 = vmatpush.msra.mxu0 0.0
    %1817 = vmatpush.msra.mxu0 %v151
    %1818 = vmatpush.msra.mxu0 %v150
    %1819 = vmatpush.msra.mxu0 %v149
    %1820 = vmatpush.msra.mxu0 %v148
    %1821 = vmatmul.f32.gmra.mxu0 %v1803
    %v1822 = vpop.f32.mrf.mxu0
    %v1823 = vadd.f32 %v1128, %v1822
    %1824 = vdwg.mxu0
    %1825 = vmatpush.msra.mxu0 0.0
    %1826 = vmatpush.msra.mxu0 0.0
    %1827 = vmatpush.msra.mxu0 0.0
    %1828 = vmatpush.msra.mxu0 0.0
    %1829 = vmatpush.msra.mxu0 0.0
    %1830 = vmatpush.msra.mxu0 0.0
    %1831 = vmatpush.msra.mxu0 0.0
    %1832 = vmatpush.msra.mxu0 0.0
    %1833 = vmatpush.msra.mxu0 0.0
    %1834 = vmatpush.msra.mxu0 0.0
    %1835 = vmatpush.msra.mxu0 0.0
    %1836 = vmatpush.msra.mxu0 0.0
    %1837 = vmatpush.msra.mxu0 %v156
    %1838 = vmatpush.msra.mxu0 %v155
    %1839 = vmatpush.msra.mxu0 %v154
    %1840 = vmatpush.msra.mxu0 %v153
    %1841 = vmatmul.f32.gmra.mxu0 %v1754
    %v1842 = vpop.f32.mrf.mxu0
    %v1843 = vadd.f32 %v1154, %v1842
    %1844 = vdwg.mxu0
    %v1845 = vadd.f32 %v1823, %v1843
    %v1846 = vxor.u32 %v1845, 2147483648
    %v1847 = vmul.f32 %v1846, 1.442695
    %v1848 = vpow.pop %v1847
    %v1849 = vadd.f32 %v1848, 1.0
    %v1850 = vrcp.pop %v1849
    %v1851 = vmul.f32 %v1849, %v1850
    %v1852 = vsub.f32 1.0, %v1851
    %v1853 = vmul.f32 %v1850, %v1852
    %v1854 = vadd.f32 %v1850, %v1853
    %vm1855 = vweird.f32 %v1849
    %vm1856 = vweird.f32 %v1850
    %vm1857 = vmor %vm1855, %vm1856
    %v1858 = vsel %vm1857, %v1850, %v1854
    %v1859 = vand.u32 2147483647, %v1849
    %vm1860 = vcmp.eq.f32.partialorder %v1859, 8.507059e+37
    %v1861 = vand.u32 %v1849, 2147483648
    %v1862 = vor.u32 1.1754944e-38, %v1861
    %v1863 = vsel %vm1860, %v1862, %v1858
    %v1864 = vmul.f32 1.0, %v1863
    %1866 = vrot.lane.b32.xlu0 %v1843, 64
    %v1867 = vpop.permute.xlu0 %1866
    %v1869 = vmul.f32 %v1864, %v1867
    %1871 = vrot.lane.b32.xlu0 %v1869, 64
    %v1872 = vpop.permute.xlu0 %1871
    %v1874 = vadd.f32 %v1823, %v1872
    %v1875 = vtanh.pop %v1874
    %v1876 = vsub.f32 1.0, %v1864
    %1878 = vrot.lane.b32.xlu0 %v1875, 96
    %v1879 = vpop.permute.xlu0 %1878
    %v1881 = vmul.f32 %v1876, %v1879
    %v1882 = vmul.f32 %v1864, %v1750
    %v1883 = vadd.f32 %v1881, %v1882
    %1885 = vrot.lane.b32.xlu0 %v1883, 96
    %v1886 = vpop.permute.xlu0 %1885
    %v1887 = vsel %vm195, %v1886, 0
    %1889 = vmatpush.msra.mxu0 0.0
    %1890 = vmatpush.msra.mxu0 0.0
    %1891 = vmatpush.msra.mxu0 0.0
    %1892 = vmatpush.msra.mxu0 0.0
    %1893 = vmatpush.msra.mxu0 0.0
    %1894 = vmatpush.msra.mxu0 0.0
    %1895 = vmatpush.msra.mxu0 0.0
    %1896 = vmatpush.msra.mxu0 0.0
    %1897 = vmatpush.msra.mxu0 0.0
    %1898 = vmatpush.msra.mxu0 0.0
    %1899 = vmatpush.msra.mxu0 0.0
    %1900 = vmatpush.msra.mxu0 0.0
    %1901 = vmatpush.msra.mxu0 %v161
    %1902 = vmatpush.msra.mxu0 %v160
    %1903 = vmatpush.msra.mxu0 %v159
    %1904 = vmatpush.msra.mxu0 %v158
    %1905 = vmatmul.f32.gmra.mxu0 %v1887
    %v1906 = vpop.f32.mrf.mxu0
    %v1907 = vadd.f32 %v1218, %v1906
    %1908 = vdwg.mxu0
    %s1909 = scalar_lea.vmem [#allocation11], 40
    %1910 = vst.msk [vmem:[%s1909] sm:$0xff] %vm167, %v1907
    %v1912 = vsel %vm167, %v1907, 0
    %1914 = vmatpush.msra.mxu0 0.0
    %1915 = vmatpush.msra.mxu0 0.0
    %1916 = vmatpush.msra.mxu0 0.0
    %1917 = vmatpush.msra.mxu0 0.0
    %1918 = vmatpush.msra.mxu0 0.0
    %1919 = vmatpush.msra.mxu0 0.0
    %1920 = vmatpush.msra.mxu0 0.0
    %1921 = vmatpush.msra.mxu0 0.0
    %1922 = vmatpush.msra.mxu0 0.0
    %1923 = vmatpush.msra.mxu0 0.0
    %1924 = vmatpush.msra.mxu0 0.0
    %1925 = vmatpush.msra.mxu0 0.0
    %1926 = vmatpush.msra.mxu0 0.0
    %1927 = vmatpush.msra.mxu0 0.0
    %1928 = vmatpush.msra.mxu0 %v146
    %1929 = vmatpush.msra.mxu0 %v145
    %1930 = vmatmul.f32.gmra.mxu0 %v1912
    %v1931 = vpop.f32.mrf.mxu0
    %v1932 = vadd.f32 %v1102, %v1931
    %1933 = vdwg.mxu0
    %v1934 = vmax.f32 %v1932, 0.0
    %v1936 = vsel %vm195, %v1934, 0
    %1938 = vmatpush.msra.mxu0 0.0
    %1939 = vmatpush.msra.mxu0 0.0
    %1940 = vmatpush.msra.mxu0 0.0
    %1941 = vmatpush.msra.mxu0 0.0
    %1942 = vmatpush.msra.mxu0 0.0
    %1943 = vmatpush.msra.mxu0 0.0
    %1944 = vmatpush.msra.mxu0 0.0
    %1945 = vmatpush.msra.mxu0 0.0
    %1946 = vmatpush.msra.mxu0 0.0
    %1947 = vmatpush.msra.mxu0 0.0
    %1948 = vmatpush.msra.mxu0 0.0
    %1949 = vmatpush.msra.mxu0 0.0
    %1950 = vmatpush.msra.mxu0 %v151
    %1951 = vmatpush.msra.mxu0 %v150
    %1952 = vmatpush.msra.mxu0 %v149
    %1953 = vmatpush.msra.mxu0 %v148
    %1954 = vmatmul.f32.gmra.mxu0 %v1936
    %v1955 = vpop.f32.mrf.mxu0
    %v1956 = vadd.f32 %v1128, %v1955
    %1957 = vdwg.mxu0
    %1958 = vmatpush.msra.mxu0 0.0
    %1959 = vmatpush.msra.mxu0 0.0
    %1960 = vmatpush.msra.mxu0 0.0
    %1961 = vmatpush.msra.mxu0 0.0
    %1962 = vmatpush.msra.mxu0 0.0
    %1963 = vmatpush.msra.mxu0 0.0
    %1964 = vmatpush.msra.mxu0 0.0
    %1965 = vmatpush.msra.mxu0 0.0
    %1966 = vmatpush.msra.mxu0 0.0
    %1967 = vmatpush.msra.mxu0 0.0
    %1968 = vmatpush.msra.mxu0 0.0
    %1969 = vmatpush.msra.mxu0 0.0
    %1970 = vmatpush.msra.mxu0 %v156
    %1971 = vmatpush.msra.mxu0 %v155
    %1972 = vmatpush.msra.mxu0 %v154
    %1973 = vmatpush.msra.mxu0 %v153
    %1974 = vmatmul.f32.gmra.mxu0 %v1887
    %v1975 = vpop.f32.mrf.mxu0
    %v1976 = vadd.f32 %v1154, %v1975
    %1977 = vdwg.mxu0
    %v1978 = vadd.f32 %v1956, %v1976
    %v1979 = vxor.u32 %v1978, 2147483648
    %v1980 = vmul.f32 %v1979, 1.442695
    %v1981 = vpow.pop %v1980
    %v1982 = vadd.f32 %v1981, 1.0
    %v1983 = vrcp.pop %v1982
    %v1984 = vmul.f32 %v1982, %v1983
    %v1985 = vsub.f32 1.0, %v1984
    %v1986 = vmul.f32 %v1983, %v1985
    %v1987 = vadd.f32 %v1983, %v1986
    %vm1988 = vweird.f32 %v1982
    %vm1989 = vweird.f32 %v1983
    %vm1990 = vmor %vm1988, %vm1989
    %v1991 = vsel %vm1990, %v1983, %v1987
    %v1992 = vand.u32 2147483647, %v1982
    %vm1993 = vcmp.eq.f32.partialorder %v1992, 8.507059e+37
    %v1994 = vand.u32 %v1982, 2147483648
    %v1995 = vor.u32 1.1754944e-38, %v1994
    %v1996 = vsel %vm1993, %v1995, %v1991
    %v1997 = vmul.f32 1.0, %v1996
    %1999 = vrot.lane.b32.xlu0 %v1976, 64
    %v2000 = vpop.permute.xlu0 %1999
    %v2002 = vmul.f32 %v1997, %v2000
    %2004 = vrot.lane.b32.xlu0 %v2002, 64
    %v2005 = vpop.permute.xlu0 %2004
    %v2007 = vadd.f32 %v1956, %v2005
    %v2008 = vtanh.pop %v2007
    %v2009 = vsub.f32 1.0, %v1997
    %2011 = vrot.lane.b32.xlu0 %v2008, 96
    %v2012 = vpop.permute.xlu0 %2011
    %v2014 = vmul.f32 %v2009, %v2012
    %v2015 = vmul.f32 %v1997, %v1883
    %v2016 = vadd.f32 %v2014, %v2015
    %2018 = vrot.lane.b32.xlu0 %v2016, 96
    %v2019 = vpop.permute.xlu0 %2018
    %v2020 = vsel %vm195, %v2019, 0
    %2022 = vmatpush.msra.mxu0 0.0
    %2023 = vmatpush.msra.mxu0 0.0
    %2024 = vmatpush.msra.mxu0 0.0
    %2025 = vmatpush.msra.mxu0 0.0
    %2026 = vmatpush.msra.mxu0 0.0
    %2027 = vmatpush.msra.mxu0 0.0
    %2028 = vmatpush.msra.mxu0 0.0
    %2029 = vmatpush.msra.mxu0 0.0
    %2030 = vmatpush.msra.mxu0 0.0
    %2031 = vmatpush.msra.mxu0 0.0
    %2032 = vmatpush.msra.mxu0 0.0
    %2033 = vmatpush.msra.mxu0 0.0
    %2034 = vmatpush.msra.mxu0 %v161
    %2035 = vmatpush.msra.mxu0 %v160
    %2036 = vmatpush.msra.mxu0 %v159
    %2037 = vmatpush.msra.mxu0 %v158
    %2038 = vmatmul.f32.gmra.mxu0 %v2020
    %v2039 = vpop.f32.mrf.mxu0
    %v2040 = vadd.f32 %v1218, %v2039
    %2041 = vdwg.mxu0
    %s2042 = scalar_lea.vmem [#allocation11], 48
    %2043 = vst.msk [vmem:[%s2042] sm:$0xff] %vm167, %v2040
    %v2045 = vsel %vm167, %v2040, 0
    %2047 = vmatpush.msra.mxu0 0.0
    %2048 = vmatpush.msra.mxu0 0.0
    %2049 = vmatpush.msra.mxu0 0.0
    %2050 = vmatpush.msra.mxu0 0.0
    %2051 = vmatpush.msra.mxu0 0.0
    %2052 = vmatpush.msra.mxu0 0.0
    %2053 = vmatpush.msra.mxu0 0.0
    %2054 = vmatpush.msra.mxu0 0.0
    %2055 = vmatpush.msra.mxu0 0.0
    %2056 = vmatpush.msra.mxu0 0.0
    %2057 = vmatpush.msra.mxu0 0.0
    %2058 = vmatpush.msra.mxu0 0.0
    %2059 = vmatpush.msra.mxu0 0.0
    %2060 = vmatpush.msra.mxu0 0.0
    %2061 = vmatpush.msra.mxu0 %v146
    %2062 = vmatpush.msra.mxu0 %v145
    %2063 = vmatmul.f32.gmra.mxu0 %v2045
    %v2064 = vpop.f32.mrf.mxu0
    %v2065 = vadd.f32 %v1102, %v2064
    %2066 = vdwg.mxu0
    %v2067 = vmax.f32 %v2065, 0.0
    %v2069 = vsel %vm195, %v2067, 0
    %2071 = vmatpush.msra.mxu0 0.0
    %2072 = vmatpush.msra.mxu0 0.0
    %2073 = vmatpush.msra.mxu0 0.0
    %2074 = vmatpush.msra.mxu0 0.0
    %2075 = vmatpush.msra.mxu0 0.0
    %2076 = vmatpush.msra.mxu0 0.0
    %2077 = vmatpush.msra.mxu0 0.0
    %2078 = vmatpush.msra.mxu0 0.0
    %2079 = vmatpush.msra.mxu0 0.0
    %2080 = vmatpush.msra.mxu0 0.0
    %2081 = vmatpush.msra.mxu0 0.0
    %2082 = vmatpush.msra.mxu0 0.0
    %2083 = vmatpush.msra.mxu0 %v151
    %2084 = vmatpush.msra.mxu0 %v150
    %2085 = vmatpush.msra.mxu0 %v149
    %2086 = vmatpush.msra.mxu0 %v148
    %2087 = vmatmul.f32.gmra.mxu0 %v2069
    %v2088 = vpop.f32.mrf.mxu0
    %v2089 = vadd.f32 %v1128, %v2088
    %2090 = vdwg.mxu0
    %2091 = vmatpush.msra.mxu0 0.0
    %2092 = vmatpush.msra.mxu0 0.0
    %2093 = vmatpush.msra.mxu0 0.0
    %2094 = vmatpush.msra.mxu0 0.0
    %2095 = vmatpush.msra.mxu0 0.0
    %2096 = vmatpush.msra.mxu0 0.0
    %2097 = vmatpush.msra.mxu0 0.0
    %2098 = vmatpush.msra.mxu0 0.0
    %2099 = vmatpush.msra.mxu0 0.0
    %2100 = vmatpush.msra.mxu0 0.0
    %2101 = vmatpush.msra.mxu0 0.0
    %2102 = vmatpush.msra.mxu0 0.0
    %2103 = vmatpush.msra.mxu0 %v156
    %2104 = vmatpush.msra.mxu0 %v155
    %2105 = vmatpush.msra.mxu0 %v154
    %2106 = vmatpush.msra.mxu0 %v153
    %2107 = vmatmul.f32.gmra.mxu0 %v2020
    %v2108 = vpop.f32.mrf.mxu0
    %v2109 = vadd.f32 %v1154, %v2108
    %2110 = vdwg.mxu0
    %v2111 = vadd.f32 %v2089, %v2109
    %v2112 = vxor.u32 %v2111, 2147483648
    %v2113 = vmul.f32 %v2112, 1.442695
    %v2114 = vpow.pop %v2113
    %v2115 = vadd.f32 %v2114, 1.0
    %v2116 = vrcp.pop %v2115
    %v2117 = vmul.f32 %v2115, %v2116
    %v2118 = vsub.f32 1.0, %v2117
    %v2119 = vmul.f32 %v2116, %v2118
    %v2120 = vadd.f32 %v2116, %v2119
    %vm2121 = vweird.f32 %v2115
    %vm2122 = vweird.f32 %v2116
    %vm2123 = vmor %vm2121, %vm2122
    %v2124 = vsel %vm2123, %v2116, %v2120
    %v2125 = vand.u32 2147483647, %v2115
    %vm2126 = vcmp.eq.f32.partialorder %v2125, 8.507059e+37
    %v2127 = vand.u32 %v2115, 2147483648
    %v2128 = vor.u32 1.1754944e-38, %v2127
    %v2129 = vsel %vm2126, %v2128, %v2124
    %v2130 = vmul.f32 1.0, %v2129
    %2132 = vrot.lane.b32.xlu0 %v2109, 64
    %v2133 = vpop.permute.xlu0 %2132
    %v2135 = vmul.f32 %v2130, %v2133
    %2137 = vrot.lane.b32.xlu0 %v2135, 64
    %v2138 = vpop.permute.xlu0 %2137
    %v2140 = vadd.f32 %v2089, %v2138
    %v2141 = vtanh.pop %v2140
    %v2142 = vsub.f32 1.0, %v2130
    %2144 = vrot.lane.b32.xlu0 %v2141, 96
    %v2145 = vpop.permute.xlu0 %2144
    %v2147 = vmul.f32 %v2142, %v2145
    %v2148 = vmul.f32 %v2130, %v2016
    %v2149 = vadd.f32 %v2147, %v2148
    %2151 = vrot.lane.b32.xlu0 %v2149, 96
    %v2152 = vpop.permute.xlu0 %2151
    %v2153 = vsel %vm195, %v2152, 0
    %2155 = vmatpush.msra.mxu0 0.0
    %2156 = vmatpush.msra.mxu0 0.0
    %2157 = vmatpush.msra.mxu0 0.0
    %2158 = vmatpush.msra.mxu0 0.0
    %2159 = vmatpush.msra.mxu0 0.0
    %2160 = vmatpush.msra.mxu0 0.0
    %2161 = vmatpush.msra.mxu0 0.0
    %2162 = vmatpush.msra.mxu0 0.0
    %2163 = vmatpush.msra.mxu0 0.0
    %2164 = vmatpush.msra.mxu0 0.0
    %2165 = vmatpush.msra.mxu0 0.0
    %2166 = vmatpush.msra.mxu0 0.0
    %2167 = vmatpush.msra.mxu0 %v161
    %2168 = vmatpush.msra.mxu0 %v160
    %2169 = vmatpush.msra.mxu0 %v159
    %2170 = vmatpush.msra.mxu0 %v158
    %2171 = vmatmul.f32.gmra.mxu0 %v2153
    %v2172 = vpop.f32.mrf.mxu0
    %v2173 = vadd.f32 %v1218, %v2172
    %2174 = vdwg.mxu0
    %s2175 = scalar_lea.vmem [#allocation11], 56
    %2176 = vst.msk [vmem:[%s2175] sm:$0xff] %vm167, %v2173
    // Predicated region
    $region82: #{tpu_custom_call.1} parent=1 // pred_check
      _
    $region83: #{tpu_custom_call.1} parent=1 // pred_check_branch
      %2178 = sbr.rel (0) target = $region85
    $region84: #{tpu_custom_call.1} parent=1 // pred_region
      %2180 = vsyncadd [#allocation4], 0
      %s2181 = sshll.u32 [#allocation11], 4
      %s2182 = int_to_ptr.vmem [resolvable:$true] %s2181
      %s2183 = sshll.u32 %s15, 4
      %s2184 = int_to_ptr.hbm [resolvable:$true] %s2183
      %2189 = dma.vmem_to_hbm [thread:$0]  %s2182, 1024, %s2184, [#allocation4], 128, 128, 8
    $region85: #{tpu_custom_call.1} parent=1 // pred_fallthru
      _
    // Predicated region
    $region86: #{tpu_custom_call.1} parent=1 // pred_check
      _
    $region87: #{tpu_custom_call.1} parent=1 // pred_check_branch
      %2191 = sbr.rel (0) target = $region89
    $region88: #{tpu_custom_call.1} parent=1 // pred_region
      %2193 = vsyncadd [#allocation13], 0
      %s2194 = sshll.u32 [#allocation12], 4
      %s2195 = int_to_ptr.vmem [resolvable:$true] %s2194
      %s2196 = sshll.u32 %s16, 4
      %s2197 = int_to_ptr.hbm [resolvable:$true] %s2196
      %2202 = dma.vmem_to_hbm [thread:$0]  %s2195, 1024, %s2197, [#allocation13], 128, 128, 8
    $region89: #{tpu_custom_call.1} parent=1 // pred_fallthru
      _
    // Predicated region
    $region90: #{tpu_custom_call.1} parent=1 // pred_check
      _
    $region91: #{tpu_custom_call.1} parent=1 // pred_check_branch
      %2204 = sbr.rel (0) target = $region93
    $region92: #{tpu_custom_call.1} parent=1 // pred_region
      %2206 = dma.done [#allocation4], 1024
    $region93: #{tpu_custom_call.1} parent=1 // pred_fallthru
      _
    // Predicated region
    $region94: #{tpu_custom_call.1} parent=1 // pred_check
      _
    $region95: #{tpu_custom_call.1} parent=1 // pred_check_branch
      %2208 = sbr.rel (0) target = $region97
    $region96: #{tpu_custom_call.1} parent=1 // pred_region
      %2210 = dma.done [#allocation13], 1024
    $region97: #{tpu_custom_call.1} parent=1 // pred_fallthru
      _
    %2211 = vsyncpa [#allocation3], 1
    %2212 = vsyncpa [#allocation6], 1
    %2213 = vsyncpa [#allocation9], 1
    %2214 = vsyncpa [#allocation4], 1
    %2215 = vsyncpa [#allocation13], 1

</llo_original>
